<compile_context>
chip_gen: v6e
topology: v6e:2x2x1
jax: 0.10.0
libtpu: 0.0.40
codegen_flags: <defaults>
</compile_context>

<pallas_src>
import jax
import jax.numpy as jnp
from jax import lax
from jax.experimental import pallas as pl
from jax.experimental.pallas import tpu as pltpu


# ----------------------------------------------------------------------------
# Pallas kernel: Bb images per grid step.
#   x_ref     : (Bb, H, W, Cp)    raw input (f32, channel-padded) -> residual
#   w1_ref    : (9*Cp, Cp)        3x3 conv weights, im2col order, BN1 scale
#                                 folded into output columns, bf16
#   w2_ref    : (Cp, Cp)          1x1 conv weights, BN2 scale folded, bf16
#   p_ref     : (2, Cp)           rows = [t1, t2] additive shifts (f32)
#   out_ref   : (Bb, H, W, Cp)    output (f32)
#   hpad_ref  : (Bb, H+2, W+2, Cp) bf16 scratch: ReLU(x) with zero halo
#   patch_ref : (Bb*H*W, 9*Cp)    bf16 scratch: im2col patch slab
# ----------------------------------------------------------------------------
def resblock_kernel(x_ref, w1_ref, w2_ref, p_ref, out_ref, hpad_ref, patch_ref):
    Bb, H, W, Cp = out_ref.shape
    M = Bb * H * W

    # Zero only the 1-pixel halo ring (cheap, and safe under megacore grid
    # sharding where each TensorCore has its own uninitialized scratch).
    zr = jnp.zeros((Bb, 1, W + 2, Cp), jnp.bfloat16)
    zc = jnp.zeros((Bb, H + 2, 1, Cp), jnp.bfloat16)
    hpad_ref[:, 0:1, :, :] = zr
    hpad_ref[:, H + 1:H + 2, :, :] = zr
    hpad_ref[:, :, 0:1, :] = zc
    hpad_ref[:, :, W + 1:W + 2, :] = zc

    # ReLU(x) interior, stored directly as bf16 (the MXU operand dtype).
    # relu(0) == 0 == zero pad, so padding after the ReLU matches conv padding.
    x = x_ref[...]                                            # (Bb,H,W,Cp) f32
    hpad_ref[:, 1:H + 1, 1:W + 1, :] = jnp.maximum(x, 0.0).astype(jnp.bfloat16)

    # im2col: write the 9 shifted columns straight into the bf16 patch slab.
    k = 0
    for ky in range(3):
        for kx in range(3):
            col = hpad_ref[:, ky:ky + H, kx:kx + W, :].reshape(M, Cp)
            patch_ref[:, k * Cp:(k + 1) * Cp] = col
            k += 1

    # Single K = 9*Cp matmul on the MXU (bf16 in, f32 accumulate).
    acc = jnp.dot(patch_ref[...], w1_ref[...],
                  preferred_element_type=jnp.float32)          # (M, Cp) f32

    t1 = p_ref[0:1, :]
    t2 = p_ref[1:2, :]

    # conv1 + folded BN1 (scale already in w1) + ReLU, f32 elementwise.
    y1 = jnp.maximum(acc + t1, 0.0)

    # 1x1 conv (channel matmul, bf16 operands / f32 accumulate) + folded BN2.
    y2 = jnp.dot(y1.astype(jnp.bfloat16), w2_ref[...],
                 preferred_element_type=jnp.float32) + t2

    # Residual add (raw x, f32).
    out_ref[...] = (x + y2.reshape(Bb, H, W, Cp)).astype(out_ref.dtype)


# ----------------------------------------------------------------------------
# VMEM budget for one grid step (double-buffered I/O + weights + scratch +
# the largest in-kernel transients).
# ----------------------------------------------------------------------------
def _need_bytes(bb, H, W, Cp):
    m = bb * H * W
    io = 4 * m * Cp * 4                                  # 2x in + 2x out, f32
    wts = 2 * ((9 * Cp * Cp + Cp * Cp) * 2 + 2 * Cp * 4)  # w1 + w2 + shifts
    hpad = bb * (H + 2) * (W + 2) * Cp * 2               # bf16 halo scratch
    patches = m * 9 * Cp * 2                             # bf16 patch slab
    trans = 3 * m * Cp * 4                               # acc / y1 / x (f32)
    return io + wts + hpad + patches + trans


# ----------------------------------------------------------------------------
# Batch-block picker: aim for M = Bb*H*W ~ 2048 (MXU-friendly), keep >= 2
# (preferably even) grid steps when the batch allows (v7x dual TensorCore),
# bounded by a conservative VMEM budget (v7x has 64 MiB / TC).
# ----------------------------------------------------------------------------
def _pick_batch_block(N, H, W, Cp):
    budget = 44 * 2**20
    divisors = [d for d in range(1, N + 1) if N % d == 0]
    fitting = [d for d in divisors if _need_bytes(d, H, W, Cp) <= budget] or [1]

    target_m = 2048

    def score(d):
        steps = N // d
        m = d * H * W
        pen = abs(m - target_m)
        if N >= 2 and steps < 2:
            pen += 10**9          # never idle a v7x TensorCore if avoidable
        if N >= 4 and steps % 2 == 1:
            pen += 10**6          # prefer an even step count (no odd tail)
        return pen

    return min(fitting, key=score)


# ----------------------------------------------------------------------------
# Wrapper: NCHW in / NCHW out, channel padding to 128 lanes, parameter folding,
# pallas_call plumbing.
# ----------------------------------------------------------------------------
@jax.jit
def resblock_forward(x_nchw, params):
    (w1_hwio, b1, g1, be1, rm1, rv1,
     w2_io,   b2, g2, be2, rm2, rv2) = params
    eps = 1e-5

    N, C, H, W = x_nchw.shape
    Cp = ((C + 127) // 128) * 128          # lane-dense channel count

    # NCHW -> NHWC, zero-pad channels to Cp (glue; see NHWC end-to-end TODO).
    x = jnp.transpose(x_nchw, (0, 2, 3, 1)).astype(jnp.float32)
    x = jnp.pad(x, ((0, 0), (0, 0), (0, 0), (0, Cp - C)))

    # Fold conv bias + BatchNorm (inference) into per-channel scale/shift,
    # then fold the multiplicative scales into the weights' output columns.
    s1 = g1 / jnp.sqrt(rv1 + eps)
    t1 = (b1 - rm1) * s1 + be1
    s2 = g2 / jnp.sqrt(rv2 + eps)
    t2 = (b2 - rm2) * s2 + be2

    w1f = w1_hwio * s1[None, None, None, :]             # (3,3,C,C), f32 fold
    w2f = w2_io * s2[None, :]                           # (C,C),     f32 fold

    w1p = jnp.pad(w1f, ((0, 0), (0, 0), (0, Cp - C), (0, Cp - C)))
    w2p = jnp.pad(w2f, ((0, Cp - C), (0, Cp - C)))
    t1p = jnp.pad(t1, (0, Cp - C))
    t2p = jnp.pad(t2, (0, Cp - C))

    w1k = w1p.reshape(9 * Cp, Cp).astype(jnp.bfloat16)  # im2col order (ky,kx,ci)
    w2k = w2p.astype(jnp.bfloat16)
    p = jnp.stack([t1p, t2p], axis=0).astype(jnp.float32)   # (2, Cp)

    Bb = _pick_batch_block(N, H, W, Cp)
    grid = (N // Bb,)
    M = Bb * H * W

    need = _need_bytes(Bb, H, W, Cp)
    vmem_limit = int(min(56 * 2**20, max(32 * 2**20, int(1.25 * need))))

    out_nhwc = pl.pallas_call(
        resblock_kernel,
        out_shape=jax.ShapeDtypeStruct((N, H, W, Cp), jnp.float32),
        grid_spec=pltpu.PrefetchScalarGridSpec(
            num_scalar_prefetch=0,
            grid=grid,
            in_specs=[
                pl.BlockSpec((Bb, H, W, Cp), lambda n: (n, 0, 0, 0)),
                pl.BlockSpec((9 * Cp, Cp), lambda n: (0, 0)),
                pl.BlockSpec((Cp, Cp), lambda n: (0, 0)),
                pl.BlockSpec((2, Cp), lambda n: (0, 0)),
            ],
            out_specs=pl.BlockSpec((Bb, H, W, Cp), lambda n: (n, 0, 0, 0)),
            scratch_shapes=[
                pltpu.VMEM((Bb, H + 2, W + 2, Cp), jnp.bfloat16),
                pltpu.VMEM((M, 9 * Cp), jnp.bfloat16),
            ],
        ),
        compiler_params=pltpu.CompilerParams(
            dimension_semantics=("parallel",),
            vmem_limit_bytes=vmem_limit),
    )(x, w1k, w2k, p)

    # Drop channel padding, NHWC -> NCHW (glue).
    return jnp.transpose(out_nhwc[..., :C], (0, 3, 1, 2))


# ----------------------------------------------------------------------------
# Pure-JAX reference (same math, via lax.conv, f32) for verification.
# ----------------------------------------------------------------------------
def resblock_reference(x_nchw, params):
    (w1_hwio, b1, g1, be1, rm1, rv1,
     w2_io,   b2, g2, be2, rm2, rv2) = params
    eps = 1e-5
    x = jnp.transpose(x_nchw, (0, 2, 3, 1)).astype(jnp.float32)   # NHWC

    h = jnp.maximum(x, 0.0)
    h = lax.conv_general_dilated(
        h, w1_hwio, window_strides=(1, 1), padding="SAME",
        dimension_numbers=("NHWC", "HWIO", "NHWC")) + b1
    h = (h - rm1) / jnp.sqrt(rv1 + eps) * g1 + be1
    h = jnp.maximum(h, 0.0)
    h = jnp.einsum("nhwc,cd->nhwd", h, w2_io) + b2
    h = (h - rm2) / jnp.sqrt(rv2 + eps) * g2 + be2
    out = x + h
    return jnp.transpose(out, (0, 3, 1, 2))


# ----------------------------------------------------------------------------
# Deterministic parameter init (shapes implied by ResBlock.__init__(dim)).
# ----------------------------------------------------------------------------
def init_params(key, dim):
    ks = jax.random.split(key, 8)
    w1 = 0.1 * jax.random.normal(ks[0], (3, 3, dim, dim), jnp.float32)  # HWIO
    b1 = 0.1 * jax.random.normal(ks[1], (dim,), jnp.float32)
    g1 = 1.0 + 0.1 * jax.random.normal(ks[2], (dim,), jnp.float32)
    be1 = 0.1 * jax.random.normal(ks[3], (dim,), jnp.float32)
    rm1 = 0.1 * jax.random.normal(ks[4], (dim,), jnp.float32)
    rv1 = 1.0 + 0.1 * jnp.abs(jax.random.normal(ks[5], (dim,), jnp.float32))

    w2 = 0.1 * jax.random.normal(ks[6], (dim, dim), jnp.float32)        # (Cin, Cout)
    b2 = 0.1 * jax.random.normal(ks[7], (dim,), jnp.float32)
    g2 = 1.0 + 0.05 * jnp.cos(jnp.arange(dim, dtype=jnp.float32))
    be2 = 0.05 * jnp.sin(jnp.arange(dim, dtype=jnp.float32))
    rm2 = 0.02 * jnp.arange(dim, dtype=jnp.float32) / dim
    rv2 = 1.0 + 0.01 * jnp.arange(dim, dtype=jnp.float32)
    return (w1, b1, g1, be1, rm1, rv1, w2, b2, g2, be2, rm2, rv2)


if __name__ == "__main__":
    N, C, H, W = 2, 32, 16, 16   # dim = 32
    key = jax.random.PRNGKey(0)
    kx, kp = jax.random.split(key)
    x = jax.random.normal(kx, (N, C, H, W), jnp.float32)   # NCHW, like PyTorch
    params = init_params(kp, C)

    out = jax.block_until_ready(resblock_forward(x, params))
    ref = resblock_reference(x, params)

    assert out.shape == (N, C, H, W)
    max_err = float(jnp.max(jnp.abs(out - ref)))
    # bf16 MXU operands / bf16 halo with f32 accumulation -> looser tolerance.
    assert jnp.allclose(out, ref, atol=5e-2, rtol=5e-2), (
        f"mismatch vs reference (max abs err {max_err})")

    print("KERNEL_OK")
</pallas_src>

<mosaic_0001>
module attributes {stable_mosaic.version = 11 : i64} {
  func.func @resblock_kernel(%arg0: i32, %arg1: memref<1x16x16x128xf32, #tpu.memory_space<vmem>>, %arg2: memref<1152x128xbf16, #tpu.memory_space<vmem>>, %arg3: memref<128x128xbf16, #tpu.memory_space<vmem>>, %arg4: memref<2x128xf32, #tpu.memory_space<vmem>>, %arg5: memref<1x16x16x128xf32, #tpu.memory_space<vmem>>, %arg6: memref<1x18x18x128xbf16, #tpu.memory_space<vmem>>, %arg7: memref<256x1152xbf16, #tpu.memory_space<vmem>>) attributes {dimension_semantics = [#tpu.dimension_semantics<parallel>], iteration_bounds = array<i64: 2>, scalar_prefetch = 0 : i64, scratch_operands = 2 : i64, tpu.core_type = #tpu.core_type<tc>, window_params = [{transform_indices = @transform_0, window_bounds = array<i64: 1, 16, 16, 128>}, {pipeline_mode = #tpu.pipeline_mode<synchronous>, transform_indices = @transform_1, window_bounds = array<i64: 1152, 128>}, {pipeline_mode = #tpu.pipeline_mode<synchronous>, transform_indices = @transform_2, window_bounds = array<i64: 128, 128>}, {pipeline_mode = #tpu.pipeline_mode<synchronous>, transform_indices = @transform_3, window_bounds = array<i64: 2, 128>}, {transform_indices = @transform_4, window_bounds = array<i64: 1, 16, 16, 128>}]} {
    %cst = arith.constant 0.000000e+00 : bf16
    %0 = vector.broadcast %cst : bf16 to vector<1x1x18x128xbf16>
    %cst_0 = arith.constant 0.000000e+00 : bf16
    %1 = vector.broadcast %cst_0 : bf16 to vector<1x18x1x128xbf16>
    %c0 = arith.constant 0 : index
    %c0_1 = arith.constant 0 : index
    %c0_2 = arith.constant 0 : index
    %c0_3 = arith.constant 0 : index
    %2 = vector.load %arg6[%c0, %c0_1, %c0_2, %c0_3] : memref<1x18x18x128xbf16, #tpu.memory_space<vmem>>, vector<1x1x18x128xbf16>
    tpu.vector_store %arg6[%c0, %c0_1, %c0_2, %c0_3], %0 {strides = array<i32>} : memref<1x18x18x128xbf16, #tpu.memory_space<vmem>>, vector<1x1x18x128xbf16>,
    %c0_4 = arith.constant 0 : index
    %c17 = arith.constant 17 : index
    %c0_5 = arith.constant 0 : index
    %c0_6 = arith.constant 0 : index
    %3 = vector.load %arg6[%c0_4, %c17, %c0_5, %c0_6] : memref<1x18x18x128xbf16, #tpu.memory_space<vmem>>, vector<1x1x18x128xbf16>
    tpu.vector_store %arg6[%c0_4, %c17, %c0_5, %c0_6], %0 {strides = array<i32>} : memref<1x18x18x128xbf16, #tpu.memory_space<vmem>>, vector<1x1x18x128xbf16>,
    %c0_7 = arith.constant 0 : index
    %c0_8 = arith.constant 0 : index
    %c0_9 = arith.constant 0 : index
    %c0_10 = arith.constant 0 : index
    %4 = vector.load %arg6[%c0_7, %c0_8, %c0_9, %c0_10] : memref<1x18x18x128xbf16, #tpu.memory_space<vmem>>, vector<1x18x1x128xbf16>
    tpu.vector_store %arg6[%c0_7, %c0_8, %c0_9, %c0_10], %1 {strides = array<i32>} : memref<1x18x18x128xbf16, #tpu.memory_space<vmem>>, vector<1x18x1x128xbf16>,
    %c0_11 = arith.constant 0 : index
    %c0_12 = arith.constant 0 : index
    %c17_13 = arith.constant 17 : index
    %c0_14 = arith.constant 0 : index
    %5 = vector.load %arg6[%c0_11, %c0_12, %c17_13, %c0_14] : memref<1x18x18x128xbf16, #tpu.memory_space<vmem>>, vector<1x18x1x128xbf16>
    tpu.vector_store %arg6[%c0_11, %c0_12, %c17_13, %c0_14], %1 {strides = array<i32>} : memref<1x18x18x128xbf16, #tpu.memory_space<vmem>>, vector<1x18x1x128xbf16>,
    %c0_15 = arith.constant 0 : index
    %c0_16 = arith.constant 0 : index
    %c0_17 = arith.constant 0 : index
    %c0_18 = arith.constant 0 : index
    %6 = vector.load %arg1[%c0_15, %c0_16, %c0_17, %c0_18] : memref<1x16x16x128xf32, #tpu.memory_space<vmem>>, vector<1x16x16x128xf32>
    %cst_19 = arith.constant 0.000000e+00 : f32
    %7 = vector.broadcast %cst_19 : f32 to vector<1x16x16x128xf32>
    %8 = arith.maximumf %6, %7 : vector<1x16x16x128xf32>
    %9 = arith.truncf %8 : vector<1x16x16x128xf32> to vector<1x16x16x128xbf16>
    %c0_20 = arith.constant 0 : index
    %c1 = arith.constant 1 : index
    %c1_21 = arith.constant 1 : index
    %c0_22 = arith.constant 0 : index
    %10 = vector.load %arg6[%c0_20, %c1, %c1_21, %c0_22] : memref<1x18x18x128xbf16, #tpu.memory_space<vmem>>, vector<1x16x16x128xbf16>
    tpu.vector_store %arg6[%c0_20, %c1, %c1_21, %c0_22], %9 {strides = array<i32>} : memref<1x18x18x128xbf16, #tpu.memory_space<vmem>>, vector<1x16x16x128xbf16>,
    %c0_23 = arith.constant 0 : index
    %c0_24 = arith.constant 0 : index
    %c0_25 = arith.constant 0 : index
    %c0_26 = arith.constant 0 : index
    %11 = vector.load %arg6[%c0_23, %c0_24, %c0_25, %c0_26] : memref<1x18x18x128xbf16, #tpu.memory_space<vmem>>, vector<1x16x16x128xbf16>
    %12 = vector.shape_cast %11 : vector<1x16x16x128xbf16> to vector<256x128xbf16>
    %c0_27 = arith.constant 0 : index
    %c0_28 = arith.constant 0 : index
    %13 = vector.load %arg7[%c0_27, %c0_28] : memref<256x1152xbf16, #tpu.memory_space<vmem>>, vector<256x128xbf16>
    tpu.vector_store %arg7[%c0_27, %c0_28], %12 {strides = array<i32>} : memref<256x1152xbf16, #tpu.memory_space<vmem>>, vector<256x128xbf16>,
    %c0_29 = arith.constant 0 : index
    %c0_30 = arith.constant 0 : index
    %c1_31 = arith.constant 1 : index
    %c0_32 = arith.constant 0 : index
    %14 = vector.load %arg6[%c0_29, %c0_30, %c1_31, %c0_32] : memref<1x18x18x128xbf16, #tpu.memory_space<vmem>>, vector<1x16x16x128xbf16>
    %15 = vector.shape_cast %14 : vector<1x16x16x128xbf16> to vector<256x128xbf16>
    %c0_33 = arith.constant 0 : index
    %c128 = arith.constant 128 : index
    %16 = vector.load %arg7[%c0_33, %c128] : memref<256x1152xbf16, #tpu.memory_space<vmem>>, vector<256x128xbf16>
    tpu.vector_store %arg7[%c0_33, %c128], %15 {strides = array<i32>} : memref<256x1152xbf16, #tpu.memory_space<vmem>>, vector<256x128xbf16>,
    %c0_34 = arith.constant 0 : index
    %c0_35 = arith.constant 0 : index
    %c2 = arith.constant 2 : index
    %c0_36 = arith.constant 0 : index
    %17 = vector.load %arg6[%c0_34, %c0_35, %c2, %c0_36] : memref<1x18x18x128xbf16, #tpu.memory_space<vmem>>, vector<1x16x16x128xbf16>
    %18 = vector.shape_cast %17 : vector<1x16x16x128xbf16> to vector<256x128xbf16>
    %c0_37 = arith.constant 0 : index
    %c256 = arith.constant 256 : index
    %19 = vector.load %arg7[%c0_37, %c256] : memref<256x1152xbf16, #tpu.memory_space<vmem>>, vector<256x128xbf16>
    tpu.vector_store %arg7[%c0_37, %c256], %18 {strides = array<i32>} : memref<256x1152xbf16, #tpu.memory_space<vmem>>, vector<256x128xbf16>,
    %c0_38 = arith.constant 0 : index
    %c1_39 = arith.constant 1 : index
    %c0_40 = arith.constant 0 : index
    %c0_41 = arith.constant 0 : index
    %20 = vector.load %arg6[%c0_38, %c1_39, %c0_40, %c0_41] : memref<1x18x18x128xbf16, #tpu.memory_space<vmem>>, vector<1x16x16x128xbf16>
    %21 = vector.shape_cast %20 : vector<1x16x16x128xbf16> to vector<256x128xbf16>
    %c0_42 = arith.constant 0 : index
    %c384 = arith.constant 384 : index
    %22 = vector.load %arg7[%c0_42, %c384] : memref<256x1152xbf16, #tpu.memory_space<vmem>>, vector<256x128xbf16>
    tpu.vector_store %arg7[%c0_42, %c384], %21 {strides = array<i32>} : memref<256x1152xbf16, #tpu.memory_space<vmem>>, vector<256x128xbf16>,
    %c0_43 = arith.constant 0 : index
    %c1_44 = arith.constant 1 : index
    %c1_45 = arith.constant 1 : index
    %c0_46 = arith.constant 0 : index
    %23 = vector.load %arg6[%c0_43, %c1_44, %c1_45, %c0_46] : memref<1x18x18x128xbf16, #tpu.memory_space<vmem>>, vector<1x16x16x128xbf16>
    %24 = vector.shape_cast %23 : vector<1x16x16x128xbf16> to vector<256x128xbf16>
    %c0_47 = arith.constant 0 : index
    %c512 = arith.constant 512 : index
    %25 = vector.load %arg7[%c0_47, %c512] : memref<256x1152xbf16, #tpu.memory_space<vmem>>, vector<256x128xbf16>
    tpu.vector_store %arg7[%c0_47, %c512], %24 {strides = array<i32>} : memref<256x1152xbf16, #tpu.memory_space<vmem>>, vector<256x128xbf16>,
    %c0_48 = arith.constant 0 : index
    %c1_49 = arith.constant 1 : index
    %c2_50 = arith.constant 2 : index
    %c0_51 = arith.constant 0 : index
    %26 = vector.load %arg6[%c0_48, %c1_49, %c2_50, %c0_51] : memref<1x18x18x128xbf16, #tpu.memory_space<vmem>>, vector<1x16x16x128xbf16>
    %27 = vector.shape_cast %26 : vector<1x16x16x128xbf16> to vector<256x128xbf16>
    %c0_52 = arith.constant 0 : index
    %c640 = arith.constant 640 : index
    %28 = vector.load %arg7[%c0_52, %c640] : memref<256x1152xbf16, #tpu.memory_space<vmem>>, vector<256x128xbf16>
    tpu.vector_store %arg7[%c0_52, %c640], %27 {strides = array<i32>} : memref<256x1152xbf16, #tpu.memory_space<vmem>>, vector<256x128xbf16>,
    %c0_53 = arith.constant 0 : index
    %c2_54 = arith.constant 2 : index
    %c0_55 = arith.constant 0 : index
    %c0_56 = arith.constant 0 : index
    %29 = vector.load %arg6[%c0_53, %c2_54, %c0_55, %c0_56] : memref<1x18x18x128xbf16, #tpu.memory_space<vmem>>, vector<1x16x16x128xbf16>
    %30 = vector.shape_cast %29 : vector<1x16x16x128xbf16> to vector<256x128xbf16>
    %c0_57 = arith.constant 0 : index
    %c768 = arith.constant 768 : index
    %31 = vector.load %arg7[%c0_57, %c768] : memref<256x1152xbf16, #tpu.memory_space<vmem>>, vector<256x128xbf16>
    tpu.vector_store %arg7[%c0_57, %c768], %30 {strides = array<i32>} : memref<256x1152xbf16, #tpu.memory_space<vmem>>, vector<256x128xbf16>,
    %c0_58 = arith.constant 0 : index
    %c2_59 = arith.constant 2 : index
    %c1_60 = arith.constant 1 : index
    %c0_61 = arith.constant 0 : index
    %32 = vector.load %arg6[%c0_58, %c2_59, %c1_60, %c0_61] : memref<1x18x18x128xbf16, #tpu.memory_space<vmem>>, vector<1x16x16x128xbf16>
    %33 = vector.shape_cast %32 : vector<1x16x16x128xbf16> to vector<256x128xbf16>
    %c0_62 = arith.constant 0 : index
    %c896 = arith.constant 896 : index
    %34 = vector.load %arg7[%c0_62, %c896] : memref<256x1152xbf16, #tpu.memory_space<vmem>>, vector<256x128xbf16>
    tpu.vector_store %arg7[%c0_62, %c896], %33 {strides = array<i32>} : memref<256x1152xbf16, #tpu.memory_space<vmem>>, vector<256x128xbf16>,
    %c0_63 = arith.constant 0 : index
    %c2_64 = arith.constant 2 : index
    %c2_65 = arith.constant 2 : index
    %c0_66 = arith.constant 0 : index
    %35 = vector.load %arg6[%c0_63, %c2_64, %c2_65, %c0_66] : memref<1x18x18x128xbf16, #tpu.memory_space<vmem>>, vector<1x16x16x128xbf16>
    %36 = vector.shape_cast %35 : vector<1x16x16x128xbf16> to vector<256x128xbf16>
    %c0_67 = arith.constant 0 : index
    %c1024 = arith.constant 1024 : index
    %37 = vector.load %arg7[%c0_67, %c1024] : memref<256x1152xbf16, #tpu.memory_space<vmem>>, vector<256x128xbf16>
    tpu.vector_store %arg7[%c0_67, %c1024], %36 {strides = array<i32>} : memref<256x1152xbf16, #tpu.memory_space<vmem>>, vector<256x128xbf16>,
    %c0_68 = arith.constant 0 : index
    %c0_69 = arith.constant 0 : index
    %38 = vector.load %arg7[%c0_68, %c0_69] : memref<256x1152xbf16, #tpu.memory_space<vmem>>, vector<256x1152xbf16>
    %c0_70 = arith.constant 0 : index
    %c0_71 = arith.constant 0 : index
    %39 = vector.load %arg2[%c0_70, %c0_71] : memref<1152x128xbf16, #tpu.memory_space<vmem>>, vector<1152x128xbf16>
    %cst_72 = arith.constant dense<0.000000e+00> : vector<256x128xf32>
    %40 = tpu.matmul %38, %39, %cst_72 {dimension_numbers = #tpu.dot_dimension_numbers<[1], [0], [0], [1], [0, 0, 1, 1], [], []>} : vector<256x1152xbf16>, vector<1152x128xbf16>, vector<256x128xf32> -> vector<256x128xf32>
    %c0_73 = arith.constant 0 : index
    %c0_74 = arith.constant 0 : index
    %41 = vector.load %arg4[%c0_73, %c0_74] : memref<2x128xf32, #tpu.memory_space<vmem>>, vector<1x128xf32>
    %c1_75 = arith.constant 1 : index
    %c0_76 = arith.constant 0 : index
    %42 = vector.load %arg4[%c1_75, %c0_76] : memref<2x128xf32, #tpu.memory_space<vmem>>, vector<1x128xf32>
    %43 = vector.broadcast %41 : vector<1x128xf32> to vector<256x128xf32>
    %44 = arith.addf %40, %43 : vector<256x128xf32>
    %cst_77 = arith.constant 0.000000e+00 : f32
    %45 = vector.broadcast %cst_77 : f32 to vector<256x128xf32>
    %46 = arith.maximumf %44, %45 : vector<256x128xf32>
    %47 = arith.truncf %46 : vector<256x128xf32> to vector<256x128xbf16>
    %c0_78 = arith.constant 0 : index
    %c0_79 = arith.constant 0 : index
    %48 = vector.load %arg3[%c0_78, %c0_79] : memref<128x128xbf16, #tpu.memory_space<vmem>>, vector<128x128xbf16>
    %cst_80 = arith.constant dense<0.000000e+00> : vector<256x128xf32>
    %49 = tpu.matmul %47, %48, %cst_80 {dimension_numbers = #tpu.dot_dimension_numbers<[1], [0], [0], [1], [0, 0, 1, 1], [], []>} : vector<256x128xbf16>, vector<128x128xbf16>, vector<256x128xf32> -> vector<256x128xf32>
    %50 = vector.broadcast %42 : vector<1x128xf32> to vector<256x128xf32>
    %51 = arith.addf %49, %50 : vector<256x128xf32>
    %52 = vector.shape_cast %51 : vector<256x128xf32> to vector<1x16x16x128xf32>
    %53 = arith.addf %6, %52 : vector<1x16x16x128xf32>
    %c0_81 = arith.constant 0 : index
    %c0_82 = arith.constant 0 : index
    %c0_83 = arith.constant 0 : index
    %c0_84 = arith.constant 0 : index
    %54 = vector.load %arg5[%c0_81, %c0_82, %c0_83, %c0_84] : memref<1x16x16x128xf32, #tpu.memory_space<vmem>>, vector<1x16x16x128xf32>
    tpu.vector_store %arg5[%c0_81, %c0_82, %c0_83, %c0_84], %53 {strides = array<i32>} : memref<1x16x16x128xf32, #tpu.memory_space<vmem>>, vector<1x16x16x128xf32>,
    return
  }
  func.func @transform_0(%arg0: i32) -> (i32, i32, i32, i32) {
    %c0_i32 = arith.constant 0 : i32
    %c0_i32_0 = arith.constant 0 : i32
    %c0_i32_1 = arith.constant 0 : i32
    %c0_i32_2 = arith.constant 0 : i32
    return %arg0, %c0_i32, %c0_i32_0, %c0_i32_1 : i32, i32, i32, i32
  }
  func.func @transform_1(%arg0: i32) -> (i32, i32) {
    %c0_i32 = arith.constant 0 : i32
    %c0_i32_0 = arith.constant 0 : i32
    %c0_i32_1 = arith.constant 0 : i32
    return %c0_i32, %c0_i32_0 : i32, i32
  }
  func.func @transform_2(%arg0: i32) -> (i32, i32) {
    %c0_i32 = arith.constant 0 : i32
    %c0_i32_0 = arith.constant 0 : i32
    %c0_i32_1 = arith.constant 0 : i32
    return %c0_i32, %c0_i32_0 : i32, i32
  }
  func.func @transform_3(%arg0: i32) -> (i32, i32) {
    %c0_i32 = arith.constant 0 : i32
    %c0_i32_0 = arith.constant 0 : i32
    %c0_i32_1 = arith.constant 0 : i32
    return %c0_i32, %c0_i32_0 : i32, i32
  }
  func.func @transform_4(%arg0: i32) -> (i32, i32, i32, i32) {
    %c0_i32 = arith.constant 0 : i32
    %c0_i32_0 = arith.constant 0 : i32
    %c0_i32_1 = arith.constant 0 : i32
    %c0_i32_2 = arith.constant 0 : i32
    return %arg0, %c0_i32, %c0_i32_0, %c0_i32_1 : i32, i32, i32, i32
  }
}

</mosaic_0001>

<llo_original>
// kernel: resblock_forward.1
$region0: #{resblock_forward.1}
  #allocation0 [shape = 'u32[]', space=smem, size = 0x4, offset = 0x4, fixed_abs, tag = 'smem constant byte address 0x4 - core index']
  #allocation1 [shape = 'u32[144,128]{1,0:T(1,128)}', space=vmem, size = 0x12000, scoped, tag = 'internal scratch']
  #allocation2 [shape = 'bf16[1,18,18,128]{3,2,1,0:T(8,128)(2,1)}', space=vmem, size = 0x1b000, scoped, tag = 'scratch operand']
  #allocation3 [shape = 'bf16[256,1152]{1,0:T(8,128)(2,1)}', space=vmem, size = 0x90000, scoped, tag = 'scratch operand']
  %s0 = inlined_call_operand.vmem [shape: f32[2,16,16,128], index: 0, kind: input, shape index: {}]
  %s1 = inlined_call_operand.vmem [shape: bf16[1152,128], index: 1, kind: input, shape index: {}]
  %s2 = inlined_call_operand.vmem [shape: bf16[128,128], index: 2, kind: input, shape index: {}]
  %s3 = inlined_call_operand.vmem [shape: f32[2,128], index: 3, kind: input, shape index: {}]
  %s4 = inlined_call_operand.vmem [shape: f32[2,16,16,128], index: 4, kind: output, shape index: {}]
  %s5 = sld [smem:[#allocation0]]
  $region49: #{resblock_forward.1} parent=0
    _
  %s7 = ssub.s32 1, %s5
  %s8 = scalar_select 0, %s7, %s5
  loop: start=0, step=1, limit=4
  $region2: #{resblock_forward.1} parent=0 // loop_pre_header
    _
  $region3: #{resblock_forward.1} parent=0 // loop_header
    %s10 = sphi 0, %s14
    %p11 = scmp.ge.s32.totalorder %s10, 4
    %s20 = sphi 0, %s22
    %s23 = sphi 0, %s20
    %s24 = sphi 0, %s23
    %s40 = sphi 0, %s24
    %s44 = sphi 0, %s44
    %s46 = sphi 0, %s44
    %s47 = sphi 0, %s46
    %s61 = sphi 0, %s47
    %s65 = sphi 0, %s65
    %s67 = sphi 0, %s65
    %s68 = sphi 0, %s67
    %s82 = sphi 0, %s68
    %s86 = sphi 0, %s86
    %s88 = sphi 0, %s86
    %s89 = sphi 0, %s88
    %s103 = sphi 0, %s89
    %s109 = sphi 0, %s111
    %s112 = sphi 0, %s109
    %s113 = sphi 0, %s112
    %s129 = sphi 0, %s113
  $region4: #{resblock_forward.1} parent=0 // loop_header_branch
    %13 = sbr.rel (%p11) target = $region8
  $region5: #{resblock_forward.1} parent=0 // loop_body
    %s15 = ssub.s32 %s10, 1
    %s16 = ssub.s32 %s10, 2
    %s17 = sadd.s32 %s10, 1
    %s18 = ssub.s32 %s10, %s17
    %p19 = scmp.eq.s32.totalorder %s18, 0
    %s21 = sadd.s32 %s20, 1
    %s22 = scalar_select %p19, %s20, %s21
    %p25 = pneg %p19
    %p26 = scmp.eq.s32.totalorder %s10, 1
    %p27 = por %p25, %p26
    %p28 = scmp.ne.s32.totalorder %s20, %s23
    %p29 = scmp.eq.s32.totalorder %s10, 0
    %p30 = por %p28, %p29
    %p31 = scmp.ne.s32.totalorder %s20, %s23
    %p32 = scmp.eq.s32.totalorder %s15, 1
    %p33 = por %p31, %p32
    %p34 = scmp.ne.s32.totalorder %s23, %s24
    %p35 = scmp.eq.s32.totalorder %s15, 0
    %p36 = por %p34, %p35
    %p37 = scmp.ne.s32.totalorder %s23, %s24
    %p38 = scmp.eq.s32.totalorder %s16, 1
    %p39 = por %p37, %p38
    %p41 = scmp.ne.s32.totalorder %s24, %s40
    %p42 = scmp.eq.s32.totalorder %s16, 0
    %p43 = por %p41, %p42
    %s45 = sadd.s32 %s44, 1
    %p48 = scmp.eq.s32.totalorder %s10, 1
    %p49 = scmp.ne.s32.totalorder %s44, %s46
    %p50 = scmp.eq.s32.totalorder %s10, 0
    %p51 = por %p49, %p50
    %p52 = scmp.ne.s32.totalorder %s44, %s46
    %p53 = scmp.eq.s32.totalorder %s15, 1
    %p54 = por %p52, %p53
    %p55 = scmp.ne.s32.totalorder %s46, %s47
    %p56 = scmp.eq.s32.totalorder %s15, 0
    %p57 = por %p55, %p56
    %p58 = scmp.ne.s32.totalorder %s46, %s47
    %p59 = scmp.eq.s32.totalorder %s16, 1
    %p60 = por %p58, %p59
    %p62 = scmp.ne.s32.totalorder %s47, %s61
    %p63 = scmp.eq.s32.totalorder %s16, 0
    %p64 = por %p62, %p63
    %s66 = sadd.s32 %s65, 1
    %p69 = scmp.eq.s32.totalorder %s10, 1
    %p70 = scmp.ne.s32.totalorder %s65, %s67
    %p71 = scmp.eq.s32.totalorder %s10, 0
    %p72 = por %p70, %p71
    %p73 = scmp.ne.s32.totalorder %s65, %s67
    %p74 = scmp.eq.s32.totalorder %s15, 1
    %p75 = por %p73, %p74
    %p76 = scmp.ne.s32.totalorder %s67, %s68
    %p77 = scmp.eq.s32.totalorder %s15, 0
    %p78 = por %p76, %p77
    %p79 = scmp.ne.s32.totalorder %s67, %s68
    %p80 = scmp.eq.s32.totalorder %s16, 1
    %p81 = por %p79, %p80
    %p83 = scmp.ne.s32.totalorder %s68, %s82
    %p84 = scmp.eq.s32.totalorder %s16, 0
    %p85 = por %p83, %p84
    %s87 = sadd.s32 %s86, 1
    %p90 = scmp.eq.s32.totalorder %s10, 1
    %p91 = scmp.ne.s32.totalorder %s86, %s88
    %p92 = scmp.eq.s32.totalorder %s10, 0
    %p93 = por %p91, %p92
    %p94 = scmp.ne.s32.totalorder %s86, %s88
    %p95 = scmp.eq.s32.totalorder %s15, 1
    %p96 = por %p94, %p95
    %p97 = scmp.ne.s32.totalorder %s88, %s89
    %p98 = scmp.eq.s32.totalorder %s15, 0
    %p99 = por %p97, %p98
    %p100 = scmp.ne.s32.totalorder %s88, %s89
    %p101 = scmp.eq.s32.totalorder %s16, 1
    %p102 = por %p100, %p101
    %p104 = scmp.ne.s32.totalorder %s89, %s103
    %p105 = scmp.eq.s32.totalorder %s16, 0
    %p106 = por %p104, %p105
    %s107 = ssub.s32 %s10, %s17
    %p108 = scmp.eq.s32.totalorder %s107, 0
    %s110 = sadd.s32 %s109, 1
    %s111 = scalar_select %p108, %s109, %s110
    %p114 = pneg %p108
    %p115 = scmp.eq.s32.totalorder %s10, 1
    %p116 = por %p114, %p115
    %p117 = scmp.ne.s32.totalorder %s109, %s112
    %p118 = scmp.eq.s32.totalorder %s10, 0
    %p119 = por %p117, %p118
    %p120 = scmp.ne.s32.totalorder %s109, %s112
    %p121 = scmp.eq.s32.totalorder %s15, 1
    %p122 = por %p120, %p121
    %p123 = scmp.ne.s32.totalorder %s112, %s113
    %p124 = scmp.eq.s32.totalorder %s15, 0
    %p125 = por %p123, %p124
    %p126 = scmp.ne.s32.totalorder %s112, %s113
    %p127 = scmp.eq.s32.totalorder %s16, 1
    %p128 = por %p126, %p127
    %p130 = scmp.ne.s32.totalorder %s113, %s129
    %p131 = scmp.eq.s32.totalorder %s16, 0
    %p132 = por %p130, %p131
    %p133 = scmp.le.s32.totalorder 1, %s10
    %p134 = scmp.lt.s32.totalorder %s10, 3
    %p135 = pnand %p133, %p134
    %p136 = pneg %p135
    // Predicated region
    $region9: #{resblock_forward.1} parent=5 // pred_check
      _
    $region10: #{resblock_forward.1} parent=5 // pred_check_branch
      %138 = sbr.rel (%p135) target = $region12
    $region11: #{resblock_forward.1} parent=5 // pred_region
      %s139 = ssub.s32 %s10, 1
      // Predicated region
      $region13: #{resblock_forward.1} parent=11 // pred_check
        %p140 = pneg %p57
      $region14: #{resblock_forward.1} parent=11 // pred_check_branch
        %142 = sbr.rel (%p140) target = $region16
      $region15: #{resblock_forward.1} parent=11 // pred_region
        _
      $region16: #{resblock_forward.1} parent=11 // pred_fallthru
        _
      // Predicated region
      $region17: #{resblock_forward.1} parent=11 // pred_check
        %p143 = pneg %p78
      $region18: #{resblock_forward.1} parent=11 // pred_check_branch
        %145 = sbr.rel (%p143) target = $region20
      $region19: #{resblock_forward.1} parent=11 // pred_region
        _
      $region20: #{resblock_forward.1} parent=11 // pred_fallthru
        _
      // Predicated region
      $region21: #{resblock_forward.1} parent=11 // pred_check
        %p146 = pneg %p99
      $region22: #{resblock_forward.1} parent=11 // pred_check_branch
        %148 = sbr.rel (%p146) target = $region24
      $region23: #{resblock_forward.1} parent=11 // pred_region
        _
      $region24: #{resblock_forward.1} parent=11 // pred_fallthru
        _
    $region12: #{resblock_forward.1} parent=5 // pred_fallthru
      _
    %p149 = scmp.lt.s32.totalorder %s10, 2
    // Predicated region
    $region25: #{resblock_forward.1} parent=5 // pred_check
      %p150 = pneg %p149
    $region26: #{resblock_forward.1} parent=5 // pred_check_branch
      %152 = sbr.rel (%p150) target = $region28
    $region27: #{resblock_forward.1} parent=5 // pred_region
      // Predicated region
      $region29: #{resblock_forward.1} parent=27 // pred_check
        %p153 = pneg %p30
      $region30: #{resblock_forward.1} parent=27 // pred_check_branch
        %155 = sbr.rel (%p153) target = $region32
      $region31: #{resblock_forward.1} parent=27 // pred_region
        %p156 = scmp.lt.s32.totalorder %s10, 1
        %s157 = scalar_select %p156, %s10, 1
        %s158 = smul.addr %s157, 32
        %s159 = smul.addr %s158, 8
        %s160 = scalar_lea.vmem %s0, %s159
      $region32: #{resblock_forward.1} parent=27 // pred_fallthru
        _
    $region28: #{resblock_forward.1} parent=5 // pred_fallthru
      _
    %p161 = scmp.le.s32.totalorder 1, %s10
    %p162 = scmp.lt.s32.totalorder %s10, 3
    %p163 = pnand %p161, %p162
    %p164 = pneg %p163
    // Predicated region
    $region33: #{resblock_forward.1} parent=5 // pred_check
      _
    $region34: #{resblock_forward.1} parent=5 // pred_check_branch
      %166 = sbr.rel (%p163) target = $region36
    $region35: #{resblock_forward.1} parent=5 // pred_region
      %s167 = ssub.s32 %s10, 1
      %p168 = scmp.lt.s32.totalorder %s15, 1
      %s169 = scalar_select %p168, %s15, 1
      %s170 = smul.addr %s169, 32
      %s171 = smul.addr %s170, 8
      %s172 = scalar_lea.vmem %s0, %s171
      %p173 = pneg %p36
      %p174 = pneg %p33
      %p175 = pneg %p57
      %p176 = pneg %p54
      %p177 = pneg %p78
      %p178 = pneg %p75
      %p179 = pneg %p99
      %p180 = pneg %p96
      %p181 = pneg %p125
      %p182 = pneg %p122
      %p183 = scmp.lt.s32.totalorder %s15, 1
      %s184 = scalar_select %p183, %s15, 1
      %s185 = smul.addr %s184, 32
      %s186 = smul.addr %s185, 8
      %s187 = scalar_lea.vmem %s4, %s186
      %p188 = scmp.lt.s32.totalorder %s15, 1
      %s189 = scalar_select %p188, %s15, 1
      %s190 = smul.addr %s189, 32
      %s191 = smul.addr %s190, 8
      %s192 = scalar_lea.vmem %s0, %s191
      %p193 = scmp.lt.s32.totalorder %s15, 1
      %s194 = scalar_select %p193, %s15, 1
      %s195 = smul.addr %s194, 32
      %s196 = smul.addr %s195, 8
      %s197 = scalar_lea.vmem %s4, %s196
      %199 = vst [vmem:[#allocation2] sm:$0xf] 0
      %200 = vst [vmem:[#allocation2 + $0x4] sm:$0xf] 0
      %201 = vst [vmem:[#allocation2 + $0x8] sm:$0x1] 0
      %s202 = scalar_lea.vmem [#allocation2], 204
      %203 = vst [vmem:[%s202] sm:$0xf] 0
      %204 = vst [vmem:[%s202 + $0x4] sm:$0xf] 0
      %205 = vst [vmem:[%s202 + $0x8] sm:$0x1] 0
      %vm206 = vcmask 1040384
      %vm207 = vsmask.f32 256
      %vm208 = vmand %vm206, %vm207
      %v209 = vld [vmem:[#allocation2] sm:$0x1]
      %v210 = vsel %vm208, 0, %v209
      %211 = vst [vmem:[#allocation2] sm:$0x1] %v210
      %v212 = vld [vmem:[#allocation2 + $0xc] sm:$0x1]
      %v213 = vsel %vm208, 0, %v212
      %214 = vst [vmem:[#allocation2 + $0xc] sm:$0x1] %v213
      %v215 = vld [vmem:[#allocation2 + $0x18] sm:$0x1]
      %v216 = vsel %vm208, 0, %v215
      %217 = vst [vmem:[#allocation2 + $0x18] sm:$0x1] %v216
      %v218 = vld [vmem:[#allocation2 + $0x24] sm:$0x1]
      %v219 = vsel %vm208, 0, %v218
      %220 = vst [vmem:[#allocation2 + $0x24] sm:$0x1] %v219
      %v221 = vld [vmem:[#allocation2 + $0x30] sm:$0x1]
      %v222 = vsel %vm208, 0, %v221
      %223 = vst [vmem:[#allocation2 + $0x30] sm:$0x1] %v222
      %v224 = vld [vmem:[#allocation2 + $0x3c] sm:$0x1]
      %v225 = vsel %vm208, 0, %v224
      %226 = vst [vmem:[#allocation2 + $0x3c] sm:$0x1] %v225
      %v227 = vld [vmem:[#allocation2 + $0x48] sm:$0x1]
      %v228 = vsel %vm208, 0, %v227
      %229 = vst [vmem:[#allocation2 + $0x48] sm:$0x1] %v228
      %v230 = vld [vmem:[#allocation2 + $0x54] sm:$0x1]
      %v231 = vsel %vm208, 0, %v230
      %232 = vst [vmem:[#allocation2 + $0x54] sm:$0x1] %v231
      %v233 = vld [vmem:[#allocation2 + $0x60] sm:$0x1]
      %v234 = vsel %vm208, 0, %v233
      %235 = vst [vmem:[#allocation2 + $0x60] sm:$0x1] %v234
      %v236 = vld [vmem:[#allocation2 + $0x6c] sm:$0x1]
      %v237 = vsel %vm208, 0, %v236
      %238 = vst [vmem:[#allocation2 + $0x6c] sm:$0x1] %v237
      %v239 = vld [vmem:[#allocation2 + $0x78] sm:$0x1]
      %v240 = vsel %vm208, 0, %v239
      %241 = vst [vmem:[#allocation2 + $0x78] sm:$0x1] %v240
      %v242 = vld [vmem:[#allocation2 + $0x84] sm:$0x1]
      %v243 = vsel %vm208, 0, %v242
      %244 = vst [vmem:[#allocation2 + $0x84] sm:$0x1] %v243
      %v245 = vld [vmem:[#allocation2 + $0x90] sm:$0x1]
      %v246 = vsel %vm208, 0, %v245
      %247 = vst [vmem:[#allocation2 + $0x90] sm:$0x1] %v246
      %v248 = vld [vmem:[#allocation2 + $0x9c] sm:$0x1]
      %v249 = vsel %vm208, 0, %v248
      %250 = vst [vmem:[#allocation2 + $0x9c] sm:$0x1] %v249
      %v251 = vld [vmem:[#allocation2 + $0xa8] sm:$0x1]
      %v252 = vsel %vm208, 0, %v251
      %253 = vst [vmem:[#allocation2 + $0xa8] sm:$0x1] %v252
      %v254 = vld [vmem:[#allocation2 + $0xb4] sm:$0x1]
      %v255 = vsel %vm208, 0, %v254
      %256 = vst [vmem:[#allocation2 + $0xb4] sm:$0x1] %v255
      %v257 = vld [vmem:[#allocation2 + $0xc0] sm:$0x1]
      %v258 = vsel %vm208, 0, %v257
      %259 = vst [vmem:[#allocation2 + $0xc0] sm:$0x1] %v258
      %v260 = vld [vmem:[#allocation2 + $0xcc] sm:$0x1]
      %v261 = vsel %vm208, 0, %v260
      %262 = vst [vmem:[#allocation2 + $0xcc] sm:$0x1] %v261
      %vm263 = vsmask.f32 7938
      %vm264 = vmand %vm206, %vm263
      %v265 = vld [vmem:[#allocation2 + $0x8] sm:$0x1]
      %v266 = vsel %vm264, 0, %v265
      %267 = vst [vmem:[#allocation2 + $0x8] sm:$0x1] %v266
      %v268 = vld [vmem:[#allocation2 + $0x14] sm:$0x1]
      %v269 = vsel %vm264, 0, %v268
      %270 = vst [vmem:[#allocation2 + $0x14] sm:$0x1] %v269
      %v271 = vld [vmem:[#allocation2 + $0x20] sm:$0x1]
      %v272 = vsel %vm264, 0, %v271
      %273 = vst [vmem:[#allocation2 + $0x20] sm:$0x1] %v272
      %v274 = vld [vmem:[#allocation2 + $0x2c] sm:$0x1]
      %v275 = vsel %vm264, 0, %v274
      %276 = vst [vmem:[#allocation2 + $0x2c] sm:$0x1] %v275
      %v277 = vld [vmem:[#allocation2 + $0x38] sm:$0x1]
      %v278 = vsel %vm264, 0, %v277
      %279 = vst [vmem:[#allocation2 + $0x38] sm:$0x1] %v278
      %v280 = vld [vmem:[#allocation2 + $0x44] sm:$0x1]
      %v281 = vsel %vm264, 0, %v280
      %282 = vst [vmem:[#allocation2 + $0x44] sm:$0x1] %v281
      %v283 = vld [vmem:[#allocation2 + $0x50] sm:$0x1]
      %v284 = vsel %vm264, 0, %v283
      %285 = vst [vmem:[#allocation2 + $0x50] sm:$0x1] %v284
      %v286 = vld [vmem:[#allocation2 + $0x5c] sm:$0x1]
      %v287 = vsel %vm264, 0, %v286
      %288 = vst [vmem:[#allocation2 + $0x5c] sm:$0x1] %v287
      %v289 = vld [vmem:[#allocation2 + $0x68] sm:$0x1]
      %v290 = vsel %vm264, 0, %v289
      %291 = vst [vmem:[#allocation2 + $0x68] sm:$0x1] %v290
      %v292 = vld [vmem:[#allocation2 + $0x74] sm:$0x1]
      %v293 = vsel %vm264, 0, %v292
      %294 = vst [vmem:[#allocation2 + $0x74] sm:$0x1] %v293
      %v295 = vld [vmem:[#allocation2 + $0x80] sm:$0x1]
      %v296 = vsel %vm264, 0, %v295
      %297 = vst [vmem:[#allocation2 + $0x80] sm:$0x1] %v296
      %v298 = vld [vmem:[#allocation2 + $0x8c] sm:$0x1]
      %v299 = vsel %vm264, 0, %v298
      %300 = vst [vmem:[#allocation2 + $0x8c] sm:$0x1] %v299
      %v301 = vld [vmem:[#allocation2 + $0x98] sm:$0x1]
      %v302 = vsel %vm264, 0, %v301
      %303 = vst [vmem:[#allocation2 + $0x98] sm:$0x1] %v302
      %v304 = vld [vmem:[#allocation2 + $0xa4] sm:$0x1]
      %v305 = vsel %vm264, 0, %v304
      %306 = vst [vmem:[#allocation2 + $0xa4] sm:$0x1] %v305
      %v307 = vld [vmem:[#allocation2 + $0xb0] sm:$0x1]
      %v308 = vsel %vm264, 0, %v307
      %309 = vst [vmem:[#allocation2 + $0xb0] sm:$0x1] %v308
      %v310 = vld [vmem:[#allocation2 + $0xbc] sm:$0x1]
      %v311 = vsel %vm264, 0, %v310
      %312 = vst [vmem:[#allocation2 + $0xbc] sm:$0x1] %v311
      %v313 = vld [vmem:[#allocation2 + $0xc8] sm:$0x1]
      %v314 = vsel %vm264, 0, %v313
      %315 = vst [vmem:[#allocation2 + $0xc8] sm:$0x1] %v314
      %v316 = vld [vmem:[#allocation2 + $0xd4] sm:$0x1]
      %v317 = vsel %vm264, 0, %v316
      %318 = vst [vmem:[#allocation2 + $0xd4] sm:$0x1] %v317
      %v319 = vld [vmem:[%s192] sm:$0xff]
      %v320 = vld [vmem:[%s192 + $0x8] sm:$0xff]
      %v321 = vld [vmem:[%s192 + $0x10] sm:$0xff]
      %v322 = vld [vmem:[%s192 + $0x18] sm:$0xff]
      %v323 = vld [vmem:[%s192 + $0x20] sm:$0xff]
      %v324 = vld [vmem:[%s192 + $0x28] sm:$0xff]
      %v325 = vld [vmem:[%s192 + $0x30] sm:$0xff]
      %v326 = vld [vmem:[%s192 + $0x38] sm:$0xff]
      %v327 = vld [vmem:[%s192 + $0x40] sm:$0xff]
      %v328 = vld [vmem:[%s192 + $0x48] sm:$0xff]
      %v329 = vld [vmem:[%s192 + $0x50] sm:$0xff]
      %v330 = vld [vmem:[%s192 + $0x58] sm:$0xff]
      %v331 = vld [vmem:[%s192 + $0x60] sm:$0xff]
      %v332 = vld [vmem:[%s192 + $0x68] sm:$0xff]
      %v333 = vld [vmem:[%s192 + $0x70] sm:$0xff]
      %v334 = vld [vmem:[%s192 + $0x78] sm:$0xff]
      %v335 = vld [vmem:[%s192 + $0x80] sm:$0xff]
      %v336 = vld [vmem:[%s192 + $0x88] sm:$0xff]
      %v337 = vld [vmem:[%s192 + $0x90] sm:$0xff]
      %v338 = vld [vmem:[%s192 + $0x98] sm:$0xff]
      %v339 = vld [vmem:[%s192 + $0xa0] sm:$0xff]
      %v340 = vld [vmem:[%s192 + $0xa8] sm:$0xff]
      %v341 = vld [vmem:[%s192 + $0xb0] sm:$0xff]
      %v342 = vld [vmem:[%s192 + $0xb8] sm:$0xff]
      %v343 = vld [vmem:[%s192 + $0xc0] sm:$0xff]
      %v344 = vld [vmem:[%s192 + $0xc8] sm:$0xff]
      %v345 = vld [vmem:[%s192 + $0xd0] sm:$0xff]
      %v346 = vld [vmem:[%s192 + $0xd8] sm:$0xff]
      %v347 = vld [vmem:[%s192 + $0xe0] sm:$0xff]
      %v348 = vld [vmem:[%s192 + $0xe8] sm:$0xff]
      %v349 = vld [vmem:[%s192 + $0xf0] sm:$0xff]
      %v350 = vld [vmem:[%s192 + $0xf8] sm:$0xff]
      %v351 = vmax.f32 %v319, 0.0
      %v352 = vmax.f32 %v320, 0.0
      %v353 = vmax.f32 %v321, 0.0
      %v354 = vmax.f32 %v322, 0.0
      %v355 = vmax.f32 %v323, 0.0
      %v356 = vmax.f32 %v324, 0.0
      %v357 = vmax.f32 %v325, 0.0
      %v358 = vmax.f32 %v326, 0.0
      %v359 = vmax.f32 %v327, 0.0
      %v360 = vmax.f32 %v328, 0.0
      %v361 = vmax.f32 %v329, 0.0
      %v362 = vmax.f32 %v330, 0.0
      %v363 = vmax.f32 %v331, 0.0
      %v364 = vmax.f32 %v332, 0.0
      %v365 = vmax.f32 %v333, 0.0
      %v366 = vmax.f32 %v334, 0.0
      %v367 = vmax.f32 %v335, 0.0
      %v368 = vmax.f32 %v336, 0.0
      %v369 = vmax.f32 %v337, 0.0
      %v370 = vmax.f32 %v338, 0.0
      %v371 = vmax.f32 %v339, 0.0
      %v372 = vmax.f32 %v340, 0.0
      %v373 = vmax.f32 %v341, 0.0
      %v374 = vmax.f32 %v342, 0.0
      %v375 = vmax.f32 %v343, 0.0
      %v376 = vmax.f32 %v344, 0.0
      %v377 = vmax.f32 %v345, 0.0
      %v378 = vmax.f32 %v346, 0.0
      %v379 = vmax.f32 %v347, 0.0
      %v380 = vmax.f32 %v348, 0.0
      %v381 = vmax.f32 %v349, 0.0
      %v382 = vmax.f32 %v350, 0.0
      %v383 = vpack.c.bf16 %v352, %v351
      %v384 = vpack.c.bf16 %v354, %v353
      %v385 = vpack.c.bf16 %v356, %v355
      %v386 = vpack.c.bf16 %v358, %v357
      %v387 = vpack.c.bf16 %v360, %v359
      %v388 = vpack.c.bf16 %v362, %v361
      %v389 = vpack.c.bf16 %v364, %v363
      %v390 = vpack.c.bf16 %v366, %v365
      %v391 = vpack.c.bf16 %v368, %v367
      %v392 = vpack.c.bf16 %v370, %v369
      %v393 = vpack.c.bf16 %v372, %v371
      %v394 = vpack.c.bf16 %v374, %v373
      %v395 = vpack.c.bf16 %v376, %v375
      %v396 = vpack.c.bf16 %v378, %v377
      %v397 = vpack.c.bf16 %v380, %v379
      %v398 = vpack.c.bf16 %v382, %v381
      %v415 = vunpack.c.l.b16 %v383
      %v416 = vunpack.c.h.b16 %v383
      %v417 = vunpack.c.l.b16 %v384
      %v418 = vunpack.c.h.b16 %v384
      %v419 = vunpack.c.l.b16 %v385
      %v420 = vunpack.c.h.b16 %v385
      %v421 = vunpack.c.l.b16 %v386
      %v422 = vunpack.c.h.b16 %v386
      %v423 = vunpack.c.l.b16 %v387
      %v424 = vunpack.c.h.b16 %v387
      %v425 = vunpack.c.l.b16 %v388
      %v426 = vunpack.c.h.b16 %v388
      %v427 = vunpack.c.l.b16 %v389
      %v428 = vunpack.c.h.b16 %v389
      %v429 = vunpack.c.l.b16 %v390
      %v430 = vunpack.c.h.b16 %v390
      %v431 = vunpack.c.l.b16 %v391
      %v432 = vunpack.c.h.b16 %v391
      %v433 = vunpack.c.l.b16 %v392
      %v434 = vunpack.c.h.b16 %v392
      %v435 = vunpack.c.l.b16 %v393
      %v436 = vunpack.c.h.b16 %v393
      %v437 = vunpack.c.l.b16 %v394
      %v438 = vunpack.c.h.b16 %v394
      %v439 = vunpack.c.l.b16 %v395
      %v440 = vunpack.c.h.b16 %v395
      %v441 = vunpack.c.l.b16 %v396
      %v442 = vunpack.c.h.b16 %v396
      %v443 = vunpack.c.l.b16 %v397
      %v444 = vunpack.c.h.b16 %v397
      %v445 = vunpack.c.l.b16 %v398
      %v446 = vunpack.c.h.b16 %v398
      %v447 = vpack.c.b16 %v415, %v415
      %v448 = vpack.c.b16 %v416, %v416
      %v449 = vpack.c.b16 %v417, %v417
      %v450 = vpack.c.b16 %v418, %v418
      %v451 = vpack.c.b16 %v419, %v419
      %v452 = vpack.c.b16 %v420, %v420
      %v453 = vpack.c.b16 %v421, %v421
      %v454 = vpack.c.b16 %v422, %v422
      %v455 = vpack.c.b16 %v423, %v423
      %v456 = vpack.c.b16 %v424, %v424
      %v457 = vpack.c.b16 %v425, %v425
      %v458 = vpack.c.b16 %v426, %v426
      %v459 = vpack.c.b16 %v427, %v427
      %v460 = vpack.c.b16 %v428, %v428
      %v461 = vpack.c.b16 %v429, %v429
      %v462 = vpack.c.b16 %v430, %v430
      %v463 = vpack.c.b16 %v431, %v431
      %v464 = vpack.c.b16 %v432, %v432
      %v465 = vpack.c.b16 %v433, %v433
      %v466 = vpack.c.b16 %v434, %v434
      %v467 = vpack.c.b16 %v435, %v435
      %v468 = vpack.c.b16 %v436, %v436
      %v469 = vpack.c.b16 %v437, %v437
      %v470 = vpack.c.b16 %v438, %v438
      %v471 = vpack.c.b16 %v439, %v439
      %v472 = vpack.c.b16 %v440, %v440
      %v473 = vpack.c.b16 %v441, %v441
      %v474 = vpack.c.b16 %v442, %v442
      %v475 = vpack.c.b16 %v443, %v443
      %v476 = vpack.c.b16 %v444, %v444
      %v477 = vpack.c.b16 %v445, %v445
      %v478 = vpack.c.b16 %v446, %v446
      %vm479 = vsmask.f32 4368
      %vm480 = vmor %vm207, %vm479
      %v482 = vshrl.u32 %v447, 16
      %v484 = vrot.slane %v482, 7
      %v485 = vshll.u32 %v447, 16
      %v487 = vor.u32 %v484, %v485
      %v488 = vrot.slane %v484, 4
      %v490 = vshrl.u32 %v448, 16
      %v492 = vrot.slane %v490, 7
      %v493 = vshll.u32 %v448, 16
      %v495 = vor.u32 %v492, %v493
      %v496 = vsel %vm480, %v488, %v495
      %v497 = vrot.slane %v492, 4
      %v499 = vshrl.u32 %v449, 16
      %v501 = vrot.slane %v499, 7
      %v502 = vshll.u32 %v449, 16
      %v504 = vor.u32 %v501, %v502
      %v505 = vrot.slane %v501, 4
      %v507 = vshrl.u32 %v450, 16
      %v509 = vrot.slane %v507, 7
      %v510 = vshll.u32 %v450, 16
      %v512 = vor.u32 %v509, %v510
      %v513 = vsel %vm480, %v505, %v512
      %v514 = vrot.slane %v509, 4
      %v516 = vshrl.u32 %v451, 16
      %v518 = vrot.slane %v516, 7
      %v519 = vshll.u32 %v451, 16
      %v521 = vor.u32 %v518, %v519
      %v522 = vrot.slane %v518, 4
      %v524 = vshrl.u32 %v452, 16
      %v526 = vrot.slane %v524, 7
      %v527 = vshll.u32 %v452, 16
      %v529 = vor.u32 %v526, %v527
      %v530 = vsel %vm480, %v522, %v529
      %v531 = vrot.slane %v526, 4
      %v533 = vshrl.u32 %v453, 16
      %v535 = vrot.slane %v533, 7
      %v536 = vshll.u32 %v453, 16
      %v538 = vor.u32 %v535, %v536
      %v539 = vrot.slane %v535, 4
      %v541 = vshrl.u32 %v454, 16
      %v543 = vrot.slane %v541, 7
      %v544 = vshll.u32 %v454, 16
      %v546 = vor.u32 %v543, %v544
      %v547 = vsel %vm480, %v539, %v546
      %v548 = vrot.slane %v543, 4
      %v550 = vshrl.u32 %v455, 16
      %v552 = vrot.slane %v550, 7
      %v553 = vshll.u32 %v455, 16
      %v555 = vor.u32 %v552, %v553
      %v556 = vrot.slane %v552, 4
      %v558 = vshrl.u32 %v456, 16
      %v560 = vrot.slane %v558, 7
      %v561 = vshll.u32 %v456, 16
      %v563 = vor.u32 %v560, %v561
      %v564 = vsel %vm480, %v556, %v563
      %v565 = vrot.slane %v560, 4
      %v567 = vshrl.u32 %v457, 16
      %v569 = vrot.slane %v567, 7
      %v570 = vshll.u32 %v457, 16
      %v572 = vor.u32 %v569, %v570
      %v573 = vrot.slane %v569, 4
      %v575 = vshrl.u32 %v458, 16
      %v577 = vrot.slane %v575, 7
      %v578 = vshll.u32 %v458, 16
      %v580 = vor.u32 %v577, %v578
      %v581 = vsel %vm480, %v573, %v580
      %v582 = vrot.slane %v577, 4
      %v584 = vshrl.u32 %v459, 16
      %v586 = vrot.slane %v584, 7
      %v587 = vshll.u32 %v459, 16
      %v589 = vor.u32 %v586, %v587
      %v590 = vrot.slane %v586, 4
      %v592 = vshrl.u32 %v460, 16
      %v594 = vrot.slane %v592, 7
      %v595 = vshll.u32 %v460, 16
      %v597 = vor.u32 %v594, %v595
      %v598 = vsel %vm480, %v590, %v597
      %v599 = vrot.slane %v594, 4
      %v601 = vshrl.u32 %v461, 16
      %v603 = vrot.slane %v601, 7
      %v604 = vshll.u32 %v461, 16
      %v606 = vor.u32 %v603, %v604
      %v607 = vrot.slane %v603, 4
      %v609 = vshrl.u32 %v462, 16
      %v611 = vrot.slane %v609, 7
      %v612 = vshll.u32 %v462, 16
      %v614 = vor.u32 %v611, %v612
      %v615 = vsel %vm480, %v607, %v614
      %v616 = vrot.slane %v611, 4
      %v618 = vshrl.u32 %v463, 16
      %v620 = vrot.slane %v618, 7
      %v621 = vshll.u32 %v463, 16
      %v623 = vor.u32 %v620, %v621
      %v624 = vrot.slane %v620, 4
      %v626 = vshrl.u32 %v464, 16
      %v628 = vrot.slane %v626, 7
      %v629 = vshll.u32 %v464, 16
      %v631 = vor.u32 %v628, %v629
      %v632 = vsel %vm480, %v624, %v631
      %v633 = vrot.slane %v628, 4
      %v635 = vshrl.u32 %v465, 16
      %v637 = vrot.slane %v635, 7
      %v638 = vshll.u32 %v465, 16
      %v640 = vor.u32 %v637, %v638
      %v641 = vrot.slane %v637, 4
      %v643 = vshrl.u32 %v466, 16
      %v645 = vrot.slane %v643, 7
      %v646 = vshll.u32 %v466, 16
      %v648 = vor.u32 %v645, %v646
      %v649 = vsel %vm480, %v641, %v648
      %v650 = vrot.slane %v645, 4
      %v652 = vshrl.u32 %v467, 16
      %v654 = vrot.slane %v652, 7
      %v655 = vshll.u32 %v467, 16
      %v657 = vor.u32 %v654, %v655
      %v658 = vrot.slane %v654, 4
      %v660 = vshrl.u32 %v468, 16
      %v662 = vrot.slane %v660, 7
      %v663 = vshll.u32 %v468, 16
      %v665 = vor.u32 %v662, %v663
      %v666 = vsel %vm480, %v658, %v665
      %v667 = vrot.slane %v662, 4
      %v669 = vshrl.u32 %v469, 16
      %v671 = vrot.slane %v669, 7
      %v672 = vshll.u32 %v469, 16
      %v674 = vor.u32 %v671, %v672
      %v675 = vrot.slane %v671, 4
      %v677 = vshrl.u32 %v470, 16
      %v679 = vrot.slane %v677, 7
      %v680 = vshll.u32 %v470, 16
      %v682 = vor.u32 %v679, %v680
      %v683 = vsel %vm480, %v675, %v682
      %v684 = vrot.slane %v679, 4
      %v686 = vshrl.u32 %v471, 16
      %v688 = vrot.slane %v686, 7
      %v689 = vshll.u32 %v471, 16
      %v691 = vor.u32 %v688, %v689
      %v692 = vrot.slane %v688, 4
      %v694 = vshrl.u32 %v472, 16
      %v696 = vrot.slane %v694, 7
      %v697 = vshll.u32 %v472, 16
      %v699 = vor.u32 %v696, %v697
      %v700 = vsel %vm480, %v692, %v699
      %v701 = vrot.slane %v696, 4
      %v703 = vshrl.u32 %v473, 16
      %v705 = vrot.slane %v703, 7
      %v706 = vshll.u32 %v473, 16
      %v708 = vor.u32 %v705, %v706
      %v709 = vrot.slane %v705, 4
      %v711 = vshrl.u32 %v474, 16
      %v713 = vrot.slane %v711, 7
      %v714 = vshll.u32 %v474, 16
      %v716 = vor.u32 %v713, %v714
      %v717 = vsel %vm480, %v709, %v716
      %v718 = vrot.slane %v713, 4
      %v720 = vshrl.u32 %v475, 16
      %v722 = vrot.slane %v720, 7
      %v723 = vshll.u32 %v475, 16
      %v725 = vor.u32 %v722, %v723
      %v726 = vrot.slane %v722, 4
      %v728 = vshrl.u32 %v476, 16
      %v730 = vrot.slane %v728, 7
      %v731 = vshll.u32 %v476, 16
      %v733 = vor.u32 %v730, %v731
      %v734 = vsel %vm480, %v726, %v733
      %v735 = vrot.slane %v730, 4
      %v737 = vshrl.u32 %v477, 16
      %v739 = vrot.slane %v737, 7
      %v740 = vshll.u32 %v477, 16
      %v742 = vor.u32 %v739, %v740
      %v743 = vrot.slane %v739, 4
      %v745 = vshrl.u32 %v478, 16
      %v747 = vrot.slane %v745, 7
      %v748 = vshll.u32 %v478, 16
      %v750 = vor.u32 %v747, %v748
      %v751 = vsel %vm480, %v743, %v750
      %v752 = vrot.slane %v747, 4
      %s801 = scalar_lea.vmem [#allocation2], 12
      %vm802 = vcmask 1043456
      %vm803 = vmand %vm802, %vm263
      %v804 = vld [vmem:[%s801] sm:$0xf]
      %v805 = vsel %vm803, %v487, %v804
      %806 = vst [vmem:[%s801] sm:$0xf] %v805
      %807 = vst [vmem:[%s801 + $0x4] sm:$0xf] %v496
      %v808 = vld [vmem:[%s801 + $0x8] sm:$0x1]
      %v809 = vsel %vm208, %v497, %v808
      %810 = vst [vmem:[%s801 + $0x8] sm:$0x1] %v809
      %v811 = vld [vmem:[%s801 + $0xc] sm:$0xf]
      %v812 = vsel %vm803, %v504, %v811
      %813 = vst [vmem:[%s801 + $0xc] sm:$0xf] %v812
      %814 = vst [vmem:[%s801 + $0x10] sm:$0xf] %v513
      %v815 = vld [vmem:[%s801 + $0x14] sm:$0x1]
      %v816 = vsel %vm208, %v514, %v815
      %817 = vst [vmem:[%s801 + $0x14] sm:$0x1] %v816
      %v818 = vld [vmem:[%s801 + $0x18] sm:$0xf]
      %v819 = vsel %vm803, %v521, %v818
      %820 = vst [vmem:[%s801 + $0x18] sm:$0xf] %v819
      %821 = vst [vmem:[%s801 + $0x1c] sm:$0xf] %v530
      %v822 = vld [vmem:[%s801 + $0x20] sm:$0x1]
      %v823 = vsel %vm208, %v531, %v822
      %824 = vst [vmem:[%s801 + $0x20] sm:$0x1] %v823
      %v825 = vld [vmem:[%s801 + $0x24] sm:$0xf]
      %v826 = vsel %vm803, %v538, %v825
      %827 = vst [vmem:[%s801 + $0x24] sm:$0xf] %v826
      %828 = vst [vmem:[%s801 + $0x28] sm:$0xf] %v547
      %v829 = vld [vmem:[%s801 + $0x2c] sm:$0x1]
      %v830 = vsel %vm208, %v548, %v829
      %831 = vst [vmem:[%s801 + $0x2c] sm:$0x1] %v830
      %v832 = vld [vmem:[%s801 + $0x30] sm:$0xf]
      %v833 = vsel %vm803, %v555, %v832
      %834 = vst [vmem:[%s801 + $0x30] sm:$0xf] %v833
      %835 = vst [vmem:[%s801 + $0x34] sm:$0xf] %v564
      %v836 = vld [vmem:[%s801 + $0x38] sm:$0x1]
      %v837 = vsel %vm208, %v565, %v836
      %838 = vst [vmem:[%s801 + $0x38] sm:$0x1] %v837
      %v839 = vld [vmem:[%s801 + $0x3c] sm:$0xf]
      %v840 = vsel %vm803, %v572, %v839
      %841 = vst [vmem:[%s801 + $0x3c] sm:$0xf] %v840
      %842 = vst [vmem:[%s801 + $0x40] sm:$0xf] %v581
      %v843 = vld [vmem:[%s801 + $0x44] sm:$0x1]
      %v844 = vsel %vm208, %v582, %v843
      %845 = vst [vmem:[%s801 + $0x44] sm:$0x1] %v844
      %v846 = vld [vmem:[%s801 + $0x48] sm:$0xf]
      %v847 = vsel %vm803, %v589, %v846
      %848 = vst [vmem:[%s801 + $0x48] sm:$0xf] %v847
      %849 = vst [vmem:[%s801 + $0x4c] sm:$0xf] %v598
      %v850 = vld [vmem:[%s801 + $0x50] sm:$0x1]
      %v851 = vsel %vm208, %v599, %v850
      %852 = vst [vmem:[%s801 + $0x50] sm:$0x1] %v851
      %v853 = vld [vmem:[%s801 + $0x54] sm:$0xf]
      %v854 = vsel %vm803, %v606, %v853
      %855 = vst [vmem:[%s801 + $0x54] sm:$0xf] %v854
      %856 = vst [vmem:[%s801 + $0x58] sm:$0xf] %v615
      %v857 = vld [vmem:[%s801 + $0x5c] sm:$0x1]
      %v858 = vsel %vm208, %v616, %v857
      %859 = vst [vmem:[%s801 + $0x5c] sm:$0x1] %v858
      %v860 = vld [vmem:[%s801 + $0x60] sm:$0xf]
      %v861 = vsel %vm803, %v623, %v860
      %862 = vst [vmem:[%s801 + $0x60] sm:$0xf] %v861
      %863 = vst [vmem:[%s801 + $0x64] sm:$0xf] %v632
      %v864 = vld [vmem:[%s801 + $0x68] sm:$0x1]
      %v865 = vsel %vm208, %v633, %v864
      %866 = vst [vmem:[%s801 + $0x68] sm:$0x1] %v865
      %v867 = vld [vmem:[%s801 + $0x6c] sm:$0xf]
      %v868 = vsel %vm803, %v640, %v867
      %869 = vst [vmem:[%s801 + $0x6c] sm:$0xf] %v868
      %870 = vst [vmem:[%s801 + $0x70] sm:$0xf] %v649
      %v871 = vld [vmem:[%s801 + $0x74] sm:$0x1]
      %v872 = vsel %vm208, %v650, %v871
      %873 = vst [vmem:[%s801 + $0x74] sm:$0x1] %v872
      %v874 = vld [vmem:[%s801 + $0x78] sm:$0xf]
      %v875 = vsel %vm803, %v657, %v874
      %876 = vst [vmem:[%s801 + $0x78] sm:$0xf] %v875
      %877 = vst [vmem:[%s801 + $0x7c] sm:$0xf] %v666
      %v878 = vld [vmem:[%s801 + $0x80] sm:$0x1]
      %v879 = vsel %vm208, %v667, %v878
      %880 = vst [vmem:[%s801 + $0x80] sm:$0x1] %v879
      %v881 = vld [vmem:[%s801 + $0x84] sm:$0xf]
      %v882 = vsel %vm803, %v674, %v881
      %883 = vst [vmem:[%s801 + $0x84] sm:$0xf] %v882
      %884 = vst [vmem:[%s801 + $0x88] sm:$0xf] %v683
      %v885 = vld [vmem:[%s801 + $0x8c] sm:$0x1]
      %v886 = vsel %vm208, %v684, %v885
      %887 = vst [vmem:[%s801 + $0x8c] sm:$0x1] %v886
      %v888 = vld [vmem:[%s801 + $0x90] sm:$0xf]
      %v889 = vsel %vm803, %v691, %v888
      %890 = vst [vmem:[%s801 + $0x90] sm:$0xf] %v889
      %891 = vst [vmem:[%s801 + $0x94] sm:$0xf] %v700
      %v892 = vld [vmem:[%s801 + $0x98] sm:$0x1]
      %v893 = vsel %vm208, %v701, %v892
      %894 = vst [vmem:[%s801 + $0x98] sm:$0x1] %v893
      %v895 = vld [vmem:[%s801 + $0x9c] sm:$0xf]
      %v896 = vsel %vm803, %v708, %v895
      %897 = vst [vmem:[%s801 + $0x9c] sm:$0xf] %v896
      %898 = vst [vmem:[%s801 + $0xa0] sm:$0xf] %v717
      %v899 = vld [vmem:[%s801 + $0xa4] sm:$0x1]
      %v900 = vsel %vm208, %v718, %v899
      %901 = vst [vmem:[%s801 + $0xa4] sm:$0x1] %v900
      %v902 = vld [vmem:[%s801 + $0xa8] sm:$0xf]
      %v903 = vsel %vm803, %v725, %v902
      %904 = vst [vmem:[%s801 + $0xa8] sm:$0xf] %v903
      %905 = vst [vmem:[%s801 + $0xac] sm:$0xf] %v734
      %v906 = vld [vmem:[%s801 + $0xb0] sm:$0x1]
      %v907 = vsel %vm208, %v735, %v906
      %908 = vst [vmem:[%s801 + $0xb0] sm:$0x1] %v907
      %v909 = vld [vmem:[%s801 + $0xb4] sm:$0xf]
      %v910 = vsel %vm803, %v742, %v909
      %911 = vst [vmem:[%s801 + $0xb4] sm:$0xf] %v910
      %912 = vst [vmem:[%s801 + $0xb8] sm:$0xf] %v751
      %v913 = vld [vmem:[%s801 + $0xbc] sm:$0x1]
      %v914 = vsel %vm208, %v752, %v913
      %915 = vst [vmem:[%s801 + $0xbc] sm:$0x1] %v914
      %v916 = vld [vmem:[#allocation2] sm:$0xf]
      %v917 = vld [vmem:[#allocation2 + $0x4] sm:$0xf]
      %v918 = vld [vmem:[#allocation2 + $0xc] sm:$0xf]
      %v919 = vld [vmem:[#allocation2 + $0x10] sm:$0xf]
      %v920 = vld [vmem:[#allocation2 + $0x18] sm:$0xf]
      %v921 = vld [vmem:[#allocation2 + $0x1c] sm:$0xf]
      %v922 = vld [vmem:[#allocation2 + $0x24] sm:$0xf]
      %v923 = vld [vmem:[#allocation2 + $0x28] sm:$0xf]
      %v924 = vld [vmem:[#allocation2 + $0x30] sm:$0xf]
      %v925 = vld [vmem:[#allocation2 + $0x34] sm:$0xf]
      %v926 = vld [vmem:[#allocation2 + $0x3c] sm:$0xf]
      %v927 = vld [vmem:[#allocation2 + $0x40] sm:$0xf]
      %v928 = vld [vmem:[#allocation2 + $0x48] sm:$0xf]
      %v929 = vld [vmem:[#allocation2 + $0x4c] sm:$0xf]
      %v930 = vld [vmem:[#allocation2 + $0x54] sm:$0xf]
      %v931 = vld [vmem:[#allocation2 + $0x58] sm:$0xf]
      %v932 = vld [vmem:[#allocation2 + $0x60] sm:$0xf]
      %v933 = vld [vmem:[#allocation2 + $0x64] sm:$0xf]
      %v934 = vld [vmem:[#allocation2 + $0x6c] sm:$0xf]
      %v935 = vld [vmem:[#allocation2 + $0x70] sm:$0xf]
      %v936 = vld [vmem:[#allocation2 + $0x78] sm:$0xf]
      %v937 = vld [vmem:[#allocation2 + $0x7c] sm:$0xf]
      %v938 = vld [vmem:[#allocation2 + $0x84] sm:$0xf]
      %v939 = vld [vmem:[#allocation2 + $0x88] sm:$0xf]
      %v940 = vld [vmem:[#allocation2 + $0x90] sm:$0xf]
      %v941 = vld [vmem:[#allocation2 + $0x94] sm:$0xf]
      %v942 = vld [vmem:[#allocation2 + $0x9c] sm:$0xf]
      %v943 = vld [vmem:[#allocation2 + $0xa0] sm:$0xf]
      %v944 = vld [vmem:[#allocation2 + $0xa8] sm:$0xf]
      %v945 = vld [vmem:[#allocation2 + $0xac] sm:$0xf]
      %v946 = vld [vmem:[#allocation2 + $0xb4] sm:$0xf]
      %v947 = vld [vmem:[#allocation2 + $0xb8] sm:$0xf]
      %948 = vst [vmem:[#allocation3] sm:$0xf] %v916
      %949 = vst [vmem:[#allocation3 + $0x24] sm:$0xf] %v917
      %950 = vst [vmem:[#allocation3 + $0x48] sm:$0xf] %v918
      %951 = vst [vmem:[#allocation3 + $0x6c] sm:$0xf] %v919
      %952 = vst [vmem:[#allocation3 + $0x90] sm:$0xf] %v920
      %953 = vst [vmem:[#allocation3 + $0xb4] sm:$0xf] %v921
      %954 = vst [vmem:[#allocation3 + $0xd8] sm:$0xf] %v922
      %955 = vst [vmem:[#allocation3 + $0xfc] sm:$0xf] %v923
      %956 = vst [vmem:[#allocation3 + $0x120] sm:$0xf] %v924
      %957 = vst [vmem:[#allocation3 + $0x144] sm:$0xf] %v925
      %958 = vst [vmem:[#allocation3 + $0x168] sm:$0xf] %v926
      %959 = vst [vmem:[#allocation3 + $0x18c] sm:$0xf] %v927
      %960 = vst [vmem:[#allocation3 + $0x1b0] sm:$0xf] %v928
      %961 = vst [vmem:[#allocation3 + $0x1d4] sm:$0xf] %v929
      %962 = vst [vmem:[#allocation3 + $0x1f8] sm:$0xf] %v930
      %963 = vst [vmem:[#allocation3 + $0x21c] sm:$0xf] %v931
      %964 = vst [vmem:[#allocation3 + $0x240] sm:$0xf] %v932
      %965 = vst [vmem:[#allocation3 + $0x264] sm:$0xf] %v933
      %966 = vst [vmem:[#allocation3 + $0x288] sm:$0xf] %v934
      %967 = vst [vmem:[#allocation3 + $0x2ac] sm:$0xf] %v935
      %968 = vst [vmem:[#allocation3 + $0x2d0] sm:$0xf] %v936
      %969 = vst [vmem:[#allocation3 + $0x2f4] sm:$0xf] %v937
      %970 = vst [vmem:[#allocation3 + $0x318] sm:$0xf] %v938
      %971 = vst [vmem:[#allocation3 + $0x33c] sm:$0xf] %v939
      %972 = vst [vmem:[#allocation3 + $0x360] sm:$0xf] %v940
      %973 = vst [vmem:[#allocation3 + $0x384] sm:$0xf] %v941
      %974 = vst [vmem:[#allocation3 + $0x3a8] sm:$0xf] %v942
      %975 = vst [vmem:[#allocation3 + $0x3cc] sm:$0xf] %v943
      %976 = vst [vmem:[#allocation3 + $0x3f0] sm:$0xf] %v944
      %977 = vst [vmem:[#allocation3 + $0x414] sm:$0xf] %v945
      %978 = vst [vmem:[#allocation3 + $0x438] sm:$0xf] %v946
      %979 = vst [vmem:[#allocation3 + $0x45c] sm:$0xf] %v947
      %v980 = vld [vmem:[#allocation2] sm:$0xf]
      %v981 = vld [vmem:[#allocation2 + $0x4] sm:$0xf]
      %v982 = vld [vmem:[#allocation2 + $0x8] sm:$0x1]
      %v983 = vld [vmem:[#allocation2 + $0xc] sm:$0xf]
      %v984 = vld [vmem:[#allocation2 + $0x10] sm:$0xf]
      %v985 = vld [vmem:[#allocation2 + $0x14] sm:$0x1]
      %v986 = vld [vmem:[#allocation2 + $0x18] sm:$0xf]
      %v987 = vld [vmem:[#allocation2 + $0x1c] sm:$0xf]
      %v988 = vld [vmem:[#allocation2 + $0x20] sm:$0x1]
      %v989 = vld [vmem:[#allocation2 + $0x24] sm:$0xf]
      %v990 = vld [vmem:[#allocation2 + $0x28] sm:$0xf]
      %v991 = vld [vmem:[#allocation2 + $0x2c] sm:$0x1]
      %v992 = vld [vmem:[#allocation2 + $0x30] sm:$0xf]
      %v993 = vld [vmem:[#allocation2 + $0x34] sm:$0xf]
      %v994 = vld [vmem:[#allocation2 + $0x38] sm:$0x1]
      %v995 = vld [vmem:[#allocation2 + $0x3c] sm:$0xf]
      %v996 = vld [vmem:[#allocation2 + $0x40] sm:$0xf]
      %v997 = vld [vmem:[#allocation2 + $0x44] sm:$0x1]
      %v998 = vld [vmem:[#allocation2 + $0x48] sm:$0xf]
      %v999 = vld [vmem:[#allocation2 + $0x4c] sm:$0xf]
      %v1000 = vld [vmem:[#allocation2 + $0x50] sm:$0x1]
      %v1001 = vld [vmem:[#allocation2 + $0x54] sm:$0xf]
      %v1002 = vld [vmem:[#allocation2 + $0x58] sm:$0xf]
      %v1003 = vld [vmem:[#allocation2 + $0x5c] sm:$0x1]
      %v1004 = vld [vmem:[#allocation2 + $0x60] sm:$0xf]
      %v1005 = vld [vmem:[#allocation2 + $0x64] sm:$0xf]
      %v1006 = vld [vmem:[#allocation2 + $0x68] sm:$0x1]
      %v1007 = vld [vmem:[#allocation2 + $0x6c] sm:$0xf]
      %v1008 = vld [vmem:[#allocation2 + $0x70] sm:$0xf]
      %v1009 = vld [vmem:[#allocation2 + $0x74] sm:$0x1]
      %v1010 = vld [vmem:[#allocation2 + $0x78] sm:$0xf]
      %v1011 = vld [vmem:[#allocation2 + $0x7c] sm:$0xf]
      %v1012 = vld [vmem:[#allocation2 + $0x80] sm:$0x1]
      %v1013 = vld [vmem:[#allocation2 + $0x84] sm:$0xf]
      %v1014 = vld [vmem:[#allocation2 + $0x88] sm:$0xf]
      %v1015 = vld [vmem:[#allocation2 + $0x8c] sm:$0x1]
      %v1016 = vld [vmem:[#allocation2 + $0x90] sm:$0xf]
      %v1017 = vld [vmem:[#allocation2 + $0x94] sm:$0xf]
      %v1018 = vld [vmem:[#allocation2 + $0x98] sm:$0x1]
      %v1019 = vld [vmem:[#allocation2 + $0x9c] sm:$0xf]
      %v1020 = vld [vmem:[#allocation2 + $0xa0] sm:$0xf]
      %v1021 = vld [vmem:[#allocation2 + $0xa4] sm:$0x1]
      %v1022 = vld [vmem:[#allocation2 + $0xa8] sm:$0xf]
      %v1023 = vld [vmem:[#allocation2 + $0xac] sm:$0xf]
      %v1024 = vld [vmem:[#allocation2 + $0xb0] sm:$0x1]
      %v1025 = vld [vmem:[#allocation2 + $0xb4] sm:$0xf]
      %v1026 = vld [vmem:[#allocation2 + $0xb8] sm:$0xf]
      %v1027 = vld [vmem:[#allocation2 + $0xbc] sm:$0x1]
      %vm1028 = vsmask.f32 3328
      %vm1029 = vsmask.f32 7440
      %vm1030 = vmor %vm1028, %vm1029
      %v1032 = vshrl.u32 %v980, 16
      %v1034 = vrot.slane %v1032, 4
      %v1035 = vshll.u32 %v980, 16
      %v1037 = vrot.slane %v1035, 5
      %v1038 = vor.u32 %v1034, %v1037
      %v1039 = vrot.slane %v1038, 4
      %v1041 = vshll.u32 %v981, 16
      %v1043 = vrot.slane %v1041, 5
      %v1044 = vsel %vm1030, %v1039, %v1043
      %v1045 = vshrl.u32 %v981, 16
      %v1047 = vrot.slane %v1045, 4
      %v1048 = vor.u32 %v1047, %v1043
      %v1049 = vrot.slane %v1048, 4
      %v1051 = vshll.u32 %v982, 16
      %v1053 = vrot.slane %v1051, 5
      %v1054 = vsel %vm1030, %v1049, %v1053
      %v1056 = vshrl.u32 %v983, 16
      %v1058 = vrot.slane %v1056, 4
      %v1059 = vshll.u32 %v983, 16
      %v1061 = vrot.slane %v1059, 5
      %v1062 = vor.u32 %v1058, %v1061
      %v1063 = vrot.slane %v1062, 4
      %v1065 = vshll.u32 %v984, 16
      %v1067 = vrot.slane %v1065, 5
      %v1068 = vsel %vm1030, %v1063, %v1067
      %v1069 = vshrl.u32 %v984, 16
      %v1071 = vrot.slane %v1069, 4
      %v1072 = vor.u32 %v1071, %v1067
      %v1073 = vrot.slane %v1072, 4
      %v1075 = vshll.u32 %v985, 16
      %v1077 = vrot.slane %v1075, 5
      %v1078 = vsel %vm1030, %v1073, %v1077
      %v1080 = vshrl.u32 %v986, 16
      %v1082 = vrot.slane %v1080, 4
      %v1083 = vshll.u32 %v986, 16
      %v1085 = vrot.slane %v1083, 5
      %v1086 = vor.u32 %v1082, %v1085
      %v1087 = vrot.slane %v1086, 4
      %v1089 = vshll.u32 %v987, 16
      %v1091 = vrot.slane %v1089, 5
      %v1092 = vsel %vm1030, %v1087, %v1091
      %v1093 = vshrl.u32 %v987, 16
      %v1095 = vrot.slane %v1093, 4
      %v1096 = vor.u32 %v1095, %v1091
      %v1097 = vrot.slane %v1096, 4
      %v1099 = vshll.u32 %v988, 16
      %v1101 = vrot.slane %v1099, 5
      %v1102 = vsel %vm1030, %v1097, %v1101
      %v1104 = vshrl.u32 %v989, 16
      %v1106 = vrot.slane %v1104, 4
      %v1107 = vshll.u32 %v989, 16
      %v1109 = vrot.slane %v1107, 5
      %v1110 = vor.u32 %v1106, %v1109
      %v1111 = vrot.slane %v1110, 4
      %v1113 = vshll.u32 %v990, 16
      %v1115 = vrot.slane %v1113, 5
      %v1116 = vsel %vm1030, %v1111, %v1115
      %v1117 = vshrl.u32 %v990, 16
      %v1119 = vrot.slane %v1117, 4
      %v1120 = vor.u32 %v1119, %v1115
      %v1121 = vrot.slane %v1120, 4
      %v1123 = vshll.u32 %v991, 16
      %v1125 = vrot.slane %v1123, 5
      %v1126 = vsel %vm1030, %v1121, %v1125
      %v1128 = vshrl.u32 %v992, 16
      %v1130 = vrot.slane %v1128, 4
      %v1131 = vshll.u32 %v992, 16
      %v1133 = vrot.slane %v1131, 5
      %v1134 = vor.u32 %v1130, %v1133
      %v1135 = vrot.slane %v1134, 4
      %v1137 = vshll.u32 %v993, 16
      %v1139 = vrot.slane %v1137, 5
      %v1140 = vsel %vm1030, %v1135, %v1139
      %v1141 = vshrl.u32 %v993, 16
      %v1143 = vrot.slane %v1141, 4
      %v1144 = vor.u32 %v1143, %v1139
      %v1145 = vrot.slane %v1144, 4
      %v1147 = vshll.u32 %v994, 16
      %v1149 = vrot.slane %v1147, 5
      %v1150 = vsel %vm1030, %v1145, %v1149
      %v1152 = vshrl.u32 %v995, 16
      %v1154 = vrot.slane %v1152, 4
      %v1155 = vshll.u32 %v995, 16
      %v1157 = vrot.slane %v1155, 5
      %v1158 = vor.u32 %v1154, %v1157
      %v1159 = vrot.slane %v1158, 4
      %v1161 = vshll.u32 %v996, 16
      %v1163 = vrot.slane %v1161, 5
      %v1164 = vsel %vm1030, %v1159, %v1163
      %v1165 = vshrl.u32 %v996, 16
      %v1167 = vrot.slane %v1165, 4
      %v1168 = vor.u32 %v1167, %v1163
      %v1169 = vrot.slane %v1168, 4
      %v1171 = vshll.u32 %v997, 16
      %v1173 = vrot.slane %v1171, 5
      %v1174 = vsel %vm1030, %v1169, %v1173
      %v1176 = vshrl.u32 %v998, 16
      %v1178 = vrot.slane %v1176, 4
      %v1179 = vshll.u32 %v998, 16
      %v1181 = vrot.slane %v1179, 5
      %v1182 = vor.u32 %v1178, %v1181
      %v1183 = vrot.slane %v1182, 4
      %v1185 = vshll.u32 %v999, 16
      %v1187 = vrot.slane %v1185, 5
      %v1188 = vsel %vm1030, %v1183, %v1187
      %v1189 = vshrl.u32 %v999, 16
      %v1191 = vrot.slane %v1189, 4
      %v1192 = vor.u32 %v1191, %v1187
      %v1193 = vrot.slane %v1192, 4
      %v1195 = vshll.u32 %v1000, 16
      %v1197 = vrot.slane %v1195, 5
      %v1198 = vsel %vm1030, %v1193, %v1197
      %v1200 = vshrl.u32 %v1001, 16
      %v1202 = vrot.slane %v1200, 4
      %v1203 = vshll.u32 %v1001, 16
      %v1205 = vrot.slane %v1203, 5
      %v1206 = vor.u32 %v1202, %v1205
      %v1207 = vrot.slane %v1206, 4
      %v1209 = vshll.u32 %v1002, 16
      %v1211 = vrot.slane %v1209, 5
      %v1212 = vsel %vm1030, %v1207, %v1211
      %v1213 = vshrl.u32 %v1002, 16
      %v1215 = vrot.slane %v1213, 4
      %v1216 = vor.u32 %v1215, %v1211
      %v1217 = vrot.slane %v1216, 4
      %v1219 = vshll.u32 %v1003, 16
      %v1221 = vrot.slane %v1219, 5
      %v1222 = vsel %vm1030, %v1217, %v1221
      %v1224 = vshrl.u32 %v1004, 16
      %v1226 = vrot.slane %v1224, 4
      %v1227 = vshll.u32 %v1004, 16
      %v1229 = vrot.slane %v1227, 5
      %v1230 = vor.u32 %v1226, %v1229
      %v1231 = vrot.slane %v1230, 4
      %v1233 = vshll.u32 %v1005, 16
      %v1235 = vrot.slane %v1233, 5
      %v1236 = vsel %vm1030, %v1231, %v1235
      %v1237 = vshrl.u32 %v1005, 16
      %v1239 = vrot.slane %v1237, 4
      %v1240 = vor.u32 %v1239, %v1235
      %v1241 = vrot.slane %v1240, 4
      %v1243 = vshll.u32 %v1006, 16
      %v1245 = vrot.slane %v1243, 5
      %v1246 = vsel %vm1030, %v1241, %v1245
      %v1248 = vshrl.u32 %v1007, 16
      %v1250 = vrot.slane %v1248, 4
      %v1251 = vshll.u32 %v1007, 16
      %v1253 = vrot.slane %v1251, 5
      %v1254 = vor.u32 %v1250, %v1253
      %v1255 = vrot.slane %v1254, 4
      %v1257 = vshll.u32 %v1008, 16
      %v1259 = vrot.slane %v1257, 5
      %v1260 = vsel %vm1030, %v1255, %v1259
      %v1261 = vshrl.u32 %v1008, 16
      %v1263 = vrot.slane %v1261, 4
      %v1264 = vor.u32 %v1263, %v1259
      %v1265 = vrot.slane %v1264, 4
      %v1267 = vshll.u32 %v1009, 16
      %v1269 = vrot.slane %v1267, 5
      %v1270 = vsel %vm1030, %v1265, %v1269
      %v1272 = vshrl.u32 %v1010, 16
      %v1274 = vrot.slane %v1272, 4
      %v1275 = vshll.u32 %v1010, 16
      %v1277 = vrot.slane %v1275, 5
      %v1278 = vor.u32 %v1274, %v1277
      %v1279 = vrot.slane %v1278, 4
      %v1281 = vshll.u32 %v1011, 16
      %v1283 = vrot.slane %v1281, 5
      %v1284 = vsel %vm1030, %v1279, %v1283
      %v1285 = vshrl.u32 %v1011, 16
      %v1287 = vrot.slane %v1285, 4
      %v1288 = vor.u32 %v1287, %v1283
      %v1289 = vrot.slane %v1288, 4
      %v1291 = vshll.u32 %v1012, 16
      %v1293 = vrot.slane %v1291, 5
      %v1294 = vsel %vm1030, %v1289, %v1293
      %v1296 = vshrl.u32 %v1013, 16
      %v1298 = vrot.slane %v1296, 4
      %v1299 = vshll.u32 %v1013, 16
      %v1301 = vrot.slane %v1299, 5
      %v1302 = vor.u32 %v1298, %v1301
      %v1303 = vrot.slane %v1302, 4
      %v1305 = vshll.u32 %v1014, 16
      %v1307 = vrot.slane %v1305, 5
      %v1308 = vsel %vm1030, %v1303, %v1307
      %v1309 = vshrl.u32 %v1014, 16
      %v1311 = vrot.slane %v1309, 4
      %v1312 = vor.u32 %v1311, %v1307
      %v1313 = vrot.slane %v1312, 4
      %v1315 = vshll.u32 %v1015, 16
      %v1317 = vrot.slane %v1315, 5
      %v1318 = vsel %vm1030, %v1313, %v1317
      %v1320 = vshrl.u32 %v1016, 16
      %v1322 = vrot.slane %v1320, 4
      %v1323 = vshll.u32 %v1016, 16
      %v1325 = vrot.slane %v1323, 5
      %v1326 = vor.u32 %v1322, %v1325
      %v1327 = vrot.slane %v1326, 4
      %v1329 = vshll.u32 %v1017, 16
      %v1331 = vrot.slane %v1329, 5
      %v1332 = vsel %vm1030, %v1327, %v1331
      %v1333 = vshrl.u32 %v1017, 16
      %v1335 = vrot.slane %v1333, 4
      %v1336 = vor.u32 %v1335, %v1331
      %v1337 = vrot.slane %v1336, 4
      %v1339 = vshll.u32 %v1018, 16
      %v1341 = vrot.slane %v1339, 5
      %v1342 = vsel %vm1030, %v1337, %v1341
      %v1344 = vshrl.u32 %v1019, 16
      %v1346 = vrot.slane %v1344, 4
      %v1347 = vshll.u32 %v1019, 16
      %v1349 = vrot.slane %v1347, 5
      %v1350 = vor.u32 %v1346, %v1349
      %v1351 = vrot.slane %v1350, 4
      %v1353 = vshll.u32 %v1020, 16
      %v1355 = vrot.slane %v1353, 5
      %v1356 = vsel %vm1030, %v1351, %v1355
      %v1357 = vshrl.u32 %v1020, 16
      %v1359 = vrot.slane %v1357, 4
      %v1360 = vor.u32 %v1359, %v1355
      %v1361 = vrot.slane %v1360, 4
      %v1363 = vshll.u32 %v1021, 16
      %v1365 = vrot.slane %v1363, 5
      %v1366 = vsel %vm1030, %v1361, %v1365
      %v1368 = vshrl.u32 %v1022, 16
      %v1370 = vrot.slane %v1368, 4
      %v1371 = vshll.u32 %v1022, 16
      %v1373 = vrot.slane %v1371, 5
      %v1374 = vor.u32 %v1370, %v1373
      %v1375 = vrot.slane %v1374, 4
      %v1377 = vshll.u32 %v1023, 16
      %v1379 = vrot.slane %v1377, 5
      %v1380 = vsel %vm1030, %v1375, %v1379
      %v1381 = vshrl.u32 %v1023, 16
      %v1383 = vrot.slane %v1381, 4
      %v1384 = vor.u32 %v1383, %v1379
      %v1385 = vrot.slane %v1384, 4
      %v1387 = vshll.u32 %v1024, 16
      %v1389 = vrot.slane %v1387, 5
      %v1390 = vsel %vm1030, %v1385, %v1389
      %v1392 = vshrl.u32 %v1025, 16
      %v1394 = vrot.slane %v1392, 4
      %v1395 = vshll.u32 %v1025, 16
      %v1397 = vrot.slane %v1395, 5
      %v1398 = vor.u32 %v1394, %v1397
      %v1399 = vrot.slane %v1398, 4
      %v1401 = vshll.u32 %v1026, 16
      %v1403 = vrot.slane %v1401, 5
      %v1404 = vsel %vm1030, %v1399, %v1403
      %v1405 = vshrl.u32 %v1026, 16
      %v1407 = vrot.slane %v1405, 4
      %v1408 = vor.u32 %v1407, %v1403
      %v1409 = vrot.slane %v1408, 4
      %v1411 = vshll.u32 %v1027, 16
      %v1413 = vrot.slane %v1411, 5
      %v1414 = vsel %vm1030, %v1409, %v1413
      %1447 = vst [vmem:[#allocation3 + $0x4] sm:$0xf] %v1044
      %1448 = vst [vmem:[#allocation3 + $0x28] sm:$0xf] %v1054
      %1449 = vst [vmem:[#allocation3 + $0x4c] sm:$0xf] %v1068
      %1450 = vst [vmem:[#allocation3 + $0x70] sm:$0xf] %v1078
      %1451 = vst [vmem:[#allocation3 + $0x94] sm:$0xf] %v1092
      %1452 = vst [vmem:[#allocation3 + $0xb8] sm:$0xf] %v1102
      %1453 = vst [vmem:[#allocation3 + $0xdc] sm:$0xf] %v1116
      %1454 = vst [vmem:[#allocation3 + $0x100] sm:$0xf] %v1126
      %1455 = vst [vmem:[#allocation3 + $0x124] sm:$0xf] %v1140
      %1456 = vst [vmem:[#allocation3 + $0x148] sm:$0xf] %v1150
      %1457 = vst [vmem:[#allocation3 + $0x16c] sm:$0xf] %v1164
      %1458 = vst [vmem:[#allocation3 + $0x190] sm:$0xf] %v1174
      %1459 = vst [vmem:[#allocation3 + $0x1b4] sm:$0xf] %v1188
      %1460 = vst [vmem:[#allocation3 + $0x1d8] sm:$0xf] %v1198
      %1461 = vst [vmem:[#allocation3 + $0x1fc] sm:$0xf] %v1212
      %1462 = vst [vmem:[#allocation3 + $0x220] sm:$0xf] %v1222
      %1463 = vst [vmem:[#allocation3 + $0x244] sm:$0xf] %v1236
      %1464 = vst [vmem:[#allocation3 + $0x268] sm:$0xf] %v1246
      %1465 = vst [vmem:[#allocation3 + $0x28c] sm:$0xf] %v1260
      %1466 = vst [vmem:[#allocation3 + $0x2b0] sm:$0xf] %v1270
      %1467 = vst [vmem:[#allocation3 + $0x2d4] sm:$0xf] %v1284
      %1468 = vst [vmem:[#allocation3 + $0x2f8] sm:$0xf] %v1294
      %1469 = vst [vmem:[#allocation3 + $0x31c] sm:$0xf] %v1308
      %1470 = vst [vmem:[#allocation3 + $0x340] sm:$0xf] %v1318
      %1471 = vst [vmem:[#allocation3 + $0x364] sm:$0xf] %v1332
      %1472 = vst [vmem:[#allocation3 + $0x388] sm:$0xf] %v1342
      %1473 = vst [vmem:[#allocation3 + $0x3ac] sm:$0xf] %v1356
      %1474 = vst [vmem:[#allocation3 + $0x3d0] sm:$0xf] %v1366
      %1475 = vst [vmem:[#allocation3 + $0x3f4] sm:$0xf] %v1380
      %1476 = vst [vmem:[#allocation3 + $0x418] sm:$0xf] %v1390
      %1477 = vst [vmem:[#allocation3 + $0x43c] sm:$0xf] %v1404
      %1478 = vst [vmem:[#allocation3 + $0x460] sm:$0xf] %v1414
      %v1479 = vld [vmem:[#allocation2] sm:$0xe]
      %v1480 = vld [vmem:[#allocation2 + $0x4] sm:$0xf]
      %v1481 = vld [vmem:[#allocation2 + $0x8] sm:$0x1]
      %v1482 = vld [vmem:[#allocation2 + $0xc] sm:$0xe]
      %v1483 = vld [vmem:[#allocation2 + $0x10] sm:$0xf]
      %v1484 = vld [vmem:[#allocation2 + $0x14] sm:$0x1]
      %v1485 = vld [vmem:[#allocation2 + $0x18] sm:$0xe]
      %v1486 = vld [vmem:[#allocation2 + $0x1c] sm:$0xf]
      %v1487 = vld [vmem:[#allocation2 + $0x20] sm:$0x1]
      %v1488 = vld [vmem:[#allocation2 + $0x24] sm:$0xe]
      %v1489 = vld [vmem:[#allocation2 + $0x28] sm:$0xf]
      %v1490 = vld [vmem:[#allocation2 + $0x2c] sm:$0x1]
      %v1491 = vld [vmem:[#allocation2 + $0x30] sm:$0xe]
      %v1492 = vld [vmem:[#allocation2 + $0x34] sm:$0xf]
      %v1493 = vld [vmem:[#allocation2 + $0x38] sm:$0x1]
      %v1494 = vld [vmem:[#allocation2 + $0x3c] sm:$0xe]
      %v1495 = vld [vmem:[#allocation2 + $0x40] sm:$0xf]
      %v1496 = vld [vmem:[#allocation2 + $0x44] sm:$0x1]
      %v1497 = vld [vmem:[#allocation2 + $0x48] sm:$0xe]
      %v1498 = vld [vmem:[#allocation2 + $0x4c] sm:$0xf]
      %v1499 = vld [vmem:[#allocation2 + $0x50] sm:$0x1]
      %v1500 = vld [vmem:[#allocation2 + $0x54] sm:$0xe]
      %v1501 = vld [vmem:[#allocation2 + $0x58] sm:$0xf]
      %v1502 = vld [vmem:[#allocation2 + $0x5c] sm:$0x1]
      %v1503 = vld [vmem:[#allocation2 + $0x60] sm:$0xe]
      %v1504 = vld [vmem:[#allocation2 + $0x64] sm:$0xf]
      %v1505 = vld [vmem:[#allocation2 + $0x68] sm:$0x1]
      %v1506 = vld [vmem:[#allocation2 + $0x6c] sm:$0xe]
      %v1507 = vld [vmem:[#allocation2 + $0x70] sm:$0xf]
      %v1508 = vld [vmem:[#allocation2 + $0x74] sm:$0x1]
      %v1509 = vld [vmem:[#allocation2 + $0x78] sm:$0xe]
      %v1510 = vld [vmem:[#allocation2 + $0x7c] sm:$0xf]
      %v1511 = vld [vmem:[#allocation2 + $0x80] sm:$0x1]
      %v1512 = vld [vmem:[#allocation2 + $0x84] sm:$0xe]
      %v1513 = vld [vmem:[#allocation2 + $0x88] sm:$0xf]
      %v1514 = vld [vmem:[#allocation2 + $0x8c] sm:$0x1]
      %v1515 = vld [vmem:[#allocation2 + $0x90] sm:$0xe]
      %v1516 = vld [vmem:[#allocation2 + $0x94] sm:$0xf]
      %v1517 = vld [vmem:[#allocation2 + $0x98] sm:$0x1]
      %v1518 = vld [vmem:[#allocation2 + $0x9c] sm:$0xe]
      %v1519 = vld [vmem:[#allocation2 + $0xa0] sm:$0xf]
      %v1520 = vld [vmem:[#allocation2 + $0xa4] sm:$0x1]
      %v1521 = vld [vmem:[#allocation2 + $0xa8] sm:$0xe]
      %v1522 = vld [vmem:[#allocation2 + $0xac] sm:$0xf]
      %v1523 = vld [vmem:[#allocation2 + $0xb0] sm:$0x1]
      %v1524 = vld [vmem:[#allocation2 + $0xb4] sm:$0xe]
      %v1525 = vld [vmem:[#allocation2 + $0xb8] sm:$0xf]
      %v1526 = vld [vmem:[#allocation2 + $0xbc] sm:$0x1]
      %vm1575 = vcmask 1042432
      %vm1576 = vcmask 1046532
      %vm1577 = vmor %vm1575, %vm1576
      %v1578 = vrot.slane %v1479, 5
      %v1579 = vrot.slane %v1578, 4
      %v1580 = vrot.slane %v1480, 5
      %v1581 = vsel %vm1577, %v1579, %v1580
      %v1582 = vrot.slane %v1580, 4
      %v1583 = vrot.slane %v1481, 5
      %v1584 = vsel %vm1577, %v1582, %v1583
      %v1585 = vrot.slane %v1482, 5
      %v1586 = vrot.slane %v1585, 4
      %v1587 = vrot.slane %v1483, 5
      %v1588 = vsel %vm1577, %v1586, %v1587
      %v1589 = vrot.slane %v1587, 4
      %v1590 = vrot.slane %v1484, 5
      %v1591 = vsel %vm1577, %v1589, %v1590
      %v1592 = vrot.slane %v1485, 5
      %v1593 = vrot.slane %v1592, 4
      %v1594 = vrot.slane %v1486, 5
      %v1595 = vsel %vm1577, %v1593, %v1594
      %v1596 = vrot.slane %v1594, 4
      %v1597 = vrot.slane %v1487, 5
      %v1598 = vsel %vm1577, %v1596, %v1597
      %v1599 = vrot.slane %v1488, 5
      %v1600 = vrot.slane %v1599, 4
      %v1601 = vrot.slane %v1489, 5
      %v1602 = vsel %vm1577, %v1600, %v1601
      %v1603 = vrot.slane %v1601, 4
      %v1604 = vrot.slane %v1490, 5
      %v1605 = vsel %vm1577, %v1603, %v1604
      %v1606 = vrot.slane %v1491, 5
      %v1607 = vrot.slane %v1606, 4
      %v1608 = vrot.slane %v1492, 5
      %v1609 = vsel %vm1577, %v1607, %v1608
      %v1610 = vrot.slane %v1608, 4
      %v1611 = vrot.slane %v1493, 5
      %v1612 = vsel %vm1577, %v1610, %v1611
      %v1613 = vrot.slane %v1494, 5
      %v1614 = vrot.slane %v1613, 4
      %v1615 = vrot.slane %v1495, 5
      %v1616 = vsel %vm1577, %v1614, %v1615
      %v1617 = vrot.slane %v1615, 4
      %v1618 = vrot.slane %v1496, 5
      %v1619 = vsel %vm1577, %v1617, %v1618
      %v1620 = vrot.slane %v1497, 5
      %v1621 = vrot.slane %v1620, 4
      %v1622 = vrot.slane %v1498, 5
      %v1623 = vsel %vm1577, %v1621, %v1622
      %v1624 = vrot.slane %v1622, 4
      %v1625 = vrot.slane %v1499, 5
      %v1626 = vsel %vm1577, %v1624, %v1625
      %v1627 = vrot.slane %v1500, 5
      %v1628 = vrot.slane %v1627, 4
      %v1629 = vrot.slane %v1501, 5
      %v1630 = vsel %vm1577, %v1628, %v1629
      %v1631 = vrot.slane %v1629, 4
      %v1632 = vrot.slane %v1502, 5
      %v1633 = vsel %vm1577, %v1631, %v1632
      %v1634 = vrot.slane %v1503, 5
      %v1635 = vrot.slane %v1634, 4
      %v1636 = vrot.slane %v1504, 5
      %v1637 = vsel %vm1577, %v1635, %v1636
      %v1638 = vrot.slane %v1636, 4
      %v1639 = vrot.slane %v1505, 5
      %v1640 = vsel %vm1577, %v1638, %v1639
      %v1641 = vrot.slane %v1506, 5
      %v1642 = vrot.slane %v1641, 4
      %v1643 = vrot.slane %v1507, 5
      %v1644 = vsel %vm1577, %v1642, %v1643
      %v1645 = vrot.slane %v1643, 4
      %v1646 = vrot.slane %v1508, 5
      %v1647 = vsel %vm1577, %v1645, %v1646
      %v1648 = vrot.slane %v1509, 5
      %v1649 = vrot.slane %v1648, 4
      %v1650 = vrot.slane %v1510, 5
      %v1651 = vsel %vm1577, %v1649, %v1650
      %v1652 = vrot.slane %v1650, 4
      %v1653 = vrot.slane %v1511, 5
      %v1654 = vsel %vm1577, %v1652, %v1653
      %v1655 = vrot.slane %v1512, 5
      %v1656 = vrot.slane %v1655, 4
      %v1657 = vrot.slane %v1513, 5
      %v1658 = vsel %vm1577, %v1656, %v1657
      %v1659 = vrot.slane %v1657, 4
      %v1660 = vrot.slane %v1514, 5
      %v1661 = vsel %vm1577, %v1659, %v1660
      %v1662 = vrot.slane %v1515, 5
      %v1663 = vrot.slane %v1662, 4
      %v1664 = vrot.slane %v1516, 5
      %v1665 = vsel %vm1577, %v1663, %v1664
      %v1666 = vrot.slane %v1664, 4
      %v1667 = vrot.slane %v1517, 5
      %v1668 = vsel %vm1577, %v1666, %v1667
      %v1669 = vrot.slane %v1518, 5
      %v1670 = vrot.slane %v1669, 4
      %v1671 = vrot.slane %v1519, 5
      %v1672 = vsel %vm1577, %v1670, %v1671
      %v1673 = vrot.slane %v1671, 4
      %v1674 = vrot.slane %v1520, 5
      %v1675 = vsel %vm1577, %v1673, %v1674
      %v1676 = vrot.slane %v1521, 5
      %v1677 = vrot.slane %v1676, 4
      %v1678 = vrot.slane %v1522, 5
      %v1679 = vsel %vm1577, %v1677, %v1678
      %v1680 = vrot.slane %v1678, 4
      %v1681 = vrot.slane %v1523, 5
      %v1682 = vsel %vm1577, %v1680, %v1681
      %v1683 = vrot.slane %v1524, 5
      %v1684 = vrot.slane %v1683, 4
      %v1685 = vrot.slane %v1525, 5
      %v1686 = vsel %vm1577, %v1684, %v1685
      %v1687 = vrot.slane %v1685, 4
      %v1688 = vrot.slane %v1526, 5
      %v1689 = vsel %vm1577, %v1687, %v1688
      %1722 = vst [vmem:[#allocation3 + $0x8] sm:$0xf] %v1581
      %1723 = vst [vmem:[#allocation3 + $0x2c] sm:$0xf] %v1584
      %1724 = vst [vmem:[#allocation3 + $0x50] sm:$0xf] %v1588
      %1725 = vst [vmem:[#allocation3 + $0x74] sm:$0xf] %v1591
      %1726 = vst [vmem:[#allocation3 + $0x98] sm:$0xf] %v1595
      %1727 = vst [vmem:[#allocation3 + $0xbc] sm:$0xf] %v1598
      %1728 = vst [vmem:[#allocation3 + $0xe0] sm:$0xf] %v1602
      %1729 = vst [vmem:[#allocation3 + $0x104] sm:$0xf] %v1605
      %1730 = vst [vmem:[#allocation3 + $0x128] sm:$0xf] %v1609
      %1731 = vst [vmem:[#allocation3 + $0x14c] sm:$0xf] %v1612
      %1732 = vst [vmem:[#allocation3 + $0x170] sm:$0xf] %v1616
      %1733 = vst [vmem:[#allocation3 + $0x194] sm:$0xf] %v1619
      %1734 = vst [vmem:[#allocation3 + $0x1b8] sm:$0xf] %v1623
      %1735 = vst [vmem:[#allocation3 + $0x1dc] sm:$0xf] %v1626
      %1736 = vst [vmem:[#allocation3 + $0x200] sm:$0xf] %v1630
      %1737 = vst [vmem:[#allocation3 + $0x224] sm:$0xf] %v1633
      %1738 = vst [vmem:[#allocation3 + $0x248] sm:$0xf] %v1637
      %1739 = vst [vmem:[#allocation3 + $0x26c] sm:$0xf] %v1640
      %1740 = vst [vmem:[#allocation3 + $0x290] sm:$0xf] %v1644
      %1741 = vst [vmem:[#allocation3 + $0x2b4] sm:$0xf] %v1647
      %1742 = vst [vmem:[#allocation3 + $0x2d8] sm:$0xf] %v1651
      %1743 = vst [vmem:[#allocation3 + $0x2fc] sm:$0xf] %v1654
      %1744 = vst [vmem:[#allocation3 + $0x320] sm:$0xf] %v1658
      %1745 = vst [vmem:[#allocation3 + $0x344] sm:$0xf] %v1661
      %1746 = vst [vmem:[#allocation3 + $0x368] sm:$0xf] %v1665
      %1747 = vst [vmem:[#allocation3 + $0x38c] sm:$0xf] %v1668
      %1748 = vst [vmem:[#allocation3 + $0x3b0] sm:$0xf] %v1672
      %1749 = vst [vmem:[#allocation3 + $0x3d4] sm:$0xf] %v1675
      %1750 = vst [vmem:[#allocation3 + $0x3f8] sm:$0xf] %v1679
      %1751 = vst [vmem:[#allocation3 + $0x41c] sm:$0xf] %v1682
      %1752 = vst [vmem:[#allocation3 + $0x440] sm:$0xf] %v1686
      %1753 = vst [vmem:[#allocation3 + $0x464] sm:$0xf] %v1689
      %v1754 = vld [vmem:[%s801] sm:$0xf]
      %v1755 = vld [vmem:[%s801 + $0x4] sm:$0xf]
      %v1756 = vld [vmem:[%s801 + $0xc] sm:$0xf]
      %v1757 = vld [vmem:[%s801 + $0x10] sm:$0xf]
      %v1758 = vld [vmem:[%s801 + $0x18] sm:$0xf]
      %v1759 = vld [vmem:[%s801 + $0x1c] sm:$0xf]
      %v1760 = vld [vmem:[%s801 + $0x24] sm:$0xf]
      %v1761 = vld [vmem:[%s801 + $0x28] sm:$0xf]
      %v1762 = vld [vmem:[%s801 + $0x30] sm:$0xf]
      %v1763 = vld [vmem:[%s801 + $0x34] sm:$0xf]
      %v1764 = vld [vmem:[%s801 + $0x3c] sm:$0xf]
      %v1765 = vld [vmem:[%s801 + $0x40] sm:$0xf]
      %v1766 = vld [vmem:[%s801 + $0x48] sm:$0xf]
      %v1767 = vld [vmem:[%s801 + $0x4c] sm:$0xf]
      %v1768 = vld [vmem:[%s801 + $0x54] sm:$0xf]
      %v1769 = vld [vmem:[%s801 + $0x58] sm:$0xf]
      %v1770 = vld [vmem:[%s801 + $0x60] sm:$0xf]
      %v1771 = vld [vmem:[%s801 + $0x64] sm:$0xf]
      %v1772 = vld [vmem:[%s801 + $0x6c] sm:$0xf]
      %v1773 = vld [vmem:[%s801 + $0x70] sm:$0xf]
      %v1774 = vld [vmem:[%s801 + $0x78] sm:$0xf]
      %v1775 = vld [vmem:[%s801 + $0x7c] sm:$0xf]
      %v1776 = vld [vmem:[%s801 + $0x84] sm:$0xf]
      %v1777 = vld [vmem:[%s801 + $0x88] sm:$0xf]
      %v1778 = vld [vmem:[%s801 + $0x90] sm:$0xf]
      %v1779 = vld [vmem:[%s801 + $0x94] sm:$0xf]
      %v1780 = vld [vmem:[%s801 + $0x9c] sm:$0xf]
      %v1781 = vld [vmem:[%s801 + $0xa0] sm:$0xf]
      %v1782 = vld [vmem:[%s801 + $0xa8] sm:$0xf]
      %v1783 = vld [vmem:[%s801 + $0xac] sm:$0xf]
      %v1784 = vld [vmem:[%s801 + $0xb4] sm:$0xf]
      %v1785 = vld [vmem:[%s801 + $0xb8] sm:$0xf]
      %1786 = vst [vmem:[#allocation3 + $0xc] sm:$0xf] %v1754
      %1787 = vst [vmem:[#allocation3 + $0x30] sm:$0xf] %v1755
      %1788 = vst [vmem:[#allocation3 + $0x54] sm:$0xf] %v1756
      %1789 = vst [vmem:[#allocation3 + $0x78] sm:$0xf] %v1757
      %1790 = vst [vmem:[#allocation3 + $0x9c] sm:$0xf] %v1758
      %1791 = vst [vmem:[#allocation3 + $0xc0] sm:$0xf] %v1759
      %1792 = vst [vmem:[#allocation3 + $0xe4] sm:$0xf] %v1760
      %1793 = vst [vmem:[#allocation3 + $0x108] sm:$0xf] %v1761
      %1794 = vst [vmem:[#allocation3 + $0x12c] sm:$0xf] %v1762
      %1795 = vst [vmem:[#allocation3 + $0x150] sm:$0xf] %v1763
      %1796 = vst [vmem:[#allocation3 + $0x174] sm:$0xf] %v1764
      %1797 = vst [vmem:[#allocation3 + $0x198] sm:$0xf] %v1765
      %1798 = vst [vmem:[#allocation3 + $0x1bc] sm:$0xf] %v1766
      %1799 = vst [vmem:[#allocation3 + $0x1e0] sm:$0xf] %v1767
      %1800 = vst [vmem:[#allocation3 + $0x204] sm:$0xf] %v1768
      %1801 = vst [vmem:[#allocation3 + $0x228] sm:$0xf] %v1769
      %1802 = vst [vmem:[#allocation3 + $0x24c] sm:$0xf] %v1770
      %1803 = vst [vmem:[#allocation3 + $0x270] sm:$0xf] %v1771
      %1804 = vst [vmem:[#allocation3 + $0x294] sm:$0xf] %v1772
      %1805 = vst [vmem:[#allocation3 + $0x2b8] sm:$0xf] %v1773
      %1806 = vst [vmem:[#allocation3 + $0x2dc] sm:$0xf] %v1774
      %1807 = vst [vmem:[#allocation3 + $0x300] sm:$0xf] %v1775
      %1808 = vst [vmem:[#allocation3 + $0x324] sm:$0xf] %v1776
      %1809 = vst [vmem:[#allocation3 + $0x348] sm:$0xf] %v1777
      %1810 = vst [vmem:[#allocation3 + $0x36c] sm:$0xf] %v1778
      %1811 = vst [vmem:[#allocation3 + $0x390] sm:$0xf] %v1779
      %1812 = vst [vmem:[#allocation3 + $0x3b4] sm:$0xf] %v1780
      %1813 = vst [vmem:[#allocation3 + $0x3d8] sm:$0xf] %v1781
      %1814 = vst [vmem:[#allocation3 + $0x3fc] sm:$0xf] %v1782
      %1815 = vst [vmem:[#allocation3 + $0x420] sm:$0xf] %v1783
      %1816 = vst [vmem:[#allocation3 + $0x444] sm:$0xf] %v1784
      %1817 = vst [vmem:[#allocation3 + $0x468] sm:$0xf] %v1785
      %v1818 = vld [vmem:[%s801] sm:$0xf]
      %v1819 = vld [vmem:[%s801 + $0x4] sm:$0xf]
      %v1820 = vld [vmem:[%s801 + $0x8] sm:$0x1]
      %v1821 = vld [vmem:[%s801 + $0xc] sm:$0xf]
      %v1822 = vld [vmem:[%s801 + $0x10] sm:$0xf]
      %v1823 = vld [vmem:[%s801 + $0x14] sm:$0x1]
      %v1824 = vld [vmem:[%s801 + $0x18] sm:$0xf]
      %v1825 = vld [vmem:[%s801 + $0x1c] sm:$0xf]
      %v1826 = vld [vmem:[%s801 + $0x20] sm:$0x1]
      %v1827 = vld [vmem:[%s801 + $0x24] sm:$0xf]
      %v1828 = vld [vmem:[%s801 + $0x28] sm:$0xf]
      %v1829 = vld [vmem:[%s801 + $0x2c] sm:$0x1]
      %v1830 = vld [vmem:[%s801 + $0x30] sm:$0xf]
      %v1831 = vld [vmem:[%s801 + $0x34] sm:$0xf]
      %v1832 = vld [vmem:[%s801 + $0x38] sm:$0x1]
      %v1833 = vld [vmem:[%s801 + $0x3c] sm:$0xf]
      %v1834 = vld [vmem:[%s801 + $0x40] sm:$0xf]
      %v1835 = vld [vmem:[%s801 + $0x44] sm:$0x1]
      %v1836 = vld [vmem:[%s801 + $0x48] sm:$0xf]
      %v1837 = vld [vmem:[%s801 + $0x4c] sm:$0xf]
      %v1838 = vld [vmem:[%s801 + $0x50] sm:$0x1]
      %v1839 = vld [vmem:[%s801 + $0x54] sm:$0xf]
      %v1840 = vld [vmem:[%s801 + $0x58] sm:$0xf]
      %v1841 = vld [vmem:[%s801 + $0x5c] sm:$0x1]
      %v1842 = vld [vmem:[%s801 + $0x60] sm:$0xf]
      %v1843 = vld [vmem:[%s801 + $0x64] sm:$0xf]
      %v1844 = vld [vmem:[%s801 + $0x68] sm:$0x1]
      %v1845 = vld [vmem:[%s801 + $0x6c] sm:$0xf]
      %v1846 = vld [vmem:[%s801 + $0x70] sm:$0xf]
      %v1847 = vld [vmem:[%s801 + $0x74] sm:$0x1]
      %v1848 = vld [vmem:[%s801 + $0x78] sm:$0xf]
      %v1849 = vld [vmem:[%s801 + $0x7c] sm:$0xf]
      %v1850 = vld [vmem:[%s801 + $0x80] sm:$0x1]
      %v1851 = vld [vmem:[%s801 + $0x84] sm:$0xf]
      %v1852 = vld [vmem:[%s801 + $0x88] sm:$0xf]
      %v1853 = vld [vmem:[%s801 + $0x8c] sm:$0x1]
      %v1854 = vld [vmem:[%s801 + $0x90] sm:$0xf]
      %v1855 = vld [vmem:[%s801 + $0x94] sm:$0xf]
      %v1856 = vld [vmem:[%s801 + $0x98] sm:$0x1]
      %v1857 = vld [vmem:[%s801 + $0x9c] sm:$0xf]
      %v1858 = vld [vmem:[%s801 + $0xa0] sm:$0xf]
      %v1859 = vld [vmem:[%s801 + $0xa4] sm:$0x1]
      %v1860 = vld [vmem:[%s801 + $0xa8] sm:$0xf]
      %v1861 = vld [vmem:[%s801 + $0xac] sm:$0xf]
      %v1862 = vld [vmem:[%s801 + $0xb0] sm:$0x1]
      %v1863 = vld [vmem:[%s801 + $0xb4] sm:$0xf]
      %v1864 = vld [vmem:[%s801 + $0xb8] sm:$0xf]
      %v1865 = vld [vmem:[%s801 + $0xbc] sm:$0x1]
      %v1867 = vshrl.u32 %v1818, 16
      %v1869 = vrot.slane %v1867, 4
      %v1870 = vshll.u32 %v1818, 16
      %v1872 = vrot.slane %v1870, 5
      %v1873 = vor.u32 %v1869, %v1872
      %v1874 = vrot.slane %v1873, 4
      %v1876 = vshll.u32 %v1819, 16
      %v1878 = vrot.slane %v1876, 5
      %v1879 = vsel %vm1030, %v1874, %v1878
      %v1880 = vshrl.u32 %v1819, 16
      %v1882 = vrot.slane %v1880, 4
      %v1883 = vor.u32 %v1882, %v1878
      %v1884 = vrot.slane %v1883, 4
      %v1886 = vshll.u32 %v1820, 16
      %v1888 = vrot.slane %v1886, 5
      %v1889 = vsel %vm1030, %v1884, %v1888
      %v1891 = vshrl.u32 %v1821, 16
      %v1893 = vrot.slane %v1891, 4
      %v1894 = vshll.u32 %v1821, 16
      %v1896 = vrot.slane %v1894, 5
      %v1897 = vor.u32 %v1893, %v1896
      %v1898 = vrot.slane %v1897, 4
      %v1900 = vshll.u32 %v1822, 16
      %v1902 = vrot.slane %v1900, 5
      %v1903 = vsel %vm1030, %v1898, %v1902
      %v1904 = vshrl.u32 %v1822, 16
      %v1906 = vrot.slane %v1904, 4
      %v1907 = vor.u32 %v1906, %v1902
      %v1908 = vrot.slane %v1907, 4
      %v1910 = vshll.u32 %v1823, 16
      %v1912 = vrot.slane %v1910, 5
      %v1913 = vsel %vm1030, %v1908, %v1912
      %v1915 = vshrl.u32 %v1824, 16
      %v1917 = vrot.slane %v1915, 4
      %v1918 = vshll.u32 %v1824, 16
      %v1920 = vrot.slane %v1918, 5
      %v1921 = vor.u32 %v1917, %v1920
      %v1922 = vrot.slane %v1921, 4
      %v1924 = vshll.u32 %v1825, 16
      %v1926 = vrot.slane %v1924, 5
      %v1927 = vsel %vm1030, %v1922, %v1926
      %v1928 = vshrl.u32 %v1825, 16
      %v1930 = vrot.slane %v1928, 4
      %v1931 = vor.u32 %v1930, %v1926
      %v1932 = vrot.slane %v1931, 4
      %v1934 = vshll.u32 %v1826, 16
      %v1936 = vrot.slane %v1934, 5
      %v1937 = vsel %vm1030, %v1932, %v1936
      %v1939 = vshrl.u32 %v1827, 16
      %v1941 = vrot.slane %v1939, 4
      %v1942 = vshll.u32 %v1827, 16
      %v1944 = vrot.slane %v1942, 5
      %v1945 = vor.u32 %v1941, %v1944
      %v1946 = vrot.slane %v1945, 4
      %v1948 = vshll.u32 %v1828, 16
      %v1950 = vrot.slane %v1948, 5
      %v1951 = vsel %vm1030, %v1946, %v1950
      %v1952 = vshrl.u32 %v1828, 16
      %v1954 = vrot.slane %v1952, 4
      %v1955 = vor.u32 %v1954, %v1950
      %v1956 = vrot.slane %v1955, 4
      %v1958 = vshll.u32 %v1829, 16
      %v1960 = vrot.slane %v1958, 5
      %v1961 = vsel %vm1030, %v1956, %v1960
      %v1963 = vshrl.u32 %v1830, 16
      %v1965 = vrot.slane %v1963, 4
      %v1966 = vshll.u32 %v1830, 16
      %v1968 = vrot.slane %v1966, 5
      %v1969 = vor.u32 %v1965, %v1968
      %v1970 = vrot.slane %v1969, 4
      %v1972 = vshll.u32 %v1831, 16
      %v1974 = vrot.slane %v1972, 5
      %v1975 = vsel %vm1030, %v1970, %v1974
      %v1976 = vshrl.u32 %v1831, 16
      %v1978 = vrot.slane %v1976, 4
      %v1979 = vor.u32 %v1978, %v1974
      %v1980 = vrot.slane %v1979, 4
      %v1982 = vshll.u32 %v1832, 16
      %v1984 = vrot.slane %v1982, 5
      %v1985 = vsel %vm1030, %v1980, %v1984
      %v1987 = vshrl.u32 %v1833, 16
      %v1989 = vrot.slane %v1987, 4
      %v1990 = vshll.u32 %v1833, 16
      %v1992 = vrot.slane %v1990, 5
      %v1993 = vor.u32 %v1989, %v1992
      %v1994 = vrot.slane %v1993, 4
      %v1996 = vshll.u32 %v1834, 16
      %v1998 = vrot.slane %v1996, 5
      %v1999 = vsel %vm1030, %v1994, %v1998
      %v2000 = vshrl.u32 %v1834, 16
      %v2002 = vrot.slane %v2000, 4
      %v2003 = vor.u32 %v2002, %v1998
      %v2004 = vrot.slane %v2003, 4
      %v2006 = vshll.u32 %v1835, 16
      %v2008 = vrot.slane %v2006, 5
      %v2009 = vsel %vm1030, %v2004, %v2008
      %v2011 = vshrl.u32 %v1836, 16
      %v2013 = vrot.slane %v2011, 4
      %v2014 = vshll.u32 %v1836, 16
      %v2016 = vrot.slane %v2014, 5
      %v2017 = vor.u32 %v2013, %v2016
      %v2018 = vrot.slane %v2017, 4
      %v2020 = vshll.u32 %v1837, 16
      %v2022 = vrot.slane %v2020, 5
      %v2023 = vsel %vm1030, %v2018, %v2022
      %v2024 = vshrl.u32 %v1837, 16
      %v2026 = vrot.slane %v2024, 4
      %v2027 = vor.u32 %v2026, %v2022
      %v2028 = vrot.slane %v2027, 4
      %v2030 = vshll.u32 %v1838, 16
      %v2032 = vrot.slane %v2030, 5
      %v2033 = vsel %vm1030, %v2028, %v2032
      %v2035 = vshrl.u32 %v1839, 16
      %v2037 = vrot.slane %v2035, 4
      %v2038 = vshll.u32 %v1839, 16
      %v2040 = vrot.slane %v2038, 5
      %v2041 = vor.u32 %v2037, %v2040
      %v2042 = vrot.slane %v2041, 4
      %v2044 = vshll.u32 %v1840, 16
      %v2046 = vrot.slane %v2044, 5
      %v2047 = vsel %vm1030, %v2042, %v2046
      %v2048 = vshrl.u32 %v1840, 16
      %v2050 = vrot.slane %v2048, 4
      %v2051 = vor.u32 %v2050, %v2046
      %v2052 = vrot.slane %v2051, 4
      %v2054 = vshll.u32 %v1841, 16
      %v2056 = vrot.slane %v2054, 5
      %v2057 = vsel %vm1030, %v2052, %v2056
      %v2059 = vshrl.u32 %v1842, 16
      %v2061 = vrot.slane %v2059, 4
      %v2062 = vshll.u32 %v1842, 16
      %v2064 = vrot.slane %v2062, 5
      %v2065 = vor.u32 %v2061, %v2064
      %v2066 = vrot.slane %v2065, 4
      %v2068 = vshll.u32 %v1843, 16
      %v2070 = vrot.slane %v2068, 5
      %v2071 = vsel %vm1030, %v2066, %v2070
      %v2072 = vshrl.u32 %v1843, 16
      %v2074 = vrot.slane %v2072, 4
      %v2075 = vor.u32 %v2074, %v2070
      %v2076 = vrot.slane %v2075, 4
      %v2078 = vshll.u32 %v1844, 16
      %v2080 = vrot.slane %v2078, 5
      %v2081 = vsel %vm1030, %v2076, %v2080
      %v2083 = vshrl.u32 %v1845, 16
      %v2085 = vrot.slane %v2083, 4
      %v2086 = vshll.u32 %v1845, 16
      %v2088 = vrot.slane %v2086, 5
      %v2089 = vor.u32 %v2085, %v2088
      %v2090 = vrot.slane %v2089, 4
      %v2092 = vshll.u32 %v1846, 16
      %v2094 = vrot.slane %v2092, 5
      %v2095 = vsel %vm1030, %v2090, %v2094
      %v2096 = vshrl.u32 %v1846, 16
      %v2098 = vrot.slane %v2096, 4
      %v2099 = vor.u32 %v2098, %v2094
      %v2100 = vrot.slane %v2099, 4
      %v2102 = vshll.u32 %v1847, 16
      %v2104 = vrot.slane %v2102, 5
      %v2105 = vsel %vm1030, %v2100, %v2104
      %v2107 = vshrl.u32 %v1848, 16
      %v2109 = vrot.slane %v2107, 4
      %v2110 = vshll.u32 %v1848, 16
      %v2112 = vrot.slane %v2110, 5
      %v2113 = vor.u32 %v2109, %v2112
      %v2114 = vrot.slane %v2113, 4
      %v2116 = vshll.u32 %v1849, 16
      %v2118 = vrot.slane %v2116, 5
      %v2119 = vsel %vm1030, %v2114, %v2118
      %v2120 = vshrl.u32 %v1849, 16
      %v2122 = vrot.slane %v2120, 4
      %v2123 = vor.u32 %v2122, %v2118
      %v2124 = vrot.slane %v2123, 4
      %v2126 = vshll.u32 %v1850, 16
      %v2128 = vrot.slane %v2126, 5
      %v2129 = vsel %vm1030, %v2124, %v2128
      %v2131 = vshrl.u32 %v1851, 16
      %v2133 = vrot.slane %v2131, 4
      %v2134 = vshll.u32 %v1851, 16
      %v2136 = vrot.slane %v2134, 5
      %v2137 = vor.u32 %v2133, %v2136
      %v2138 = vrot.slane %v2137, 4
      %v2140 = vshll.u32 %v1852, 16
      %v2142 = vrot.slane %v2140, 5
      %v2143 = vsel %vm1030, %v2138, %v2142
      %v2144 = vshrl.u32 %v1852, 16
      %v2146 = vrot.slane %v2144, 4
      %v2147 = vor.u32 %v2146, %v2142
      %v2148 = vrot.slane %v2147, 4
      %v2150 = vshll.u32 %v1853, 16
      %v2152 = vrot.slane %v2150, 5
      %v2153 = vsel %vm1030, %v2148, %v2152
      %v2155 = vshrl.u32 %v1854, 16
      %v2157 = vrot.slane %v2155, 4
      %v2158 = vshll.u32 %v1854, 16
      %v2160 = vrot.slane %v2158, 5
      %v2161 = vor.u32 %v2157, %v2160
      %v2162 = vrot.slane %v2161, 4
      %v2164 = vshll.u32 %v1855, 16
      %v2166 = vrot.slane %v2164, 5
      %v2167 = vsel %vm1030, %v2162, %v2166
      %v2168 = vshrl.u32 %v1855, 16
      %v2170 = vrot.slane %v2168, 4
      %v2171 = vor.u32 %v2170, %v2166
      %v2172 = vrot.slane %v2171, 4
      %v2174 = vshll.u32 %v1856, 16
      %v2176 = vrot.slane %v2174, 5
      %v2177 = vsel %vm1030, %v2172, %v2176
      %v2179 = vshrl.u32 %v1857, 16
      %v2181 = vrot.slane %v2179, 4
      %v2182 = vshll.u32 %v1857, 16
      %v2184 = vrot.slane %v2182, 5
      %v2185 = vor.u32 %v2181, %v2184
      %v2186 = vrot.slane %v2185, 4
      %v2188 = vshll.u32 %v1858, 16
      %v2190 = vrot.slane %v2188, 5
      %v2191 = vsel %vm1030, %v2186, %v2190
      %v2192 = vshrl.u32 %v1858, 16
      %v2194 = vrot.slane %v2192, 4
      %v2195 = vor.u32 %v2194, %v2190
      %v2196 = vrot.slane %v2195, 4
      %v2198 = vshll.u32 %v1859, 16
      %v2200 = vrot.slane %v2198, 5
      %v2201 = vsel %vm1030, %v2196, %v2200
      %v2203 = vshrl.u32 %v1860, 16
      %v2205 = vrot.slane %v2203, 4
      %v2206 = vshll.u32 %v1860, 16
      %v2208 = vrot.slane %v2206, 5
      %v2209 = vor.u32 %v2205, %v2208
      %v2210 = vrot.slane %v2209, 4
      %v2212 = vshll.u32 %v1861, 16
      %v2214 = vrot.slane %v2212, 5
      %v2215 = vsel %vm1030, %v2210, %v2214
      %v2216 = vshrl.u32 %v1861, 16
      %v2218 = vrot.slane %v2216, 4
      %v2219 = vor.u32 %v2218, %v2214
      %v2220 = vrot.slane %v2219, 4
      %v2222 = vshll.u32 %v1862, 16
      %v2224 = vrot.slane %v2222, 5
      %v2225 = vsel %vm1030, %v2220, %v2224
      %v2227 = vshrl.u32 %v1863, 16
      %v2229 = vrot.slane %v2227, 4
      %v2230 = vshll.u32 %v1863, 16
      %v2232 = vrot.slane %v2230, 5
      %v2233 = vor.u32 %v2229, %v2232
      %v2234 = vrot.slane %v2233, 4
      %v2236 = vshll.u32 %v1864, 16
      %v2238 = vrot.slane %v2236, 5
      %v2239 = vsel %vm1030, %v2234, %v2238
      %v2240 = vshrl.u32 %v1864, 16
      %v2242 = vrot.slane %v2240, 4
      %v2243 = vor.u32 %v2242, %v2238
      %v2244 = vrot.slane %v2243, 4
      %v2246 = vshll.u32 %v1865, 16
      %v2248 = vrot.slane %v2246, 5
      %v2249 = vsel %vm1030, %v2244, %v2248
      %2282 = vst [vmem:[#allocation3 + $0x10] sm:$0xf] %v1879
      %2283 = vst [vmem:[#allocation3 + $0x34] sm:$0xf] %v1889
      %2284 = vst [vmem:[#allocation3 + $0x58] sm:$0xf] %v1903
      %2285 = vst [vmem:[#allocation3 + $0x7c] sm:$0xf] %v1913
      %2286 = vst [vmem:[#allocation3 + $0xa0] sm:$0xf] %v1927
      %2287 = vst [vmem:[#allocation3 + $0xc4] sm:$0xf] %v1937
      %2288 = vst [vmem:[#allocation3 + $0xe8] sm:$0xf] %v1951
      %2289 = vst [vmem:[#allocation3 + $0x10c] sm:$0xf] %v1961
      %2290 = vst [vmem:[#allocation3 + $0x130] sm:$0xf] %v1975
      %2291 = vst [vmem:[#allocation3 + $0x154] sm:$0xf] %v1985
      %2292 = vst [vmem:[#allocation3 + $0x178] sm:$0xf] %v1999
      %2293 = vst [vmem:[#allocation3 + $0x19c] sm:$0xf] %v2009
      %2294 = vst [vmem:[#allocation3 + $0x1c0] sm:$0xf] %v2023
      %2295 = vst [vmem:[#allocation3 + $0x1e4] sm:$0xf] %v2033
      %2296 = vst [vmem:[#allocation3 + $0x208] sm:$0xf] %v2047
      %2297 = vst [vmem:[#allocation3 + $0x22c] sm:$0xf] %v2057
      %2298 = vst [vmem:[#allocation3 + $0x250] sm:$0xf] %v2071
      %2299 = vst [vmem:[#allocation3 + $0x274] sm:$0xf] %v2081
      %2300 = vst [vmem:[#allocation3 + $0x298] sm:$0xf] %v2095
      %2301 = vst [vmem:[#allocation3 + $0x2bc] sm:$0xf] %v2105
      %2302 = vst [vmem:[#allocation3 + $0x2e0] sm:$0xf] %v2119
      %2303 = vst [vmem:[#allocation3 + $0x304] sm:$0xf] %v2129
      %2304 = vst [vmem:[#allocation3 + $0x328] sm:$0xf] %v2143
      %2305 = vst [vmem:[#allocation3 + $0x34c] sm:$0xf] %v2153
      %2306 = vst [vmem:[#allocation3 + $0x370] sm:$0xf] %v2167
      %2307 = vst [vmem:[#allocation3 + $0x394] sm:$0xf] %v2177
      %2308 = vst [vmem:[#allocation3 + $0x3b8] sm:$0xf] %v2191
      %2309 = vst [vmem:[#allocation3 + $0x3dc] sm:$0xf] %v2201
      %2310 = vst [vmem:[#allocation3 + $0x400] sm:$0xf] %v2215
      %2311 = vst [vmem:[#allocation3 + $0x424] sm:$0xf] %v2225
      %2312 = vst [vmem:[#allocation3 + $0x448] sm:$0xf] %v2239
      %2313 = vst [vmem:[#allocation3 + $0x46c] sm:$0xf] %v2249
      %v2314 = vld [vmem:[%s801] sm:$0xe]
      %v2315 = vld [vmem:[%s801 + $0x4] sm:$0xf]
      %v2316 = vld [vmem:[%s801 + $0x8] sm:$0x1]
      %v2317 = vld [vmem:[%s801 + $0xc] sm:$0xe]
      %v2318 = vld [vmem:[%s801 + $0x10] sm:$0xf]
      %v2319 = vld [vmem:[%s801 + $0x14] sm:$0x1]
      %v2320 = vld [vmem:[%s801 + $0x18] sm:$0xe]
      %v2321 = vld [vmem:[%s801 + $0x1c] sm:$0xf]
      %v2322 = vld [vmem:[%s801 + $0x20] sm:$0x1]
      %v2323 = vld [vmem:[%s801 + $0x24] sm:$0xe]
      %v2324 = vld [vmem:[%s801 + $0x28] sm:$0xf]
      %v2325 = vld [vmem:[%s801 + $0x2c] sm:$0x1]
      %v2326 = vld [vmem:[%s801 + $0x30] sm:$0xe]
      %v2327 = vld [vmem:[%s801 + $0x34] sm:$0xf]
      %v2328 = vld [vmem:[%s801 + $0x38] sm:$0x1]
      %v2329 = vld [vmem:[%s801 + $0x3c] sm:$0xe]
      %v2330 = vld [vmem:[%s801 + $0x40] sm:$0xf]
      %v2331 = vld [vmem:[%s801 + $0x44] sm:$0x1]
      %v2332 = vld [vmem:[%s801 + $0x48] sm:$0xe]
      %v2333 = vld [vmem:[%s801 + $0x4c] sm:$0xf]
      %v2334 = vld [vmem:[%s801 + $0x50] sm:$0x1]
      %v2335 = vld [vmem:[%s801 + $0x54] sm:$0xe]
      %v2336 = vld [vmem:[%s801 + $0x58] sm:$0xf]
      %v2337 = vld [vmem:[%s801 + $0x5c] sm:$0x1]
      %v2338 = vld [vmem:[%s801 + $0x60] sm:$0xe]
      %v2339 = vld [vmem:[%s801 + $0x64] sm:$0xf]
      %v2340 = vld [vmem:[%s801 + $0x68] sm:$0x1]
      %v2341 = vld [vmem:[%s801 + $0x6c] sm:$0xe]
      %v2342 = vld [vmem:[%s801 + $0x70] sm:$0xf]
      %v2343 = vld [vmem:[%s801 + $0x74] sm:$0x1]
      %v2344 = vld [vmem:[%s801 + $0x78] sm:$0xe]
      %v2345 = vld [vmem:[%s801 + $0x7c] sm:$0xf]
      %v2346 = vld [vmem:[%s801 + $0x80] sm:$0x1]
      %v2347 = vld [vmem:[%s801 + $0x84] sm:$0xe]
      %v2348 = vld [vmem:[%s801 + $0x88] sm:$0xf]
      %v2349 = vld [vmem:[%s801 + $0x8c] sm:$0x1]
      %v2350 = vld [vmem:[%s801 + $0x90] sm:$0xe]
      %v2351 = vld [vmem:[%s801 + $0x94] sm:$0xf]
      %v2352 = vld [vmem:[%s801 + $0x98] sm:$0x1]
      %v2353 = vld [vmem:[%s801 + $0x9c] sm:$0xe]
      %v2354 = vld [vmem:[%s801 + $0xa0] sm:$0xf]
      %v2355 = vld [vmem:[%s801 + $0xa4] sm:$0x1]
      %v2356 = vld [vmem:[%s801 + $0xa8] sm:$0xe]
      %v2357 = vld [vmem:[%s801 + $0xac] sm:$0xf]
      %v2358 = vld [vmem:[%s801 + $0xb0] sm:$0x1]
      %v2359 = vld [vmem:[%s801 + $0xb4] sm:$0xe]
      %v2360 = vld [vmem:[%s801 + $0xb8] sm:$0xf]
      %v2361 = vld [vmem:[%s801 + $0xbc] sm:$0x1]
      %v2410 = vrot.slane %v2314, 5
      %v2411 = vrot.slane %v2410, 4
      %v2412 = vrot.slane %v2315, 5
      %v2413 = vsel %vm1577, %v2411, %v2412
      %v2414 = vrot.slane %v2412, 4
      %v2415 = vrot.slane %v2316, 5
      %v2416 = vsel %vm1577, %v2414, %v2415
      %v2417 = vrot.slane %v2317, 5
      %v2418 = vrot.slane %v2417, 4
      %v2419 = vrot.slane %v2318, 5
      %v2420 = vsel %vm1577, %v2418, %v2419
      %v2421 = vrot.slane %v2419, 4
      %v2422 = vrot.slane %v2319, 5
      %v2423 = vsel %vm1577, %v2421, %v2422
      %v2424 = vrot.slane %v2320, 5
      %v2425 = vrot.slane %v2424, 4
      %v2426 = vrot.slane %v2321, 5
      %v2427 = vsel %vm1577, %v2425, %v2426
      %v2428 = vrot.slane %v2426, 4
      %v2429 = vrot.slane %v2322, 5
      %v2430 = vsel %vm1577, %v2428, %v2429
      %v2431 = vrot.slane %v2323, 5
      %v2432 = vrot.slane %v2431, 4
      %v2433 = vrot.slane %v2324, 5
      %v2434 = vsel %vm1577, %v2432, %v2433
      %v2435 = vrot.slane %v2433, 4
      %v2436 = vrot.slane %v2325, 5
      %v2437 = vsel %vm1577, %v2435, %v2436
      %v2438 = vrot.slane %v2326, 5
      %v2439 = vrot.slane %v2438, 4
      %v2440 = vrot.slane %v2327, 5
      %v2441 = vsel %vm1577, %v2439, %v2440
      %v2442 = vrot.slane %v2440, 4
      %v2443 = vrot.slane %v2328, 5
      %v2444 = vsel %vm1577, %v2442, %v2443
      %v2445 = vrot.slane %v2329, 5
      %v2446 = vrot.slane %v2445, 4
      %v2447 = vrot.slane %v2330, 5
      %v2448 = vsel %vm1577, %v2446, %v2447
      %v2449 = vrot.slane %v2447, 4
      %v2450 = vrot.slane %v2331, 5
      %v2451 = vsel %vm1577, %v2449, %v2450
      %v2452 = vrot.slane %v2332, 5
      %v2453 = vrot.slane %v2452, 4
      %v2454 = vrot.slane %v2333, 5
      %v2455 = vsel %vm1577, %v2453, %v2454
      %v2456 = vrot.slane %v2454, 4
      %v2457 = vrot.slane %v2334, 5
      %v2458 = vsel %vm1577, %v2456, %v2457
      %v2459 = vrot.slane %v2335, 5
      %v2460 = vrot.slane %v2459, 4
      %v2461 = vrot.slane %v2336, 5
      %v2462 = vsel %vm1577, %v2460, %v2461
      %v2463 = vrot.slane %v2461, 4
      %v2464 = vrot.slane %v2337, 5
      %v2465 = vsel %vm1577, %v2463, %v2464
      %v2466 = vrot.slane %v2338, 5
      %v2467 = vrot.slane %v2466, 4
      %v2468 = vrot.slane %v2339, 5
      %v2469 = vsel %vm1577, %v2467, %v2468
      %v2470 = vrot.slane %v2468, 4
      %v2471 = vrot.slane %v2340, 5
      %v2472 = vsel %vm1577, %v2470, %v2471
      %v2473 = vrot.slane %v2341, 5
      %v2474 = vrot.slane %v2473, 4
      %v2475 = vrot.slane %v2342, 5
      %v2476 = vsel %vm1577, %v2474, %v2475
      %v2477 = vrot.slane %v2475, 4
      %v2478 = vrot.slane %v2343, 5
      %v2479 = vsel %vm1577, %v2477, %v2478
      %v2480 = vrot.slane %v2344, 5
      %v2481 = vrot.slane %v2480, 4
      %v2482 = vrot.slane %v2345, 5
      %v2483 = vsel %vm1577, %v2481, %v2482
      %v2484 = vrot.slane %v2482, 4
      %v2485 = vrot.slane %v2346, 5
      %v2486 = vsel %vm1577, %v2484, %v2485
      %v2487 = vrot.slane %v2347, 5
      %v2488 = vrot.slane %v2487, 4
      %v2489 = vrot.slane %v2348, 5
      %v2490 = vsel %vm1577, %v2488, %v2489
      %v2491 = vrot.slane %v2489, 4
      %v2492 = vrot.slane %v2349, 5
      %v2493 = vsel %vm1577, %v2491, %v2492
      %v2494 = vrot.slane %v2350, 5
      %v2495 = vrot.slane %v2494, 4
      %v2496 = vrot.slane %v2351, 5
      %v2497 = vsel %vm1577, %v2495, %v2496
      %v2498 = vrot.slane %v2496, 4
      %v2499 = vrot.slane %v2352, 5
      %v2500 = vsel %vm1577, %v2498, %v2499
      %v2501 = vrot.slane %v2353, 5
      %v2502 = vrot.slane %v2501, 4
      %v2503 = vrot.slane %v2354, 5
      %v2504 = vsel %vm1577, %v2502, %v2503
      %v2505 = vrot.slane %v2503, 4
      %v2506 = vrot.slane %v2355, 5
      %v2507 = vsel %vm1577, %v2505, %v2506
      %v2508 = vrot.slane %v2356, 5
      %v2509 = vrot.slane %v2508, 4
      %v2510 = vrot.slane %v2357, 5
      %v2511 = vsel %vm1577, %v2509, %v2510
      %v2512 = vrot.slane %v2510, 4
      %v2513 = vrot.slane %v2358, 5
      %v2514 = vsel %vm1577, %v2512, %v2513
      %v2515 = vrot.slane %v2359, 5
      %v2516 = vrot.slane %v2515, 4
      %v2517 = vrot.slane %v2360, 5
      %v2518 = vsel %vm1577, %v2516, %v2517
      %v2519 = vrot.slane %v2517, 4
      %v2520 = vrot.slane %v2361, 5
      %v2521 = vsel %vm1577, %v2519, %v2520
      %2554 = vst [vmem:[#allocation3 + $0x14] sm:$0xf] %v2413
      %2555 = vst [vmem:[#allocation3 + $0x38] sm:$0xf] %v2416
      %2556 = vst [vmem:[#allocation3 + $0x5c] sm:$0xf] %v2420
      %2557 = vst [vmem:[#allocation3 + $0x80] sm:$0xf] %v2423
      %2558 = vst [vmem:[#allocation3 + $0xa4] sm:$0xf] %v2427
      %2559 = vst [vmem:[#allocation3 + $0xc8] sm:$0xf] %v2430
      %2560 = vst [vmem:[#allocation3 + $0xec] sm:$0xf] %v2434
      %2561 = vst [vmem:[#allocation3 + $0x110] sm:$0xf] %v2437
      %2562 = vst [vmem:[#allocation3 + $0x134] sm:$0xf] %v2441
      %2563 = vst [vmem:[#allocation3 + $0x158] sm:$0xf] %v2444
      %2564 = vst [vmem:[#allocation3 + $0x17c] sm:$0xf] %v2448
      %2565 = vst [vmem:[#allocation3 + $0x1a0] sm:$0xf] %v2451
      %2566 = vst [vmem:[#allocation3 + $0x1c4] sm:$0xf] %v2455
      %2567 = vst [vmem:[#allocation3 + $0x1e8] sm:$0xf] %v2458
      %2568 = vst [vmem:[#allocation3 + $0x20c] sm:$0xf] %v2462
      %2569 = vst [vmem:[#allocation3 + $0x230] sm:$0xf] %v2465
      %2570 = vst [vmem:[#allocation3 + $0x254] sm:$0xf] %v2469
      %2571 = vst [vmem:[#allocation3 + $0x278] sm:$0xf] %v2472
      %2572 = vst [vmem:[#allocation3 + $0x29c] sm:$0xf] %v2476
      %2573 = vst [vmem:[#allocation3 + $0x2c0] sm:$0xf] %v2479
      %2574 = vst [vmem:[#allocation3 + $0x2e4] sm:$0xf] %v2483
      %2575 = vst [vmem:[#allocation3 + $0x308] sm:$0xf] %v2486
      %2576 = vst [vmem:[#allocation3 + $0x32c] sm:$0xf] %v2490
      %2577 = vst [vmem:[#allocation3 + $0x350] sm:$0xf] %v2493
      %2578 = vst [vmem:[#allocation3 + $0x374] sm:$0xf] %v2497
      %2579 = vst [vmem:[#allocation3 + $0x398] sm:$0xf] %v2500
      %2580 = vst [vmem:[#allocation3 + $0x3bc] sm:$0xf] %v2504
      %2581 = vst [vmem:[#allocation3 + $0x3e0] sm:$0xf] %v2507
      %2582 = vst [vmem:[#allocation3 + $0x404] sm:$0xf] %v2511
      %2583 = vst [vmem:[#allocation3 + $0x428] sm:$0xf] %v2514
      %2584 = vst [vmem:[#allocation3 + $0x44c] sm:$0xf] %v2518
      %2585 = vst [vmem:[#allocation3 + $0x470] sm:$0xf] %v2521
      %s2586 = scalar_lea.vmem [#allocation2], 24
      %v2587 = vld [vmem:[%s2586] sm:$0xf]
      %v2588 = vld [vmem:[%s2586 + $0x4] sm:$0xf]
      %v2589 = vld [vmem:[%s2586 + $0xc] sm:$0xf]
      %v2590 = vld [vmem:[%s2586 + $0x10] sm:$0xf]
      %v2591 = vld [vmem:[%s2586 + $0x18] sm:$0xf]
      %v2592 = vld [vmem:[%s2586 + $0x1c] sm:$0xf]
      %v2593 = vld [vmem:[%s2586 + $0x24] sm:$0xf]
      %v2594 = vld [vmem:[%s2586 + $0x28] sm:$0xf]
      %v2595 = vld [vmem:[%s2586 + $0x30] sm:$0xf]
      %v2596 = vld [vmem:[%s2586 + $0x34] sm:$0xf]
      %v2597 = vld [vmem:[%s2586 + $0x3c] sm:$0xf]
      %v2598 = vld [vmem:[%s2586 + $0x40] sm:$0xf]
      %v2599 = vld [vmem:[%s2586 + $0x48] sm:$0xf]
      %v2600 = vld [vmem:[%s2586 + $0x4c] sm:$0xf]
      %v2601 = vld [vmem:[%s2586 + $0x54] sm:$0xf]
      %v2602 = vld [vmem:[%s2586 + $0x58] sm:$0xf]
      %v2603 = vld [vmem:[%s2586 + $0x60] sm:$0xf]
      %v2604 = vld [vmem:[%s2586 + $0x64] sm:$0xf]
      %v2605 = vld [vmem:[%s2586 + $0x6c] sm:$0xf]
      %v2606 = vld [vmem:[%s2586 + $0x70] sm:$0xf]
      %v2607 = vld [vmem:[%s2586 + $0x78] sm:$0xf]
      %v2608 = vld [vmem:[%s2586 + $0x7c] sm:$0xf]
      %v2609 = vld [vmem:[%s2586 + $0x84] sm:$0xf]
      %v2610 = vld [vmem:[%s2586 + $0x88] sm:$0xf]
      %v2611 = vld [vmem:[%s2586 + $0x90] sm:$0xf]
      %v2612 = vld [vmem:[%s2586 + $0x94] sm:$0xf]
      %v2613 = vld [vmem:[%s2586 + $0x9c] sm:$0xf]
      %v2614 = vld [vmem:[%s2586 + $0xa0] sm:$0xf]
      %v2615 = vld [vmem:[%s2586 + $0xa8] sm:$0xf]
      %v2616 = vld [vmem:[%s2586 + $0xac] sm:$0xf]
      %v2617 = vld [vmem:[%s2586 + $0xb4] sm:$0xf]
      %v2618 = vld [vmem:[%s2586 + $0xb8] sm:$0xf]
      %2619 = vst [vmem:[#allocation3 + $0x18] sm:$0xf] %v2587
      %2620 = vst [vmem:[#allocation3 + $0x3c] sm:$0xf] %v2588
      %2621 = vst [vmem:[#allocation3 + $0x60] sm:$0xf] %v2589
      %2622 = vst [vmem:[#allocation3 + $0x84] sm:$0xf] %v2590
      %2623 = vst [vmem:[#allocation3 + $0xa8] sm:$0xf] %v2591
      %2624 = vst [vmem:[#allocation3 + $0xcc] sm:$0xf] %v2592
      %2625 = vst [vmem:[#allocation3 + $0xf0] sm:$0xf] %v2593
      %2626 = vst [vmem:[#allocation3 + $0x114] sm:$0xf] %v2594
      %2627 = vst [vmem:[#allocation3 + $0x138] sm:$0xf] %v2595
      %2628 = vst [vmem:[#allocation3 + $0x15c] sm:$0xf] %v2596
      %2629 = vst [vmem:[#allocation3 + $0x180] sm:$0xf] %v2597
      %2630 = vst [vmem:[#allocation3 + $0x1a4] sm:$0xf] %v2598
      %2631 = vst [vmem:[#allocation3 + $0x1c8] sm:$0xf] %v2599
      %2632 = vst [vmem:[#allocation3 + $0x1ec] sm:$0xf] %v2600
      %2633 = vst [vmem:[#allocation3 + $0x210] sm:$0xf] %v2601
      %2634 = vst [vmem:[#allocation3 + $0x234] sm:$0xf] %v2602
      %2635 = vst [vmem:[#allocation3 + $0x258] sm:$0xf] %v2603
      %2636 = vst [vmem:[#allocation3 + $0x27c] sm:$0xf] %v2604
      %2637 = vst [vmem:[#allocation3 + $0x2a0] sm:$0xf] %v2605
      %2638 = vst [vmem:[#allocation3 + $0x2c4] sm:$0xf] %v2606
      %2639 = vst [vmem:[#allocation3 + $0x2e8] sm:$0xf] %v2607
      %2640 = vst [vmem:[#allocation3 + $0x30c] sm:$0xf] %v2608
      %2641 = vst [vmem:[#allocation3 + $0x330] sm:$0xf] %v2609
      %2642 = vst [vmem:[#allocation3 + $0x354] sm:$0xf] %v2610
      %2643 = vst [vmem:[#allocation3 + $0x378] sm:$0xf] %v2611
      %2644 = vst [vmem:[#allocation3 + $0x39c] sm:$0xf] %v2612
      %2645 = vst [vmem:[#allocation3 + $0x3c0] sm:$0xf] %v2613
      %2646 = vst [vmem:[#allocation3 + $0x3e4] sm:$0xf] %v2614
      %2647 = vst [vmem:[#allocation3 + $0x408] sm:$0xf] %v2615
      %2648 = vst [vmem:[#allocation3 + $0x42c] sm:$0xf] %v2616
      %2649 = vst [vmem:[#allocation3 + $0x450] sm:$0xf] %v2617
      %2650 = vst [vmem:[#allocation3 + $0x474] sm:$0xf] %v2618
      %v2651 = vld [vmem:[%s2586] sm:$0xf]
      %v2652 = vld [vmem:[%s2586 + $0x4] sm:$0xf]
      %v2653 = vld [vmem:[%s2586 + $0x8] sm:$0x1]
      %v2654 = vld [vmem:[%s2586 + $0xc] sm:$0xf]
      %v2655 = vld [vmem:[%s2586 + $0x10] sm:$0xf]
      %v2656 = vld [vmem:[%s2586 + $0x14] sm:$0x1]
      %v2657 = vld [vmem:[%s2586 + $0x18] sm:$0xf]
      %v2658 = vld [vmem:[%s2586 + $0x1c] sm:$0xf]
      %v2659 = vld [vmem:[%s2586 + $0x20] sm:$0x1]
      %v2660 = vld [vmem:[%s2586 + $0x24] sm:$0xf]
      %v2661 = vld [vmem:[%s2586 + $0x28] sm:$0xf]
      %v2662 = vld [vmem:[%s2586 + $0x2c] sm:$0x1]
      %v2663 = vld [vmem:[%s2586 + $0x30] sm:$0xf]
      %v2664 = vld [vmem:[%s2586 + $0x34] sm:$0xf]
      %v2665 = vld [vmem:[%s2586 + $0x38] sm:$0x1]
      %v2666 = vld [vmem:[%s2586 + $0x3c] sm:$0xf]
      %v2667 = vld [vmem:[%s2586 + $0x40] sm:$0xf]
      %v2668 = vld [vmem:[%s2586 + $0x44] sm:$0x1]
      %v2669 = vld [vmem:[%s2586 + $0x48] sm:$0xf]
      %v2670 = vld [vmem:[%s2586 + $0x4c] sm:$0xf]
      %v2671 = vld [vmem:[%s2586 + $0x50] sm:$0x1]
      %v2672 = vld [vmem:[%s2586 + $0x54] sm:$0xf]
      %v2673 = vld [vmem:[%s2586 + $0x58] sm:$0xf]
      %v2674 = vld [vmem:[%s2586 + $0x5c] sm:$0x1]
      %v2675 = vld [vmem:[%s2586 + $0x60] sm:$0xf]
      %v2676 = vld [vmem:[%s2586 + $0x64] sm:$0xf]
      %v2677 = vld [vmem:[%s2586 + $0x68] sm:$0x1]
      %v2678 = vld [vmem:[%s2586 + $0x6c] sm:$0xf]
      %v2679 = vld [vmem:[%s2586 + $0x70] sm:$0xf]
      %v2680 = vld [vmem:[%s2586 + $0x74] sm:$0x1]
      %v2681 = vld [vmem:[%s2586 + $0x78] sm:$0xf]
      %v2682 = vld [vmem:[%s2586 + $0x7c] sm:$0xf]
      %v2683 = vld [vmem:[%s2586 + $0x80] sm:$0x1]
      %v2684 = vld [vmem:[%s2586 + $0x84] sm:$0xf]
      %v2685 = vld [vmem:[%s2586 + $0x88] sm:$0xf]
      %v2686 = vld [vmem:[%s2586 + $0x8c] sm:$0x1]
      %v2687 = vld [vmem:[%s2586 + $0x90] sm:$0xf]
      %v2688 = vld [vmem:[%s2586 + $0x94] sm:$0xf]
      %v2689 = vld [vmem:[%s2586 + $0x98] sm:$0x1]
      %v2690 = vld [vmem:[%s2586 + $0x9c] sm:$0xf]
      %v2691 = vld [vmem:[%s2586 + $0xa0] sm:$0xf]
      %v2692 = vld [vmem:[%s2586 + $0xa4] sm:$0x1]
      %v2693 = vld [vmem:[%s2586 + $0xa8] sm:$0xf]
      %v2694 = vld [vmem:[%s2586 + $0xac] sm:$0xf]
      %v2695 = vld [vmem:[%s2586 + $0xb0] sm:$0x1]
      %v2696 = vld [vmem:[%s2586 + $0xb4] sm:$0xf]
      %v2697 = vld [vmem:[%s2586 + $0xb8] sm:$0xf]
      %v2698 = vld [vmem:[%s2586 + $0xbc] sm:$0x1]
      %v2700 = vshrl.u32 %v2651, 16
      %v2702 = vrot.slane %v2700, 4
      %v2703 = vshll.u32 %v2651, 16
      %v2705 = vrot.slane %v2703, 5
      %v2706 = vor.u32 %v2702, %v2705
      %v2707 = vrot.slane %v2706, 4
      %v2709 = vshll.u32 %v2652, 16
      %v2711 = vrot.slane %v2709, 5
      %v2712 = vsel %vm1030, %v2707, %v2711
      %v2713 = vshrl.u32 %v2652, 16
      %v2715 = vrot.slane %v2713, 4
      %v2716 = vor.u32 %v2715, %v2711
      %v2717 = vrot.slane %v2716, 4
      %v2719 = vshll.u32 %v2653, 16
      %v2721 = vrot.slane %v2719, 5
      %v2722 = vsel %vm1030, %v2717, %v2721
      %v2724 = vshrl.u32 %v2654, 16
      %v2726 = vrot.slane %v2724, 4
      %v2727 = vshll.u32 %v2654, 16
      %v2729 = vrot.slane %v2727, 5
      %v2730 = vor.u32 %v2726, %v2729
      %v2731 = vrot.slane %v2730, 4
      %v2733 = vshll.u32 %v2655, 16
      %v2735 = vrot.slane %v2733, 5
      %v2736 = vsel %vm1030, %v2731, %v2735
      %v2737 = vshrl.u32 %v2655, 16
      %v2739 = vrot.slane %v2737, 4
      %v2740 = vor.u32 %v2739, %v2735
      %v2741 = vrot.slane %v2740, 4
      %v2743 = vshll.u32 %v2656, 16
      %v2745 = vrot.slane %v2743, 5
      %v2746 = vsel %vm1030, %v2741, %v2745
      %v2748 = vshrl.u32 %v2657, 16
      %v2750 = vrot.slane %v2748, 4
      %v2751 = vshll.u32 %v2657, 16
      %v2753 = vrot.slane %v2751, 5
      %v2754 = vor.u32 %v2750, %v2753
      %v2755 = vrot.slane %v2754, 4
      %v2757 = vshll.u32 %v2658, 16
      %v2759 = vrot.slane %v2757, 5
      %v2760 = vsel %vm1030, %v2755, %v2759
      %v2761 = vshrl.u32 %v2658, 16
      %v2763 = vrot.slane %v2761, 4
      %v2764 = vor.u32 %v2763, %v2759
      %v2765 = vrot.slane %v2764, 4
      %v2767 = vshll.u32 %v2659, 16
      %v2769 = vrot.slane %v2767, 5
      %v2770 = vsel %vm1030, %v2765, %v2769
      %v2772 = vshrl.u32 %v2660, 16
      %v2774 = vrot.slane %v2772, 4
      %v2775 = vshll.u32 %v2660, 16
      %v2777 = vrot.slane %v2775, 5
      %v2778 = vor.u32 %v2774, %v2777
      %v2779 = vrot.slane %v2778, 4
      %v2781 = vshll.u32 %v2661, 16
      %v2783 = vrot.slane %v2781, 5
      %v2784 = vsel %vm1030, %v2779, %v2783
      %v2785 = vshrl.u32 %v2661, 16
      %v2787 = vrot.slane %v2785, 4
      %v2788 = vor.u32 %v2787, %v2783
      %v2789 = vrot.slane %v2788, 4
      %v2791 = vshll.u32 %v2662, 16
      %v2793 = vrot.slane %v2791, 5
      %v2794 = vsel %vm1030, %v2789, %v2793
      %v2796 = vshrl.u32 %v2663, 16
      %v2798 = vrot.slane %v2796, 4
      %v2799 = vshll.u32 %v2663, 16
      %v2801 = vrot.slane %v2799, 5
      %v2802 = vor.u32 %v2798, %v2801
      %v2803 = vrot.slane %v2802, 4
      %v2805 = vshll.u32 %v2664, 16
      %v2807 = vrot.slane %v2805, 5
      %v2808 = vsel %vm1030, %v2803, %v2807
      %v2809 = vshrl.u32 %v2664, 16
      %v2811 = vrot.slane %v2809, 4
      %v2812 = vor.u32 %v2811, %v2807
      %v2813 = vrot.slane %v2812, 4
      %v2815 = vshll.u32 %v2665, 16
      %v2817 = vrot.slane %v2815, 5
      %v2818 = vsel %vm1030, %v2813, %v2817
      %v2820 = vshrl.u32 %v2666, 16
      %v2822 = vrot.slane %v2820, 4
      %v2823 = vshll.u32 %v2666, 16
      %v2825 = vrot.slane %v2823, 5
      %v2826 = vor.u32 %v2822, %v2825
      %v2827 = vrot.slane %v2826, 4
      %v2829 = vshll.u32 %v2667, 16
      %v2831 = vrot.slane %v2829, 5
      %v2832 = vsel %vm1030, %v2827, %v2831
      %v2833 = vshrl.u32 %v2667, 16
      %v2835 = vrot.slane %v2833, 4
      %v2836 = vor.u32 %v2835, %v2831
      %v2837 = vrot.slane %v2836, 4
      %v2839 = vshll.u32 %v2668, 16
      %v2841 = vrot.slane %v2839, 5
      %v2842 = vsel %vm1030, %v2837, %v2841
      %v2844 = vshrl.u32 %v2669, 16
      %v2846 = vrot.slane %v2844, 4
      %v2847 = vshll.u32 %v2669, 16
      %v2849 = vrot.slane %v2847, 5
      %v2850 = vor.u32 %v2846, %v2849
      %v2851 = vrot.slane %v2850, 4
      %v2853 = vshll.u32 %v2670, 16
      %v2855 = vrot.slane %v2853, 5
      %v2856 = vsel %vm1030, %v2851, %v2855
      %v2857 = vshrl.u32 %v2670, 16
      %v2859 = vrot.slane %v2857, 4
      %v2860 = vor.u32 %v2859, %v2855
      %v2861 = vrot.slane %v2860, 4
      %v2863 = vshll.u32 %v2671, 16
      %v2865 = vrot.slane %v2863, 5
      %v2866 = vsel %vm1030, %v2861, %v2865
      %v2868 = vshrl.u32 %v2672, 16
      %v2870 = vrot.slane %v2868, 4
      %v2871 = vshll.u32 %v2672, 16
      %v2873 = vrot.slane %v2871, 5
      %v2874 = vor.u32 %v2870, %v2873
      %v2875 = vrot.slane %v2874, 4
      %v2877 = vshll.u32 %v2673, 16
      %v2879 = vrot.slane %v2877, 5
      %v2880 = vsel %vm1030, %v2875, %v2879
      %v2881 = vshrl.u32 %v2673, 16
      %v2883 = vrot.slane %v2881, 4
      %v2884 = vor.u32 %v2883, %v2879
      %v2885 = vrot.slane %v2884, 4
      %v2887 = vshll.u32 %v2674, 16
      %v2889 = vrot.slane %v2887, 5
      %v2890 = vsel %vm1030, %v2885, %v2889
      %v2892 = vshrl.u32 %v2675, 16
      %v2894 = vrot.slane %v2892, 4
      %v2895 = vshll.u32 %v2675, 16
      %v2897 = vrot.slane %v2895, 5
      %v2898 = vor.u32 %v2894, %v2897
      %v2899 = vrot.slane %v2898, 4
      %v2901 = vshll.u32 %v2676, 16
      %v2903 = vrot.slane %v2901, 5
      %v2904 = vsel %vm1030, %v2899, %v2903
      %v2905 = vshrl.u32 %v2676, 16
      %v2907 = vrot.slane %v2905, 4
      %v2908 = vor.u32 %v2907, %v2903
      %v2909 = vrot.slane %v2908, 4
      %v2911 = vshll.u32 %v2677, 16
      %v2913 = vrot.slane %v2911, 5
      %v2914 = vsel %vm1030, %v2909, %v2913
      %v2916 = vshrl.u32 %v2678, 16
      %v2918 = vrot.slane %v2916, 4
      %v2919 = vshll.u32 %v2678, 16
      %v2921 = vrot.slane %v2919, 5
      %v2922 = vor.u32 %v2918, %v2921
      %v2923 = vrot.slane %v2922, 4
      %v2925 = vshll.u32 %v2679, 16
      %v2927 = vrot.slane %v2925, 5
      %v2928 = vsel %vm1030, %v2923, %v2927
      %v2929 = vshrl.u32 %v2679, 16
      %v2931 = vrot.slane %v2929, 4
      %v2932 = vor.u32 %v2931, %v2927
      %v2933 = vrot.slane %v2932, 4
      %v2935 = vshll.u32 %v2680, 16
      %v2937 = vrot.slane %v2935, 5
      %v2938 = vsel %vm1030, %v2933, %v2937
      %v2940 = vshrl.u32 %v2681, 16
      %v2942 = vrot.slane %v2940, 4
      %v2943 = vshll.u32 %v2681, 16
      %v2945 = vrot.slane %v2943, 5
      %v2946 = vor.u32 %v2942, %v2945
      %v2947 = vrot.slane %v2946, 4
      %v2949 = vshll.u32 %v2682, 16
      %v2951 = vrot.slane %v2949, 5
      %v2952 = vsel %vm1030, %v2947, %v2951
      %v2953 = vshrl.u32 %v2682, 16
      %v2955 = vrot.slane %v2953, 4
      %v2956 = vor.u32 %v2955, %v2951
      %v2957 = vrot.slane %v2956, 4
      %v2959 = vshll.u32 %v2683, 16
      %v2961 = vrot.slane %v2959, 5
      %v2962 = vsel %vm1030, %v2957, %v2961
      %v2964 = vshrl.u32 %v2684, 16
      %v2966 = vrot.slane %v2964, 4
      %v2967 = vshll.u32 %v2684, 16
      %v2969 = vrot.slane %v2967, 5
      %v2970 = vor.u32 %v2966, %v2969
      %v2971 = vrot.slane %v2970, 4
      %v2973 = vshll.u32 %v2685, 16
      %v2975 = vrot.slane %v2973, 5
      %v2976 = vsel %vm1030, %v2971, %v2975
      %v2977 = vshrl.u32 %v2685, 16
      %v2979 = vrot.slane %v2977, 4
      %v2980 = vor.u32 %v2979, %v2975
      %v2981 = vrot.slane %v2980, 4
      %v2983 = vshll.u32 %v2686, 16
      %v2985 = vrot.slane %v2983, 5
      %v2986 = vsel %vm1030, %v2981, %v2985
      %v2988 = vshrl.u32 %v2687, 16
      %v2990 = vrot.slane %v2988, 4
      %v2991 = vshll.u32 %v2687, 16
      %v2993 = vrot.slane %v2991, 5
      %v2994 = vor.u32 %v2990, %v2993
      %v2995 = vrot.slane %v2994, 4
      %v2997 = vshll.u32 %v2688, 16
      %v2999 = vrot.slane %v2997, 5
      %v3000 = vsel %vm1030, %v2995, %v2999
      %v3001 = vshrl.u32 %v2688, 16
      %v3003 = vrot.slane %v3001, 4
      %v3004 = vor.u32 %v3003, %v2999
      %v3005 = vrot.slane %v3004, 4
      %v3007 = vshll.u32 %v2689, 16
      %v3009 = vrot.slane %v3007, 5
      %v3010 = vsel %vm1030, %v3005, %v3009
      %v3012 = vshrl.u32 %v2690, 16
      %v3014 = vrot.slane %v3012, 4
      %v3015 = vshll.u32 %v2690, 16
      %v3017 = vrot.slane %v3015, 5
      %v3018 = vor.u32 %v3014, %v3017
      %v3019 = vrot.slane %v3018, 4
      %v3021 = vshll.u32 %v2691, 16
      %v3023 = vrot.slane %v3021, 5
      %v3024 = vsel %vm1030, %v3019, %v3023
      %v3025 = vshrl.u32 %v2691, 16
      %v3027 = vrot.slane %v3025, 4
      %v3028 = vor.u32 %v3027, %v3023
      %v3029 = vrot.slane %v3028, 4
      %v3031 = vshll.u32 %v2692, 16
      %v3033 = vrot.slane %v3031, 5
      %v3034 = vsel %vm1030, %v3029, %v3033
      %v3036 = vshrl.u32 %v2693, 16
      %v3038 = vrot.slane %v3036, 4
      %v3039 = vshll.u32 %v2693, 16
      %v3041 = vrot.slane %v3039, 5
      %v3042 = vor.u32 %v3038, %v3041
      %v3043 = vrot.slane %v3042, 4
      %v3045 = vshll.u32 %v2694, 16
      %v3047 = vrot.slane %v3045, 5
      %v3048 = vsel %vm1030, %v3043, %v3047
      %v3049 = vshrl.u32 %v2694, 16
      %v3051 = vrot.slane %v3049, 4
      %v3052 = vor.u32 %v3051, %v3047
      %v3053 = vrot.slane %v3052, 4
      %v3055 = vshll.u32 %v2695, 16
      %v3057 = vrot.slane %v3055, 5
      %v3058 = vsel %vm1030, %v3053, %v3057
      %v3060 = vshrl.u32 %v2696, 16
      %v3062 = vrot.slane %v3060, 4
      %v3063 = vshll.u32 %v2696, 16
      %v3065 = vrot.slane %v3063, 5
      %v3066 = vor.u32 %v3062, %v3065
      %v3067 = vrot.slane %v3066, 4
      %v3069 = vshll.u32 %v2697, 16
      %v3071 = vrot.slane %v3069, 5
      %v3072 = vsel %vm1030, %v3067, %v3071
      %v3073 = vshrl.u32 %v2697, 16
      %v3075 = vrot.slane %v3073, 4
      %v3076 = vor.u32 %v3075, %v3071
      %v3077 = vrot.slane %v3076, 4
      %v3079 = vshll.u32 %v2698, 16
      %v3081 = vrot.slane %v3079, 5
      %v3082 = vsel %vm1030, %v3077, %v3081
      %3115 = vst [vmem:[#allocation3 + $0x1c] sm:$0xf] %v2712
      %3116 = vst [vmem:[#allocation3 + $0x40] sm:$0xf] %v2722
      %3117 = vst [vmem:[#allocation3 + $0x64] sm:$0xf] %v2736
      %3118 = vst [vmem:[#allocation3 + $0x88] sm:$0xf] %v2746
      %3119 = vst [vmem:[#allocation3 + $0xac] sm:$0xf] %v2760
      %3120 = vst [vmem:[#allocation3 + $0xd0] sm:$0xf] %v2770
      %3121 = vst [vmem:[#allocation3 + $0xf4] sm:$0xf] %v2784
      %3122 = vst [vmem:[#allocation3 + $0x118] sm:$0xf] %v2794
      %3123 = vst [vmem:[#allocation3 + $0x13c] sm:$0xf] %v2808
      %3124 = vst [vmem:[#allocation3 + $0x160] sm:$0xf] %v2818
      %3125 = vst [vmem:[#allocation3 + $0x184] sm:$0xf] %v2832
      %3126 = vst [vmem:[#allocation3 + $0x1a8] sm:$0xf] %v2842
      %3127 = vst [vmem:[#allocation3 + $0x1cc] sm:$0xf] %v2856
      %3128 = vst [vmem:[#allocation3 + $0x1f0] sm:$0xf] %v2866
      %3129 = vst [vmem:[#allocation3 + $0x214] sm:$0xf] %v2880
      %3130 = vst [vmem:[#allocation3 + $0x238] sm:$0xf] %v2890
      %3131 = vst [vmem:[#allocation3 + $0x25c] sm:$0xf] %v2904
      %3132 = vst [vmem:[#allocation3 + $0x280] sm:$0xf] %v2914
      %3133 = vst [vmem:[#allocation3 + $0x2a4] sm:$0xf] %v2928
      %3134 = vst [vmem:[#allocation3 + $0x2c8] sm:$0xf] %v2938
      %3135 = vst [vmem:[#allocation3 + $0x2ec] sm:$0xf] %v2952
      %3136 = vst [vmem:[#allocation3 + $0x310] sm:$0xf] %v2962
      %3137 = vst [vmem:[#allocation3 + $0x334] sm:$0xf] %v2976
      %3138 = vst [vmem:[#allocation3 + $0x358] sm:$0xf] %v2986
      %3139 = vst [vmem:[#allocation3 + $0x37c] sm:$0xf] %v3000
      %3140 = vst [vmem:[#allocation3 + $0x3a0] sm:$0xf] %v3010
      %3141 = vst [vmem:[#allocation3 + $0x3c4] sm:$0xf] %v3024
      %3142 = vst [vmem:[#allocation3 + $0x3e8] sm:$0xf] %v3034
      %3143 = vst [vmem:[#allocation3 + $0x40c] sm:$0xf] %v3048
      %3144 = vst [vmem:[#allocation3 + $0x430] sm:$0xf] %v3058
      %3145 = vst [vmem:[#allocation3 + $0x454] sm:$0xf] %v3072
      %3146 = vst [vmem:[#allocation3 + $0x478] sm:$0xf] %v3082
      %v3147 = vld [vmem:[%s2586] sm:$0xe]
      %v3148 = vld [vmem:[%s2586 + $0x4] sm:$0xf]
      %v3149 = vld [vmem:[%s2586 + $0x8] sm:$0x1]
      %v3150 = vld [vmem:[%s2586 + $0xc] sm:$0xe]
      %v3151 = vld [vmem:[%s2586 + $0x10] sm:$0xf]
      %v3152 = vld [vmem:[%s2586 + $0x14] sm:$0x1]
      %v3153 = vld [vmem:[%s2586 + $0x18] sm:$0xe]
      %v3154 = vld [vmem:[%s2586 + $0x1c] sm:$0xf]
      %v3155 = vld [vmem:[%s2586 + $0x20] sm:$0x1]
      %v3156 = vld [vmem:[%s2586 + $0x24] sm:$0xe]
      %v3157 = vld [vmem:[%s2586 + $0x28] sm:$0xf]
      %v3158 = vld [vmem:[%s2586 + $0x2c] sm:$0x1]
      %v3159 = vld [vmem:[%s2586 + $0x30] sm:$0xe]
      %v3160 = vld [vmem:[%s2586 + $0x34] sm:$0xf]
      %v3161 = vld [vmem:[%s2586 + $0x38] sm:$0x1]
      %v3162 = vld [vmem:[%s2586 + $0x3c] sm:$0xe]
      %v3163 = vld [vmem:[%s2586 + $0x40] sm:$0xf]
      %v3164 = vld [vmem:[%s2586 + $0x44] sm:$0x1]
      %v3165 = vld [vmem:[%s2586 + $0x48] sm:$0xe]
      %v3166 = vld [vmem:[%s2586 + $0x4c] sm:$0xf]
      %v3167 = vld [vmem:[%s2586 + $0x50] sm:$0x1]
      %v3168 = vld [vmem:[%s2586 + $0x54] sm:$0xe]
      %v3169 = vld [vmem:[%s2586 + $0x58] sm:$0xf]
      %v3170 = vld [vmem:[%s2586 + $0x5c] sm:$0x1]
      %v3171 = vld [vmem:[%s2586 + $0x60] sm:$0xe]
      %v3172 = vld [vmem:[%s2586 + $0x64] sm:$0xf]
      %v3173 = vld [vmem:[%s2586 + $0x68] sm:$0x1]
      %v3174 = vld [vmem:[%s2586 + $0x6c] sm:$0xe]
      %v3175 = vld [vmem:[%s2586 + $0x70] sm:$0xf]
      %v3176 = vld [vmem:[%s2586 + $0x74] sm:$0x1]
      %v3177 = vld [vmem:[%s2586 + $0x78] sm:$0xe]
      %v3178 = vld [vmem:[%s2586 + $0x7c] sm:$0xf]
      %v3179 = vld [vmem:[%s2586 + $0x80] sm:$0x1]
      %v3180 = vld [vmem:[%s2586 + $0x84] sm:$0xe]
      %v3181 = vld [vmem:[%s2586 + $0x88] sm:$0xf]
      %v3182 = vld [vmem:[%s2586 + $0x8c] sm:$0x1]
      %v3183 = vld [vmem:[%s2586 + $0x90] sm:$0xe]
      %v3184 = vld [vmem:[%s2586 + $0x94] sm:$0xf]
      %v3185 = vld [vmem:[%s2586 + $0x98] sm:$0x1]
      %v3186 = vld [vmem:[%s2586 + $0x9c] sm:$0xe]
      %v3187 = vld [vmem:[%s2586 + $0xa0] sm:$0xf]
      %v3188 = vld [vmem:[%s2586 + $0xa4] sm:$0x1]
      %v3189 = vld [vmem:[%s2586 + $0xa8] sm:$0xe]
      %v3190 = vld [vmem:[%s2586 + $0xac] sm:$0xf]
      %v3191 = vld [vmem:[%s2586 + $0xb0] sm:$0x1]
      %v3192 = vld [vmem:[%s2586 + $0xb4] sm:$0xe]
      %v3193 = vld [vmem:[%s2586 + $0xb8] sm:$0xf]
      %v3194 = vld [vmem:[%s2586 + $0xbc] sm:$0x1]
      %v3243 = vrot.slane %v3147, 5
      %v3244 = vrot.slane %v3243, 4
      %v3245 = vrot.slane %v3148, 5
      %v3246 = vsel %vm1577, %v3244, %v3245
      %v3247 = vrot.slane %v3245, 4
      %v3248 = vrot.slane %v3149, 5
      %v3249 = vsel %vm1577, %v3247, %v3248
      %v3250 = vrot.slane %v3150, 5
      %v3251 = vrot.slane %v3250, 4
      %v3252 = vrot.slane %v3151, 5
      %v3253 = vsel %vm1577, %v3251, %v3252
      %v3254 = vrot.slane %v3252, 4
      %v3255 = vrot.slane %v3152, 5
      %v3256 = vsel %vm1577, %v3254, %v3255
      %v3257 = vrot.slane %v3153, 5
      %v3258 = vrot.slane %v3257, 4
      %v3259 = vrot.slane %v3154, 5
      %v3260 = vsel %vm1577, %v3258, %v3259
      %v3261 = vrot.slane %v3259, 4
      %v3262 = vrot.slane %v3155, 5
      %v3263 = vsel %vm1577, %v3261, %v3262
      %v3264 = vrot.slane %v3156, 5
      %v3265 = vrot.slane %v3264, 4
      %v3266 = vrot.slane %v3157, 5
      %v3267 = vsel %vm1577, %v3265, %v3266
      %v3268 = vrot.slane %v3266, 4
      %v3269 = vrot.slane %v3158, 5
      %v3270 = vsel %vm1577, %v3268, %v3269
      %v3271 = vrot.slane %v3159, 5
      %v3272 = vrot.slane %v3271, 4
      %v3273 = vrot.slane %v3160, 5
      %v3274 = vsel %vm1577, %v3272, %v3273
      %v3275 = vrot.slane %v3273, 4
      %v3276 = vrot.slane %v3161, 5
      %v3277 = vsel %vm1577, %v3275, %v3276
      %v3278 = vrot.slane %v3162, 5
      %v3279 = vrot.slane %v3278, 4
      %v3280 = vrot.slane %v3163, 5
      %v3281 = vsel %vm1577, %v3279, %v3280
      %v3282 = vrot.slane %v3280, 4
      %v3283 = vrot.slane %v3164, 5
      %v3284 = vsel %vm1577, %v3282, %v3283
      %v3285 = vrot.slane %v3165, 5
      %v3286 = vrot.slane %v3285, 4
      %v3287 = vrot.slane %v3166, 5
      %v3288 = vsel %vm1577, %v3286, %v3287
      %v3289 = vrot.slane %v3287, 4
      %v3290 = vrot.slane %v3167, 5
      %v3291 = vsel %vm1577, %v3289, %v3290
      %v3292 = vrot.slane %v3168, 5
      %v3293 = vrot.slane %v3292, 4
      %v3294 = vrot.slane %v3169, 5
      %v3295 = vsel %vm1577, %v3293, %v3294
      %v3296 = vrot.slane %v3294, 4
      %v3297 = vrot.slane %v3170, 5
      %v3298 = vsel %vm1577, %v3296, %v3297
      %v3299 = vrot.slane %v3171, 5
      %v3300 = vrot.slane %v3299, 4
      %v3301 = vrot.slane %v3172, 5
      %v3302 = vsel %vm1577, %v3300, %v3301
      %v3303 = vrot.slane %v3301, 4
      %v3304 = vrot.slane %v3173, 5
      %v3305 = vsel %vm1577, %v3303, %v3304
      %v3306 = vrot.slane %v3174, 5
      %v3307 = vrot.slane %v3306, 4
      %v3308 = vrot.slane %v3175, 5
      %v3309 = vsel %vm1577, %v3307, %v3308
      %v3310 = vrot.slane %v3308, 4
      %v3311 = vrot.slane %v3176, 5
      %v3312 = vsel %vm1577, %v3310, %v3311
      %v3313 = vrot.slane %v3177, 5
      %v3314 = vrot.slane %v3313, 4
      %v3315 = vrot.slane %v3178, 5
      %v3316 = vsel %vm1577, %v3314, %v3315
      %v3317 = vrot.slane %v3315, 4
      %v3318 = vrot.slane %v3179, 5
      %v3319 = vsel %vm1577, %v3317, %v3318
      %v3320 = vrot.slane %v3180, 5
      %v3321 = vrot.slane %v3320, 4
      %v3322 = vrot.slane %v3181, 5
      %v3323 = vsel %vm1577, %v3321, %v3322
      %v3324 = vrot.slane %v3322, 4
      %v3325 = vrot.slane %v3182, 5
      %v3326 = vsel %vm1577, %v3324, %v3325
      %v3327 = vrot.slane %v3183, 5
      %v3328 = vrot.slane %v3327, 4
      %v3329 = vrot.slane %v3184, 5
      %v3330 = vsel %vm1577, %v3328, %v3329
      %v3331 = vrot.slane %v3329, 4
      %v3332 = vrot.slane %v3185, 5
      %v3333 = vsel %vm1577, %v3331, %v3332
      %v3334 = vrot.slane %v3186, 5
      %v3335 = vrot.slane %v3334, 4
      %v3336 = vrot.slane %v3187, 5
      %v3337 = vsel %vm1577, %v3335, %v3336
      %v3338 = vrot.slane %v3336, 4
      %v3339 = vrot.slane %v3188, 5
      %v3340 = vsel %vm1577, %v3338, %v3339
      %v3341 = vrot.slane %v3189, 5
      %v3342 = vrot.slane %v3341, 4
      %v3343 = vrot.slane %v3190, 5
      %v3344 = vsel %vm1577, %v3342, %v3343
      %v3345 = vrot.slane %v3343, 4
      %v3346 = vrot.slane %v3191, 5
      %v3347 = vsel %vm1577, %v3345, %v3346
      %v3348 = vrot.slane %v3192, 5
      %v3349 = vrot.slane %v3348, 4
      %v3350 = vrot.slane %v3193, 5
      %v3351 = vsel %vm1577, %v3349, %v3350
      %v3352 = vrot.slane %v3350, 4
      %v3353 = vrot.slane %v3194, 5
      %v3354 = vsel %vm1577, %v3352, %v3353
      %3387 = vst [vmem:[#allocation3 + $0x20] sm:$0xf] %v3246
      %3388 = vst [vmem:[#allocation3 + $0x44] sm:$0xf] %v3249
      %3389 = vst [vmem:[#allocation3 + $0x68] sm:$0xf] %v3253
      %3390 = vst [vmem:[#allocation3 + $0x8c] sm:$0xf] %v3256
      %3391 = vst [vmem:[#allocation3 + $0xb0] sm:$0xf] %v3260
      %3392 = vst [vmem:[#allocation3 + $0xd4] sm:$0xf] %v3263
      %3393 = vst [vmem:[#allocation3 + $0xf8] sm:$0xf] %v3267
      %3394 = vst [vmem:[#allocation3 + $0x11c] sm:$0xf] %v3270
      %3395 = vst [vmem:[#allocation3 + $0x140] sm:$0xf] %v3274
      %3396 = vst [vmem:[#allocation3 + $0x164] sm:$0xf] %v3277
      %3397 = vst [vmem:[#allocation3 + $0x188] sm:$0xf] %v3281
      %3398 = vst [vmem:[#allocation3 + $0x1ac] sm:$0xf] %v3284
      %3399 = vst [vmem:[#allocation3 + $0x1d0] sm:$0xf] %v3288
      %3400 = vst [vmem:[#allocation3 + $0x1f4] sm:$0xf] %v3291
      %3401 = vst [vmem:[#allocation3 + $0x218] sm:$0xf] %v3295
      %3402 = vst [vmem:[#allocation3 + $0x23c] sm:$0xf] %v3298
      %3403 = vst [vmem:[#allocation3 + $0x260] sm:$0xf] %v3302
      %3404 = vst [vmem:[#allocation3 + $0x284] sm:$0xf] %v3305
      %3405 = vst [vmem:[#allocation3 + $0x2a8] sm:$0xf] %v3309
      %3406 = vst [vmem:[#allocation3 + $0x2cc] sm:$0xf] %v3312
      %3407 = vst [vmem:[#allocation3 + $0x2f0] sm:$0xf] %v3316
      %3408 = vst [vmem:[#allocation3 + $0x314] sm:$0xf] %v3319
      %3409 = vst [vmem:[#allocation3 + $0x338] sm:$0xf] %v3323
      %3410 = vst [vmem:[#allocation3 + $0x35c] sm:$0xf] %v3326
      %3411 = vst [vmem:[#allocation3 + $0x380] sm:$0xf] %v3330
      %3412 = vst [vmem:[#allocation3 + $0x3a4] sm:$0xf] %v3333
      %3413 = vst [vmem:[#allocation3 + $0x3c8] sm:$0xf] %v3337
      %3414 = vst [vmem:[#allocation3 + $0x3ec] sm:$0xf] %v3340
      %3415 = vst [vmem:[#allocation3 + $0x410] sm:$0xf] %v3344
      %3416 = vst [vmem:[#allocation3 + $0x434] sm:$0xf] %v3347
      %3417 = vst [vmem:[#allocation3 + $0x458] sm:$0xf] %v3351
      %3418 = vst [vmem:[#allocation3 + $0x47c] sm:$0xf] %v3354
      %v3419 = vld [vmem:[#allocation3] sm:$0xff]
      %v3420 = vld [vmem:[#allocation3 + $0x8] sm:$0xff]
      %v3421 = vld [vmem:[#allocation3 + $0x10] sm:$0xff]
      %v3422 = vld [vmem:[#allocation3 + $0x18] sm:$0xff]
      %v3423 = vld [vmem:[#allocation3 + $0x20] sm:$0xf]
      %v3424 = vld [vmem:[#allocation3 + $0x24] sm:$0xff]
      %v3425 = vld [vmem:[#allocation3 + $0x2c] sm:$0xff]
      %v3426 = vld [vmem:[#allocation3 + $0x34] sm:$0xff]
      %v3427 = vld [vmem:[#allocation3 + $0x3c] sm:$0xff]
      %v3428 = vld [vmem:[#allocation3 + $0x44] sm:$0xf]
      %v3429 = vld [vmem:[#allocation3 + $0x48] sm:$0xff]
      %v3430 = vld [vmem:[#allocation3 + $0x50] sm:$0xff]
      %v3431 = vld [vmem:[#allocation3 + $0x58] sm:$0xff]
      %v3432 = vld [vmem:[#allocation3 + $0x60] sm:$0xff]
      %v3433 = vld [vmem:[#allocation3 + $0x68] sm:$0xf]
      %v3434 = vld [vmem:[#allocation3 + $0x6c] sm:$0xff]
      %v3435 = vld [vmem:[#allocation3 + $0x74] sm:$0xff]
      %v3436 = vld [vmem:[#allocation3 + $0x7c] sm:$0xff]
      %v3437 = vld [vmem:[#allocation3 + $0x84] sm:$0xff]
      %v3438 = vld [vmem:[#allocation3 + $0x8c] sm:$0xf]
      %v3439 = vld [vmem:[#allocation3 + $0x90] sm:$0xff]
      %v3440 = vld [vmem:[#allocation3 + $0x98] sm:$0xff]
      %v3441 = vld [vmem:[#allocation3 + $0xa0] sm:$0xff]
      %v3442 = vld [vmem:[#allocation3 + $0xa8] sm:$0xff]
      %v3443 = vld [vmem:[#allocation3 + $0xb0] sm:$0xf]
      %v3444 = vld [vmem:[#allocation3 + $0xb4] sm:$0xff]
      %v3445 = vld [vmem:[#allocation3 + $0xbc] sm:$0xff]
      %v3446 = vld [vmem:[#allocation3 + $0xc4] sm:$0xff]
      %v3447 = vld [vmem:[#allocation3 + $0xcc] sm:$0xff]
      %v3448 = vld [vmem:[#allocation3 + $0xd4] sm:$0xf]
      %v3449 = vld [vmem:[#allocation3 + $0xd8] sm:$0xff]
      %v3450 = vld [vmem:[#allocation3 + $0xe0] sm:$0xff]
      %v3451 = vld [vmem:[#allocation3 + $0xe8] sm:$0xff]
      %v3452 = vld [vmem:[#allocation3 + $0xf0] sm:$0xff]
      %v3453 = vld [vmem:[#allocation3 + $0xf8] sm:$0xf]
      %v3454 = vld [vmem:[#allocation3 + $0xfc] sm:$0xff]
      %v3455 = vld [vmem:[#allocation3 + $0x104] sm:$0xff]
      %v3456 = vld [vmem:[#allocation3 + $0x10c] sm:$0xff]
      %v3457 = vld [vmem:[#allocation3 + $0x114] sm:$0xff]
      %v3458 = vld [vmem:[#allocation3 + $0x11c] sm:$0xf]
      %v3459 = vld [vmem:[#allocation3 + $0x120] sm:$0xff]
      %v3460 = vld [vmem:[#allocation3 + $0x128] sm:$0xff]
      %v3461 = vld [vmem:[#allocation3 + $0x130] sm:$0xff]
      %v3462 = vld [vmem:[#allocation3 + $0x138] sm:$0xff]
      %v3463 = vld [vmem:[#allocation3 + $0x140] sm:$0xf]
      %v3464 = vld [vmem:[#allocation3 + $0x144] sm:$0xff]
      %v3465 = vld [vmem:[#allocation3 + $0x14c] sm:$0xff]
      %v3466 = vld [vmem:[#allocation3 + $0x154] sm:$0xff]
      %v3467 = vld [vmem:[#allocation3 + $0x15c] sm:$0xff]
      %v3468 = vld [vmem:[#allocation3 + $0x164] sm:$0xf]
      %v3469 = vld [vmem:[#allocation3 + $0x168] sm:$0xff]
      %v3470 = vld [vmem:[#allocation3 + $0x170] sm:$0xff]
      %v3471 = vld [vmem:[#allocation3 + $0x178] sm:$0xff]
      %v3472 = vld [vmem:[#allocation3 + $0x180] sm:$0xff]
      %v3473 = vld [vmem:[#allocation3 + $0x188] sm:$0xf]
      %v3474 = vld [vmem:[#allocation3 + $0x18c] sm:$0xff]
      %v3475 = vld [vmem:[#allocation3 + $0x194] sm:$0xff]
      %v3476 = vld [vmem:[#allocation3 + $0x19c] sm:$0xff]
      %v3477 = vld [vmem:[#allocation3 + $0x1a4] sm:$0xff]
      %v3478 = vld [vmem:[#allocation3 + $0x1ac] sm:$0xf]
      %v3479 = vld [vmem:[#allocation3 + $0x1b0] sm:$0xff]
      %v3480 = vld [vmem:[#allocation3 + $0x1b8] sm:$0xff]
      %v3481 = vld [vmem:[#allocation3 + $0x1c0] sm:$0xff]
      %v3482 = vld [vmem:[#allocation3 + $0x1c8] sm:$0xff]
      %v3483 = vld [vmem:[#allocation3 + $0x1d0] sm:$0xf]
      %v3484 = vld [vmem:[#allocation3 + $0x1d4] sm:$0xff]
      %v3485 = vld [vmem:[#allocation3 + $0x1dc] sm:$0xff]
      %v3486 = vld [vmem:[#allocation3 + $0x1e4] sm:$0xff]
      %v3487 = vld [vmem:[#allocation3 + $0x1ec] sm:$0xff]
      %v3488 = vld [vmem:[#allocation3 + $0x1f4] sm:$0xf]
      %v3489 = vld [vmem:[#allocation3 + $0x1f8] sm:$0xff]
      %v3490 = vld [vmem:[#allocation3 + $0x200] sm:$0xff]
      %v3491 = vld [vmem:[#allocation3 + $0x208] sm:$0xff]
      %v3492 = vld [vmem:[#allocation3 + $0x210] sm:$0xff]
      %v3493 = vld [vmem:[#allocation3 + $0x218] sm:$0xf]
      %v3494 = vld [vmem:[#allocation3 + $0x21c] sm:$0xff]
      %v3495 = vld [vmem:[#allocation3 + $0x224] sm:$0xff]
      %v3496 = vld [vmem:[#allocation3 + $0x22c] sm:$0xff]
      %v3497 = vld [vmem:[#allocation3 + $0x234] sm:$0xff]
      %v3498 = vld [vmem:[#allocation3 + $0x23c] sm:$0xf]
      %v3499 = vld [vmem:[#allocation3 + $0x240] sm:$0xff]
      %v3500 = vld [vmem:[#allocation3 + $0x248] sm:$0xff]
      %v3501 = vld [vmem:[#allocation3 + $0x250] sm:$0xff]
      %v3502 = vld [vmem:[#allocation3 + $0x258] sm:$0xff]
      %v3503 = vld [vmem:[#allocation3 + $0x260] sm:$0xf]
      %v3504 = vld [vmem:[#allocation3 + $0x264] sm:$0xff]
      %v3505 = vld [vmem:[#allocation3 + $0x26c] sm:$0xff]
      %v3506 = vld [vmem:[#allocation3 + $0x274] sm:$0xff]
      %v3507 = vld [vmem:[#allocation3 + $0x27c] sm:$0xff]
      %v3508 = vld [vmem:[#allocation3 + $0x284] sm:$0xf]
      %v3509 = vld [vmem:[#allocation3 + $0x288] sm:$0xff]
      %v3510 = vld [vmem:[#allocation3 + $0x290] sm:$0xff]
      %v3511 = vld [vmem:[#allocation3 + $0x298] sm:$0xff]
      %v3512 = vld [vmem:[#allocation3 + $0x2a0] sm:$0xff]
      %v3513 = vld [vmem:[#allocation3 + $0x2a8] sm:$0xf]
      %v3514 = vld [vmem:[#allocation3 + $0x2ac] sm:$0xff]
      %v3515 = vld [vmem:[#allocation3 + $0x2b4] sm:$0xff]
      %v3516 = vld [vmem:[#allocation3 + $0x2bc] sm:$0xff]
      %v3517 = vld [vmem:[#allocation3 + $0x2c4] sm:$0xff]
      %v3518 = vld [vmem:[#allocation3 + $0x2cc] sm:$0xf]
      %v3519 = vld [vmem:[#allocation3 + $0x2d0] sm:$0xff]
      %v3520 = vld [vmem:[#allocation3 + $0x2d8] sm:$0xff]
      %v3521 = vld [vmem:[#allocation3 + $0x2e0] sm:$0xff]
      %v3522 = vld [vmem:[#allocation3 + $0x2e8] sm:$0xff]
      %v3523 = vld [vmem:[#allocation3 + $0x2f0] sm:$0xf]
      %v3524 = vld [vmem:[#allocation3 + $0x2f4] sm:$0xff]
      %v3525 = vld [vmem:[#allocation3 + $0x2fc] sm:$0xff]
      %v3526 = vld [vmem:[#allocation3 + $0x304] sm:$0xff]
      %v3527 = vld [vmem:[#allocation3 + $0x30c] sm:$0xff]
      %v3528 = vld [vmem:[#allocation3 + $0x314] sm:$0xf]
      %v3529 = vld [vmem:[#allocation3 + $0x318] sm:$0xff]
      %v3530 = vld [vmem:[#allocation3 + $0x320] sm:$0xff]
      %v3531 = vld [vmem:[#allocation3 + $0x328] sm:$0xff]
      %v3532 = vld [vmem:[#allocation3 + $0x330] sm:$0xff]
      %v3533 = vld [vmem:[#allocation3 + $0x338] sm:$0xf]
      %v3534 = vld [vmem:[#allocation3 + $0x33c] sm:$0xff]
      %v3535 = vld [vmem:[#allocation3 + $0x344] sm:$0xff]
      %v3536 = vld [vmem:[#allocation3 + $0x34c] sm:$0xff]
      %v3537 = vld [vmem:[#allocation3 + $0x354] sm:$0xff]
      %v3538 = vld [vmem:[#allocation3 + $0x35c] sm:$0xf]
      %v3539 = vld [vmem:[#allocation3 + $0x360] sm:$0xff]
      %v3540 = vld [vmem:[#allocation3 + $0x368] sm:$0xff]
      %v3541 = vld [vmem:[#allocation3 + $0x370] sm:$0xff]
      %v3542 = vld [vmem:[#allocation3 + $0x378] sm:$0xff]
      %v3543 = vld [vmem:[#allocation3 + $0x380] sm:$0xf]
      %v3544 = vld [vmem:[#allocation3 + $0x384] sm:$0xff]
      %v3545 = vld [vmem:[#allocation3 + $0x38c] sm:$0xff]
      %v3546 = vld [vmem:[#allocation3 + $0x394] sm:$0xff]
      %v3547 = vld [vmem:[#allocation3 + $0x39c] sm:$0xff]
      %v3548 = vld [vmem:[#allocation3 + $0x3a4] sm:$0xf]
      %v3549 = vld [vmem:[#allocation3 + $0x3a8] sm:$0xff]
      %v3550 = vld [vmem:[#allocation3 + $0x3b0] sm:$0xff]
      %v3551 = vld [vmem:[#allocation3 + $0x3b8] sm:$0xff]
      %v3552 = vld [vmem:[#allocation3 + $0x3c0] sm:$0xff]
      %v3553 = vld [vmem:[#allocation3 + $0x3c8] sm:$0xf]
      %v3554 = vld [vmem:[#allocation3 + $0x3cc] sm:$0xff]
      %v3555 = vld [vmem:[#allocation3 + $0x3d4] sm:$0xff]
      %v3556 = vld [vmem:[#allocation3 + $0x3dc] sm:$0xff]
      %v3557 = vld [vmem:[#allocation3 + $0x3e4] sm:$0xff]
      %v3558 = vld [vmem:[#allocation3 + $0x3ec] sm:$0xf]
      %v3559 = vld [vmem:[#allocation3 + $0x3f0] sm:$0xff]
      %v3560 = vld [vmem:[#allocation3 + $0x3f8] sm:$0xff]
      %v3561 = vld [vmem:[#allocation3 + $0x400] sm:$0xff]
      %v3562 = vld [vmem:[#allocation3 + $0x408] sm:$0xff]
      %v3563 = vld [vmem:[#allocation3 + $0x410] sm:$0xf]
      %v3564 = vld [vmem:[#allocation3 + $0x414] sm:$0xff]
      %v3565 = vld [vmem:[#allocation3 + $0x41c] sm:$0xff]
      %v3566 = vld [vmem:[#allocation3 + $0x424] sm:$0xff]
      %v3567 = vld [vmem:[#allocation3 + $0x42c] sm:$0xff]
      %v3568 = vld [vmem:[#allocation3 + $0x434] sm:$0xf]
      %v3569 = vld [vmem:[#allocation3 + $0x438] sm:$0xff]
      %v3570 = vld [vmem:[#allocation3 + $0x440] sm:$0xff]
      %v3571 = vld [vmem:[#allocation3 + $0x448] sm:$0xff]
      %v3572 = vld [vmem:[#allocation3 + $0x450] sm:$0xff]
      %v3573 = vld [vmem:[#allocation3 + $0x458] sm:$0xf]
      %v3574 = vld [vmem:[#allocation3 + $0x45c] sm:$0xff]
      %v3575 = vld [vmem:[#allocation3 + $0x464] sm:$0xff]
      %v3576 = vld [vmem:[#allocation3 + $0x46c] sm:$0xff]
      %v3577 = vld [vmem:[#allocation3 + $0x474] sm:$0xff]
      %v3578 = vld [vmem:[#allocation3 + $0x47c] sm:$0xf]
      %v3579 = vld [vmem:[%s1] sm:$0xf]
      %v3580 = vld [vmem:[%s1 + $0x4] sm:$0xf]
      %v3581 = vld [vmem:[%s1 + $0x8] sm:$0xf]
      %v3582 = vld [vmem:[%s1 + $0xc] sm:$0xf]
      %v3583 = vld [vmem:[%s1 + $0x10] sm:$0xf]
      %v3584 = vld [vmem:[%s1 + $0x14] sm:$0xf]
      %v3585 = vld [vmem:[%s1 + $0x18] sm:$0xf]
      %v3586 = vld [vmem:[%s1 + $0x1c] sm:$0xf]
      %v3587 = vld [vmem:[%s1 + $0x20] sm:$0xf]
      %v3588 = vld [vmem:[%s1 + $0x24] sm:$0xf]
      %v3589 = vld [vmem:[%s1 + $0x28] sm:$0xf]
      %v3590 = vld [vmem:[%s1 + $0x2c] sm:$0xf]
      %v3591 = vld [vmem:[%s1 + $0x30] sm:$0xf]
      %v3592 = vld [vmem:[%s1 + $0x34] sm:$0xf]
      %v3593 = vld [vmem:[%s1 + $0x38] sm:$0xf]
      %v3594 = vld [vmem:[%s1 + $0x3c] sm:$0xf]
      %v3595 = vld [vmem:[%s1 + $0x40] sm:$0xf]
      %v3596 = vld [vmem:[%s1 + $0x44] sm:$0xf]
      %v3597 = vld [vmem:[%s1 + $0x48] sm:$0xf]
      %v3598 = vld [vmem:[%s1 + $0x4c] sm:$0xf]
      %v3599 = vld [vmem:[%s1 + $0x50] sm:$0xf]
      %v3600 = vld [vmem:[%s1 + $0x54] sm:$0xf]
      %v3601 = vld [vmem:[%s1 + $0x58] sm:$0xf]
      %v3602 = vld [vmem:[%s1 + $0x5c] sm:$0xf]
      %v3603 = vld [vmem:[%s1 + $0x60] sm:$0xf]
      %v3604 = vld [vmem:[%s1 + $0x64] sm:$0xf]
      %v3605 = vld [vmem:[%s1 + $0x68] sm:$0xf]
      %v3606 = vld [vmem:[%s1 + $0x6c] sm:$0xf]
      %v3607 = vld [vmem:[%s1 + $0x70] sm:$0xf]
      %v3608 = vld [vmem:[%s1 + $0x74] sm:$0xf]
      %v3609 = vld [vmem:[%s1 + $0x78] sm:$0xf]
      %v3610 = vld [vmem:[%s1 + $0x7c] sm:$0xf]
      %v3611 = vld [vmem:[%s1 + $0x80] sm:$0xf]
      %v3612 = vld [vmem:[%s1 + $0x84] sm:$0xf]
      %v3613 = vld [vmem:[%s1 + $0x88] sm:$0xf]
      %v3614 = vld [vmem:[%s1 + $0x8c] sm:$0xf]
      %v3615 = vld [vmem:[%s1 + $0x90] sm:$0xf]
      %v3616 = vld [vmem:[%s1 + $0x94] sm:$0xf]
      %v3617 = vld [vmem:[%s1 + $0x98] sm:$0xf]
      %v3618 = vld [vmem:[%s1 + $0x9c] sm:$0xf]
      %v3619 = vld [vmem:[%s1 + $0xa0] sm:$0xf]
      %v3620 = vld [vmem:[%s1 + $0xa4] sm:$0xf]
      %v3621 = vld [vmem:[%s1 + $0xa8] sm:$0xf]
      %v3622 = vld [vmem:[%s1 + $0xac] sm:$0xf]
      %v3623 = vld [vmem:[%s1 + $0xb0] sm:$0xf]
      %v3624 = vld [vmem:[%s1 + $0xb4] sm:$0xf]
      %v3625 = vld [vmem:[%s1 + $0xb8] sm:$0xf]
      %v3626 = vld [vmem:[%s1 + $0xbc] sm:$0xf]
      %v3627 = vld [vmem:[%s1 + $0xc0] sm:$0xf]
      %v3628 = vld [vmem:[%s1 + $0xc4] sm:$0xf]
      %v3629 = vld [vmem:[%s1 + $0xc8] sm:$0xf]
      %v3630 = vld [vmem:[%s1 + $0xcc] sm:$0xf]
      %v3631 = vld [vmem:[%s1 + $0xd0] sm:$0xf]
      %v3632 = vld [vmem:[%s1 + $0xd4] sm:$0xf]
      %v3633 = vld [vmem:[%s1 + $0xd8] sm:$0xf]
      %v3634 = vld [vmem:[%s1 + $0xdc] sm:$0xf]
      %v3635 = vld [vmem:[%s1 + $0xe0] sm:$0xf]
      %v3636 = vld [vmem:[%s1 + $0xe4] sm:$0xf]
      %v3637 = vld [vmem:[%s1 + $0xe8] sm:$0xf]
      %v3638 = vld [vmem:[%s1 + $0xec] sm:$0xf]
      %v3639 = vld [vmem:[%s1 + $0xf0] sm:$0xf]
      %v3640 = vld [vmem:[%s1 + $0xf4] sm:$0xf]
      %v3641 = vld [vmem:[%s1 + $0xf8] sm:$0xf]
      %v3642 = vld [vmem:[%s1 + $0xfc] sm:$0xf]
      %v3643 = vld [vmem:[%s1 + $0x100] sm:$0xf]
      %v3644 = vld [vmem:[%s1 + $0x104] sm:$0xf]
      %v3645 = vld [vmem:[%s1 + $0x108] sm:$0xf]
      %v3646 = vld [vmem:[%s1 + $0x10c] sm:$0xf]
      %v3647 = vld [vmem:[%s1 + $0x110] sm:$0xf]
      %v3648 = vld [vmem:[%s1 + $0x114] sm:$0xf]
      %v3649 = vld [vmem:[%s1 + $0x118] sm:$0xf]
      %v3650 = vld [vmem:[%s1 + $0x11c] sm:$0xf]
      %v3651 = vld [vmem:[%s1 + $0x120] sm:$0xf]
      %v3652 = vld [vmem:[%s1 + $0x124] sm:$0xf]
      %v3653 = vld [vmem:[%s1 + $0x128] sm:$0xf]
      %v3654 = vld [vmem:[%s1 + $0x12c] sm:$0xf]
      %v3655 = vld [vmem:[%s1 + $0x130] sm:$0xf]
      %v3656 = vld [vmem:[%s1 + $0x134] sm:$0xf]
      %v3657 = vld [vmem:[%s1 + $0x138] sm:$0xf]
      %v3658 = vld [vmem:[%s1 + $0x13c] sm:$0xf]
      %v3659 = vld [vmem:[%s1 + $0x140] sm:$0xf]
      %v3660 = vld [vmem:[%s1 + $0x144] sm:$0xf]
      %v3661 = vld [vmem:[%s1 + $0x148] sm:$0xf]
      %v3662 = vld [vmem:[%s1 + $0x14c] sm:$0xf]
      %v3663 = vld [vmem:[%s1 + $0x150] sm:$0xf]
      %v3664 = vld [vmem:[%s1 + $0x154] sm:$0xf]
      %v3665 = vld [vmem:[%s1 + $0x158] sm:$0xf]
      %v3666 = vld [vmem:[%s1 + $0x15c] sm:$0xf]
      %v3667 = vld [vmem:[%s1 + $0x160] sm:$0xf]
      %v3668 = vld [vmem:[%s1 + $0x164] sm:$0xf]
      %v3669 = vld [vmem:[%s1 + $0x168] sm:$0xf]
      %v3670 = vld [vmem:[%s1 + $0x16c] sm:$0xf]
      %v3671 = vld [vmem:[%s1 + $0x170] sm:$0xf]
      %v3672 = vld [vmem:[%s1 + $0x174] sm:$0xf]
      %v3673 = vld [vmem:[%s1 + $0x178] sm:$0xf]
      %v3674 = vld [vmem:[%s1 + $0x17c] sm:$0xf]
      %v3675 = vld [vmem:[%s1 + $0x180] sm:$0xf]
      %v3676 = vld [vmem:[%s1 + $0x184] sm:$0xf]
      %v3677 = vld [vmem:[%s1 + $0x188] sm:$0xf]
      %v3678 = vld [vmem:[%s1 + $0x18c] sm:$0xf]
      %v3679 = vld [vmem:[%s1 + $0x190] sm:$0xf]
      %v3680 = vld [vmem:[%s1 + $0x194] sm:$0xf]
      %v3681 = vld [vmem:[%s1 + $0x198] sm:$0xf]
      %v3682 = vld [vmem:[%s1 + $0x19c] sm:$0xf]
      %v3683 = vld [vmem:[%s1 + $0x1a0] sm:$0xf]
      %v3684 = vld [vmem:[%s1 + $0x1a4] sm:$0xf]
      %v3685 = vld [vmem:[%s1 + $0x1a8] sm:$0xf]
      %v3686 = vld [vmem:[%s1 + $0x1ac] sm:$0xf]
      %v3687 = vld [vmem:[%s1 + $0x1b0] sm:$0xf]
      %v3688 = vld [vmem:[%s1 + $0x1b4] sm:$0xf]
      %v3689 = vld [vmem:[%s1 + $0x1b8] sm:$0xf]
      %v3690 = vld [vmem:[%s1 + $0x1bc] sm:$0xf]
      %v3691 = vld [vmem:[%s1 + $0x1c0] sm:$0xf]
      %v3692 = vld [vmem:[%s1 + $0x1c4] sm:$0xf]
      %v3693 = vld [vmem:[%s1 + $0x1c8] sm:$0xf]
      %v3694 = vld [vmem:[%s1 + $0x1cc] sm:$0xf]
      %v3695 = vld [vmem:[%s1 + $0x1d0] sm:$0xf]
      %v3696 = vld [vmem:[%s1 + $0x1d4] sm:$0xf]
      %v3697 = vld [vmem:[%s1 + $0x1d8] sm:$0xf]
      %v3698 = vld [vmem:[%s1 + $0x1dc] sm:$0xf]
      %v3699 = vld [vmem:[%s1 + $0x1e0] sm:$0xf]
      %v3700 = vld [vmem:[%s1 + $0x1e4] sm:$0xf]
      %v3701 = vld [vmem:[%s1 + $0x1e8] sm:$0xf]
      %v3702 = vld [vmem:[%s1 + $0x1ec] sm:$0xf]
      %v3703 = vld [vmem:[%s1 + $0x1f0] sm:$0xf]
      %v3704 = vld [vmem:[%s1 + $0x1f4] sm:$0xf]
      %v3705 = vld [vmem:[%s1 + $0x1f8] sm:$0xf]
      %v3706 = vld [vmem:[%s1 + $0x1fc] sm:$0xf]
      %v3707 = vld [vmem:[%s1 + $0x200] sm:$0xf]
      %v3708 = vld [vmem:[%s1 + $0x204] sm:$0xf]
      %v3709 = vld [vmem:[%s1 + $0x208] sm:$0xf]
      %v3710 = vld [vmem:[%s1 + $0x20c] sm:$0xf]
      %v3711 = vld [vmem:[%s1 + $0x210] sm:$0xf]
      %v3712 = vld [vmem:[%s1 + $0x214] sm:$0xf]
      %v3713 = vld [vmem:[%s1 + $0x218] sm:$0xf]
      %v3714 = vld [vmem:[%s1 + $0x21c] sm:$0xf]
      %v3715 = vld [vmem:[%s1 + $0x220] sm:$0xf]
      %v3716 = vld [vmem:[%s1 + $0x224] sm:$0xf]
      %v3717 = vld [vmem:[%s1 + $0x228] sm:$0xf]
      %v3718 = vld [vmem:[%s1 + $0x22c] sm:$0xf]
      %v3719 = vld [vmem:[%s1 + $0x230] sm:$0xf]
      %v3720 = vld [vmem:[%s1 + $0x234] sm:$0xf]
      %v3721 = vld [vmem:[%s1 + $0x238] sm:$0xf]
      %v3722 = vld [vmem:[%s1 + $0x23c] sm:$0xf]
      %v3723 = vld [vmem:[%s3] sm:$0x1]
      %v3724 = vld [vmem:[%s3 + $0x1] sm:$0x1]
      %v3725 = vlaneseq
      %v3726 = vshrl.u32 %v3725, 7
      %v3727 = vsub.s32 0, %v3726
      %v3728 = vrot.slane %v3723, %v3727
      %v3889 = vunpack.c.l.b16 %v3419
      %v3890 = vunpack.c.h.b16 %v3419
      %v3891 = vunpack.c.l.b16 %v3420
      %v3892 = vunpack.c.h.b16 %v3420
      %v3893 = vunpack.c.l.b16 %v3421
      %v3894 = vunpack.c.h.b16 %v3421
      %v3895 = vunpack.c.l.b16 %v3422
      %v3896 = vunpack.c.h.b16 %v3422
      %v3897 = vunpack.c.l.b16 %v3423
      %v3898 = vunpack.c.l.b16 %v3424
      %v3899 = vunpack.c.h.b16 %v3424
      %v3900 = vunpack.c.l.b16 %v3425
      %v3901 = vunpack.c.h.b16 %v3425
      %v3902 = vunpack.c.l.b16 %v3426
      %v3903 = vunpack.c.h.b16 %v3426
      %v3904 = vunpack.c.l.b16 %v3427
      %v3905 = vunpack.c.h.b16 %v3427
      %v3906 = vunpack.c.l.b16 %v3428
      %v3907 = vunpack.c.l.b16 %v3429
      %v3908 = vunpack.c.h.b16 %v3429
      %v3909 = vunpack.c.l.b16 %v3430
      %v3910 = vunpack.c.h.b16 %v3430
      %v3911 = vunpack.c.l.b16 %v3431
      %v3912 = vunpack.c.h.b16 %v3431
      %v3913 = vunpack.c.l.b16 %v3432
      %v3914 = vunpack.c.h.b16 %v3432
      %v3915 = vunpack.c.l.b16 %v3433
      %v3916 = vunpack.c.l.b16 %v3434
      %v3917 = vunpack.c.h.b16 %v3434
      %v3918 = vunpack.c.l.b16 %v3435
      %v3919 = vunpack.c.h.b16 %v3435
      %v3920 = vunpack.c.l.b16 %v3436
      %v3921 = vunpack.c.h.b16 %v3436
      %v3922 = vunpack.c.l.b16 %v3437
      %v3923 = vunpack.c.h.b16 %v3437
      %v3924 = vunpack.c.l.b16 %v3438
      %v3925 = vunpack.c.l.b16 %v3439
      %v3926 = vunpack.c.h.b16 %v3439
      %v3927 = vunpack.c.l.b16 %v3440
      %v3928 = vunpack.c.h.b16 %v3440
      %v3929 = vunpack.c.l.b16 %v3441
      %v3930 = vunpack.c.h.b16 %v3441
      %v3931 = vunpack.c.l.b16 %v3442
      %v3932 = vunpack.c.h.b16 %v3442
      %v3933 = vunpack.c.l.b16 %v3443
      %v3934 = vunpack.c.l.b16 %v3444
      %v3935 = vunpack.c.h.b16 %v3444
      %v3936 = vunpack.c.l.b16 %v3445
      %v3937 = vunpack.c.h.b16 %v3445
      %v3938 = vunpack.c.l.b16 %v3446
      %v3939 = vunpack.c.h.b16 %v3446
      %v3940 = vunpack.c.l.b16 %v3447
      %v3941 = vunpack.c.h.b16 %v3447
      %v3942 = vunpack.c.l.b16 %v3448
      %v3943 = vunpack.c.l.b16 %v3449
      %v3944 = vunpack.c.h.b16 %v3449
      %v3945 = vunpack.c.l.b16 %v3450
      %v3946 = vunpack.c.h.b16 %v3450
      %v3947 = vunpack.c.l.b16 %v3451
      %v3948 = vunpack.c.h.b16 %v3451
      %v3949 = vunpack.c.l.b16 %v3452
      %v3950 = vunpack.c.h.b16 %v3452
      %v3951 = vunpack.c.l.b16 %v3453
      %v3952 = vunpack.c.l.b16 %v3454
      %v3953 = vunpack.c.h.b16 %v3454
      %v3954 = vunpack.c.l.b16 %v3455
      %v3955 = vunpack.c.h.b16 %v3455
      %v3956 = vunpack.c.l.b16 %v3456
      %v3957 = vunpack.c.h.b16 %v3456
      %v3958 = vunpack.c.l.b16 %v3457
      %v3959 = vunpack.c.h.b16 %v3457
      %v3960 = vunpack.c.l.b16 %v3458
      %v3961 = vunpack.c.l.b16 %v3459
      %v3962 = vunpack.c.h.b16 %v3459
      %v3963 = vunpack.c.l.b16 %v3460
      %v3964 = vunpack.c.h.b16 %v3460
      %v3965 = vunpack.c.l.b16 %v3461
      %v3966 = vunpack.c.h.b16 %v3461
      %v3967 = vunpack.c.l.b16 %v3462
      %v3968 = vunpack.c.h.b16 %v3462
      %v3969 = vunpack.c.l.b16 %v3463
      %v3970 = vunpack.c.l.b16 %v3464
      %v3971 = vunpack.c.h.b16 %v3464
      %v3972 = vunpack.c.l.b16 %v3465
      %v3973 = vunpack.c.h.b16 %v3465
      %v3974 = vunpack.c.l.b16 %v3466
      %v3975 = vunpack.c.h.b16 %v3466
      %v3976 = vunpack.c.l.b16 %v3467
      %v3977 = vunpack.c.h.b16 %v3467
      %v3978 = vunpack.c.l.b16 %v3468
      %v3979 = vunpack.c.l.b16 %v3469
      %v3980 = vunpack.c.h.b16 %v3469
      %v3981 = vunpack.c.l.b16 %v3470
      %v3982 = vunpack.c.h.b16 %v3470
      %v3983 = vunpack.c.l.b16 %v3471
      %v3984 = vunpack.c.h.b16 %v3471
      %v3985 = vunpack.c.l.b16 %v3472
      %v3986 = vunpack.c.h.b16 %v3472
      %v3987 = vunpack.c.l.b16 %v3473
      %v3988 = vunpack.c.l.b16 %v3474
      %v3989 = vunpack.c.h.b16 %v3474
      %v3990 = vunpack.c.l.b16 %v3475
      %v3991 = vunpack.c.h.b16 %v3475
      %v3992 = vunpack.c.l.b16 %v3476
      %v3993 = vunpack.c.h.b16 %v3476
      %v3994 = vunpack.c.l.b16 %v3477
      %v3995 = vunpack.c.h.b16 %v3477
      %v3996 = vunpack.c.l.b16 %v3478
      %v3997 = vunpack.c.l.b16 %v3479
      %v3998 = vunpack.c.h.b16 %v3479
      %v3999 = vunpack.c.l.b16 %v3480
      %v4000 = vunpack.c.h.b16 %v3480
      %v4001 = vunpack.c.l.b16 %v3481
      %v4002 = vunpack.c.h.b16 %v3481
      %v4003 = vunpack.c.l.b16 %v3482
      %v4004 = vunpack.c.h.b16 %v3482
      %v4005 = vunpack.c.l.b16 %v3483
      %v4006 = vunpack.c.l.b16 %v3484
      %v4007 = vunpack.c.h.b16 %v3484
      %v4008 = vunpack.c.l.b16 %v3485
      %v4009 = vunpack.c.h.b16 %v3485
      %v4010 = vunpack.c.l.b16 %v3486
      %v4011 = vunpack.c.h.b16 %v3486
      %v4012 = vunpack.c.l.b16 %v3487
      %v4013 = vunpack.c.h.b16 %v3487
      %v4014 = vunpack.c.l.b16 %v3488
      %v4015 = vunpack.c.l.b16 %v3489
      %v4016 = vunpack.c.h.b16 %v3489
      %v4017 = vunpack.c.l.b16 %v3490
      %v4018 = vunpack.c.h.b16 %v3490
      %v4019 = vunpack.c.l.b16 %v3491
      %v4020 = vunpack.c.h.b16 %v3491
      %v4021 = vunpack.c.l.b16 %v3492
      %v4022 = vunpack.c.h.b16 %v3492
      %v4023 = vunpack.c.l.b16 %v3493
      %v4024 = vunpack.c.l.b16 %v3494
      %v4025 = vunpack.c.h.b16 %v3494
      %v4026 = vunpack.c.l.b16 %v3495
      %v4027 = vunpack.c.h.b16 %v3495
      %v4028 = vunpack.c.l.b16 %v3496
      %v4029 = vunpack.c.h.b16 %v3496
      %v4030 = vunpack.c.l.b16 %v3497
      %v4031 = vunpack.c.h.b16 %v3497
      %v4032 = vunpack.c.l.b16 %v3498
      %v4033 = vunpack.c.l.b16 %v3499
      %v4034 = vunpack.c.h.b16 %v3499
      %v4035 = vunpack.c.l.b16 %v3500
      %v4036 = vunpack.c.h.b16 %v3500
      %v4037 = vunpack.c.l.b16 %v3501
      %v4038 = vunpack.c.h.b16 %v3501
      %v4039 = vunpack.c.l.b16 %v3502
      %v4040 = vunpack.c.h.b16 %v3502
      %v4041 = vunpack.c.l.b16 %v3503
      %v4042 = vunpack.c.l.b16 %v3504
      %v4043 = vunpack.c.h.b16 %v3504
      %v4044 = vunpack.c.l.b16 %v3505
      %v4045 = vunpack.c.h.b16 %v3505
      %v4046 = vunpack.c.l.b16 %v3506
      %v4047 = vunpack.c.h.b16 %v3506
      %v4048 = vunpack.c.l.b16 %v3507
      %v4049 = vunpack.c.h.b16 %v3507
      %v4050 = vunpack.c.l.b16 %v3508
      %v4051 = vunpack.c.l.b16 %v3509
      %v4052 = vunpack.c.h.b16 %v3509
      %v4053 = vunpack.c.l.b16 %v3510
      %v4054 = vunpack.c.h.b16 %v3510
      %v4055 = vunpack.c.l.b16 %v3511
      %v4056 = vunpack.c.h.b16 %v3511
      %v4057 = vunpack.c.l.b16 %v3512
      %v4058 = vunpack.c.h.b16 %v3512
      %v4059 = vunpack.c.l.b16 %v3513
      %v4060 = vunpack.c.l.b16 %v3514
      %v4061 = vunpack.c.h.b16 %v3514
      %v4062 = vunpack.c.l.b16 %v3515
      %v4063 = vunpack.c.h.b16 %v3515
      %v4064 = vunpack.c.l.b16 %v3516
      %v4065 = vunpack.c.h.b16 %v3516
      %v4066 = vunpack.c.l.b16 %v3517
      %v4067 = vunpack.c.h.b16 %v3517
      %v4068 = vunpack.c.l.b16 %v3518
      %v4069 = vunpack.c.l.b16 %v3519
      %v4070 = vunpack.c.h.b16 %v3519
      %v4071 = vunpack.c.l.b16 %v3520
      %v4072 = vunpack.c.h.b16 %v3520
      %v4073 = vunpack.c.l.b16 %v3521
      %v4074 = vunpack.c.h.b16 %v3521
      %v4075 = vunpack.c.l.b16 %v3522
      %v4076 = vunpack.c.h.b16 %v3522
      %v4077 = vunpack.c.l.b16 %v3523
      %v4078 = vunpack.c.l.b16 %v3524
      %v4079 = vunpack.c.h.b16 %v3524
      %v4080 = vunpack.c.l.b16 %v3525
      %v4081 = vunpack.c.h.b16 %v3525
      %v4082 = vunpack.c.l.b16 %v3526
      %v4083 = vunpack.c.h.b16 %v3526
      %v4084 = vunpack.c.l.b16 %v3527
      %v4085 = vunpack.c.h.b16 %v3527
      %v4086 = vunpack.c.l.b16 %v3528
      %v4087 = vunpack.c.l.b16 %v3529
      %v4088 = vunpack.c.h.b16 %v3529
      %v4089 = vunpack.c.l.b16 %v3530
      %v4090 = vunpack.c.h.b16 %v3530
      %v4091 = vunpack.c.l.b16 %v3531
      %v4092 = vunpack.c.h.b16 %v3531
      %v4093 = vunpack.c.l.b16 %v3532
      %v4094 = vunpack.c.h.b16 %v3532
      %v4095 = vunpack.c.l.b16 %v3533
      %v4096 = vunpack.c.l.b16 %v3534
      %v4097 = vunpack.c.h.b16 %v3534
      %v4098 = vunpack.c.l.b16 %v3535
      %v4099 = vunpack.c.h.b16 %v3535
      %v4100 = vunpack.c.l.b16 %v3536
      %v4101 = vunpack.c.h.b16 %v3536
      %v4102 = vunpack.c.l.b16 %v3537
      %v4103 = vunpack.c.h.b16 %v3537
      %v4104 = vunpack.c.l.b16 %v3538
      %v4105 = vunpack.c.l.b16 %v3539
      %v4106 = vunpack.c.h.b16 %v3539
      %v4107 = vunpack.c.l.b16 %v3540
      %v4108 = vunpack.c.h.b16 %v3540
      %v4109 = vunpack.c.l.b16 %v3541
      %v4110 = vunpack.c.h.b16 %v3541
      %v4111 = vunpack.c.l.b16 %v3542
      %v4112 = vunpack.c.h.b16 %v3542
      %v4113 = vunpack.c.l.b16 %v3543
      %v4114 = vunpack.c.l.b16 %v3544
      %v4115 = vunpack.c.h.b16 %v3544
      %v4116 = vunpack.c.l.b16 %v3545
      %v4117 = vunpack.c.h.b16 %v3545
      %v4118 = vunpack.c.l.b16 %v3546
      %v4119 = vunpack.c.h.b16 %v3546
      %v4120 = vunpack.c.l.b16 %v3547
      %v4121 = vunpack.c.h.b16 %v3547
      %v4122 = vunpack.c.l.b16 %v3548
      %v4123 = vunpack.c.l.b16 %v3549
      %v4124 = vunpack.c.h.b16 %v3549
      %v4125 = vunpack.c.l.b16 %v3550
      %v4126 = vunpack.c.h.b16 %v3550
      %v4127 = vunpack.c.l.b16 %v3551
      %v4128 = vunpack.c.h.b16 %v3551
      %v4129 = vunpack.c.l.b16 %v3552
      %v4130 = vunpack.c.h.b16 %v3552
      %v4131 = vunpack.c.l.b16 %v3553
      %v4132 = vunpack.c.l.b16 %v3554
      %v4133 = vunpack.c.h.b16 %v3554
      %v4134 = vunpack.c.l.b16 %v3555
      %v4135 = vunpack.c.h.b16 %v3555
      %v4136 = vunpack.c.l.b16 %v3556
      %v4137 = vunpack.c.h.b16 %v3556
      %v4138 = vunpack.c.l.b16 %v3557
      %v4139 = vunpack.c.h.b16 %v3557
      %v4140 = vunpack.c.l.b16 %v3558
      %v4141 = vunpack.c.l.b16 %v3559
      %v4142 = vunpack.c.h.b16 %v3559
      %v4143 = vunpack.c.l.b16 %v3560
      %v4144 = vunpack.c.h.b16 %v3560
      %v4145 = vunpack.c.l.b16 %v3561
      %v4146 = vunpack.c.h.b16 %v3561
      %v4147 = vunpack.c.l.b16 %v3562
      %v4148 = vunpack.c.h.b16 %v3562
      %v4149 = vunpack.c.l.b16 %v3563
      %v4150 = vunpack.c.l.b16 %v3564
      %v4151 = vunpack.c.h.b16 %v3564
      %v4152 = vunpack.c.l.b16 %v3565
      %v4153 = vunpack.c.h.b16 %v3565
      %v4154 = vunpack.c.l.b16 %v3566
      %v4155 = vunpack.c.h.b16 %v3566
      %v4156 = vunpack.c.l.b16 %v3567
      %v4157 = vunpack.c.h.b16 %v3567
      %v4158 = vunpack.c.l.b16 %v3568
      %v4159 = vunpack.c.l.b16 %v3569
      %v4160 = vunpack.c.h.b16 %v3569
      %v4161 = vunpack.c.l.b16 %v3570
      %v4162 = vunpack.c.h.b16 %v3570
      %v4163 = vunpack.c.l.b16 %v3571
      %v4164 = vunpack.c.h.b16 %v3571
      %v4165 = vunpack.c.l.b16 %v3572
      %v4166 = vunpack.c.h.b16 %v3572
      %v4167 = vunpack.c.l.b16 %v3573
      %v4168 = vunpack.c.l.b16 %v3574
      %v4169 = vunpack.c.h.b16 %v3574
      %v4170 = vunpack.c.l.b16 %v3575
      %v4171 = vunpack.c.h.b16 %v3575
      %v4172 = vunpack.c.l.b16 %v3576
      %v4173 = vunpack.c.h.b16 %v3576
      %v4174 = vunpack.c.l.b16 %v3577
      %v4175 = vunpack.c.h.b16 %v3577
      %v4176 = vunpack.c.l.b16 %v3578
      %v4177 = vpack.c.b16 %v3898, %v3889
      %v4178 = vpack.c.b16 %v3899, %v3890
      %v4179 = vpack.c.b16 %v3900, %v3891
      %v4180 = vpack.c.b16 %v3901, %v3892
      %v4181 = vpack.c.b16 %v3902, %v3893
      %v4182 = vpack.c.b16 %v3903, %v3894
      %v4183 = vpack.c.b16 %v3904, %v3895
      %v4184 = vpack.c.b16 %v3905, %v3896
      %v4185 = vpack.c.b16 %v3906, %v3897
      %v4186 = vpack.c.b16 %v3916, %v3907
      %v4187 = vpack.c.b16 %v3917, %v3908
      %v4188 = vpack.c.b16 %v3918, %v3909
      %v4189 = vpack.c.b16 %v3919, %v3910
      %v4190 = vpack.c.b16 %v3920, %v3911
      %v4191 = vpack.c.b16 %v3921, %v3912
      %v4192 = vpack.c.b16 %v3922, %v3913
      %v4193 = vpack.c.b16 %v3923, %v3914
      %v4194 = vpack.c.b16 %v3924, %v3915
      %v4195 = vpack.c.b16 %v3934, %v3925
      %v4196 = vpack.c.b16 %v3935, %v3926
      %v4197 = vpack.c.b16 %v3936, %v3927
      %v4198 = vpack.c.b16 %v3937, %v3928
      %v4199 = vpack.c.b16 %v3938, %v3929
      %v4200 = vpack.c.b16 %v3939, %v3930
      %v4201 = vpack.c.b16 %v3940, %v3931
      %v4202 = vpack.c.b16 %v3941, %v3932
      %v4203 = vpack.c.b16 %v3942, %v3933
      %v4204 = vpack.c.b16 %v3952, %v3943
      %v4205 = vpack.c.b16 %v3953, %v3944
      %v4206 = vpack.c.b16 %v3954, %v3945
      %v4207 = vpack.c.b16 %v3955, %v3946
      %v4208 = vpack.c.b16 %v3956, %v3947
      %v4209 = vpack.c.b16 %v3957, %v3948
      %v4210 = vpack.c.b16 %v3958, %v3949
      %v4211 = vpack.c.b16 %v3959, %v3950
      %v4212 = vpack.c.b16 %v3960, %v3951
      %v4213 = vpack.c.b16 %v3970, %v3961
      %v4214 = vpack.c.b16 %v3971, %v3962
      %v4215 = vpack.c.b16 %v3972, %v3963
      %v4216 = vpack.c.b16 %v3973, %v3964
      %v4217 = vpack.c.b16 %v3974, %v3965
      %v4218 = vpack.c.b16 %v3975, %v3966
      %v4219 = vpack.c.b16 %v3976, %v3967
      %v4220 = vpack.c.b16 %v3977, %v3968
      %v4221 = vpack.c.b16 %v3978, %v3969
      %v4222 = vpack.c.b16 %v3988, %v3979
      %v4223 = vpack.c.b16 %v3989, %v3980
      %v4224 = vpack.c.b16 %v3990, %v3981
      %v4225 = vpack.c.b16 %v3991, %v3982
      %v4226 = vpack.c.b16 %v3992, %v3983
      %v4227 = vpack.c.b16 %v3993, %v3984
      %v4228 = vpack.c.b16 %v3994, %v3985
      %v4229 = vpack.c.b16 %v3995, %v3986
      %v4230 = vpack.c.b16 %v3996, %v3987
      %v4231 = vpack.c.b16 %v4006, %v3997
      %v4232 = vpack.c.b16 %v4007, %v3998
      %v4233 = vpack.c.b16 %v4008, %v3999
      %v4234 = vpack.c.b16 %v4009, %v4000
      %v4235 = vpack.c.b16 %v4010, %v4001
      %v4236 = vpack.c.b16 %v4011, %v4002
      %v4237 = vpack.c.b16 %v4012, %v4003
      %v4238 = vpack.c.b16 %v4013, %v4004
      %v4239 = vpack.c.b16 %v4014, %v4005
      %v4240 = vpack.c.b16 %v4024, %v4015
      %v4241 = vpack.c.b16 %v4025, %v4016
      %v4242 = vpack.c.b16 %v4026, %v4017
      %v4243 = vpack.c.b16 %v4027, %v4018
      %v4244 = vpack.c.b16 %v4028, %v4019
      %v4245 = vpack.c.b16 %v4029, %v4020
      %v4246 = vpack.c.b16 %v4030, %v4021
      %v4247 = vpack.c.b16 %v4031, %v4022
      %v4248 = vpack.c.b16 %v4032, %v4023
      %v4249 = vpack.c.b16 %v4042, %v4033
      %v4250 = vpack.c.b16 %v4043, %v4034
      %v4251 = vpack.c.b16 %v4044, %v4035
      %v4252 = vpack.c.b16 %v4045, %v4036
      %v4253 = vpack.c.b16 %v4046, %v4037
      %v4254 = vpack.c.b16 %v4047, %v4038
      %v4255 = vpack.c.b16 %v4048, %v4039
      %v4256 = vpack.c.b16 %v4049, %v4040
      %v4257 = vpack.c.b16 %v4050, %v4041
      %v4258 = vpack.c.b16 %v4060, %v4051
      %v4259 = vpack.c.b16 %v4061, %v4052
      %v4260 = vpack.c.b16 %v4062, %v4053
      %v4261 = vpack.c.b16 %v4063, %v4054
      %v4262 = vpack.c.b16 %v4064, %v4055
      %v4263 = vpack.c.b16 %v4065, %v4056
      %v4264 = vpack.c.b16 %v4066, %v4057
      %v4265 = vpack.c.b16 %v4067, %v4058
      %v4266 = vpack.c.b16 %v4068, %v4059
      %v4267 = vpack.c.b16 %v4078, %v4069
      %v4268 = vpack.c.b16 %v4079, %v4070
      %v4269 = vpack.c.b16 %v4080, %v4071
      %v4270 = vpack.c.b16 %v4081, %v4072
      %v4271 = vpack.c.b16 %v4082, %v4073
      %v4272 = vpack.c.b16 %v4083, %v4074
      %v4273 = vpack.c.b16 %v4084, %v4075
      %v4274 = vpack.c.b16 %v4085, %v4076
      %v4275 = vpack.c.b16 %v4086, %v4077
      %v4276 = vpack.c.b16 %v4096, %v4087
      %v4277 = vpack.c.b16 %v4097, %v4088
      %v4278 = vpack.c.b16 %v4098, %v4089
      %v4279 = vpack.c.b16 %v4099, %v4090
      %v4280 = vpack.c.b16 %v4100, %v4091
      %v4281 = vpack.c.b16 %v4101, %v4092
      %v4282 = vpack.c.b16 %v4102, %v4093
      %v4283 = vpack.c.b16 %v4103, %v4094
      %v4284 = vpack.c.b16 %v4104, %v4095
      %v4285 = vpack.c.b16 %v4114, %v4105
      %v4286 = vpack.c.b16 %v4115, %v4106
      %v4287 = vpack.c.b16 %v4116, %v4107
      %v4288 = vpack.c.b16 %v4117, %v4108
      %v4289 = vpack.c.b16 %v4118, %v4109
      %v4290 = vpack.c.b16 %v4119, %v4110
      %v4291 = vpack.c.b16 %v4120, %v4111
      %v4292 = vpack.c.b16 %v4121, %v4112
      %v4293 = vpack.c.b16 %v4122, %v4113
      %v4294 = vpack.c.b16 %v4132, %v4123
      %v4295 = vpack.c.b16 %v4133, %v4124
      %v4296 = vpack.c.b16 %v4134, %v4125
      %v4297 = vpack.c.b16 %v4135, %v4126
      %v4298 = vpack.c.b16 %v4136, %v4127
      %v4299 = vpack.c.b16 %v4137, %v4128
      %v4300 = vpack.c.b16 %v4138, %v4129
      %v4301 = vpack.c.b16 %v4139, %v4130
      %v4302 = vpack.c.b16 %v4140, %v4131
      %v4303 = vpack.c.b16 %v4150, %v4141
      %v4304 = vpack.c.b16 %v4151, %v4142
      %v4305 = vpack.c.b16 %v4152, %v4143
      %v4306 = vpack.c.b16 %v4153, %v4144
      %v4307 = vpack.c.b16 %v4154, %v4145
      %v4308 = vpack.c.b16 %v4155, %v4146
      %v4309 = vpack.c.b16 %v4156, %v4147
      %v4310 = vpack.c.b16 %v4157, %v4148
      %v4311 = vpack.c.b16 %v4158, %v4149
      %v4312 = vpack.c.b16 %v4168, %v4159
      %v4313 = vpack.c.b16 %v4169, %v4160
      %v4314 = vpack.c.b16 %v4170, %v4161
      %v4315 = vpack.c.b16 %v4171, %v4162
      %v4316 = vpack.c.b16 %v4172, %v4163
      %v4317 = vpack.c.b16 %v4173, %v4164
      %v4318 = vpack.c.b16 %v4174, %v4165
      %v4319 = vpack.c.b16 %v4175, %v4166
      %v4320 = vpack.c.b16 %v4176, %v4167
      %v4609 = vunpack.c.l.b16 %v3579
      %v4610 = vunpack.c.l.b16 %v3580
      %v4611 = vunpack.c.l.b16 %v3581
      %v4612 = vunpack.c.l.b16 %v3582
      %v4613 = vunpack.c.l.b16 %v3583
      %v4614 = vunpack.c.l.b16 %v3584
      %v4615 = vunpack.c.l.b16 %v3585
      %v4616 = vunpack.c.l.b16 %v3586
      %v4617 = vunpack.c.l.b16 %v3587
      %v4618 = vunpack.c.l.b16 %v3588
      %v4619 = vunpack.c.l.b16 %v3589
      %v4620 = vunpack.c.l.b16 %v3590
      %v4621 = vunpack.c.l.b16 %v3591
      %v4622 = vunpack.c.l.b16 %v3592
      %v4623 = vunpack.c.l.b16 %v3593
      %v4624 = vunpack.c.l.b16 %v3594
      %v4625 = vunpack.c.l.b16 %v3595
      %v4626 = vunpack.c.l.b16 %v3596
      %v4627 = vunpack.c.l.b16 %v3597
      %v4628 = vunpack.c.l.b16 %v3598
      %v4629 = vunpack.c.l.b16 %v3599
      %v4630 = vunpack.c.l.b16 %v3600
      %v4631 = vunpack.c.l.b16 %v3601
      %v4632 = vunpack.c.l.b16 %v3602
      %v4633 = vunpack.c.l.b16 %v3603
      %v4634 = vunpack.c.l.b16 %v3604
      %v4635 = vunpack.c.l.b16 %v3605
      %v4636 = vunpack.c.l.b16 %v3606
      %v4637 = vunpack.c.l.b16 %v3607
      %v4638 = vunpack.c.l.b16 %v3608
      %v4639 = vunpack.c.l.b16 %v3609
      %v4640 = vunpack.c.l.b16 %v3610
      %v4641 = vunpack.c.l.b16 %v3611
      %v4642 = vunpack.c.l.b16 %v3612
      %v4643 = vunpack.c.l.b16 %v3613
      %v4644 = vunpack.c.l.b16 %v3614
      %v4645 = vunpack.c.l.b16 %v3615
      %v4646 = vunpack.c.l.b16 %v3616
      %v4647 = vunpack.c.l.b16 %v3617
      %v4648 = vunpack.c.l.b16 %v3618
      %v4649 = vunpack.c.l.b16 %v3619
      %v4650 = vunpack.c.l.b16 %v3620
      %v4651 = vunpack.c.l.b16 %v3621
      %v4652 = vunpack.c.l.b16 %v3622
      %v4653 = vunpack.c.l.b16 %v3623
      %v4654 = vunpack.c.l.b16 %v3624
      %v4655 = vunpack.c.l.b16 %v3625
      %v4656 = vunpack.c.l.b16 %v3626
      %v4657 = vunpack.c.l.b16 %v3627
      %v4658 = vunpack.c.l.b16 %v3628
      %v4659 = vunpack.c.l.b16 %v3629
      %v4660 = vunpack.c.l.b16 %v3630
      %v4661 = vunpack.c.l.b16 %v3631
      %v4662 = vunpack.c.l.b16 %v3632
      %v4663 = vunpack.c.l.b16 %v3633
      %v4664 = vunpack.c.l.b16 %v3634
      %v4665 = vunpack.c.l.b16 %v3635
      %v4666 = vunpack.c.l.b16 %v3636
      %v4667 = vunpack.c.l.b16 %v3637
      %v4668 = vunpack.c.l.b16 %v3638
      %v4669 = vunpack.c.l.b16 %v3639
      %v4670 = vunpack.c.l.b16 %v3640
      %v4671 = vunpack.c.l.b16 %v3641
      %v4672 = vunpack.c.l.b16 %v3642
      %v4673 = vunpack.c.l.b16 %v3643
      %v4674 = vunpack.c.l.b16 %v3644
      %v4675 = vunpack.c.l.b16 %v3645
      %v4676 = vunpack.c.l.b16 %v3646
      %v4677 = vunpack.c.l.b16 %v3647
      %v4678 = vunpack.c.l.b16 %v3648
      %v4679 = vunpack.c.l.b16 %v3649
      %v4680 = vunpack.c.l.b16 %v3650
      %v4681 = vunpack.c.l.b16 %v3651
      %v4682 = vunpack.c.l.b16 %v3652
      %v4683 = vunpack.c.l.b16 %v3653
      %v4684 = vunpack.c.l.b16 %v3654
      %v4685 = vunpack.c.l.b16 %v3655
      %v4686 = vunpack.c.l.b16 %v3656
      %v4687 = vunpack.c.l.b16 %v3657
      %v4688 = vunpack.c.l.b16 %v3658
      %v4689 = vunpack.c.l.b16 %v3659
      %v4690 = vunpack.c.l.b16 %v3660
      %v4691 = vunpack.c.l.b16 %v3661
      %v4692 = vunpack.c.l.b16 %v3662
      %v4693 = vunpack.c.l.b16 %v3663
      %v4694 = vunpack.c.l.b16 %v3664
      %v4695 = vunpack.c.l.b16 %v3665
      %v4696 = vunpack.c.l.b16 %v3666
      %v4697 = vunpack.c.l.b16 %v3667
      %v4698 = vunpack.c.l.b16 %v3668
      %v4699 = vunpack.c.l.b16 %v3669
      %v4700 = vunpack.c.l.b16 %v3670
      %v4701 = vunpack.c.l.b16 %v3671
      %v4702 = vunpack.c.l.b16 %v3672
      %v4703 = vunpack.c.l.b16 %v3673
      %v4704 = vunpack.c.l.b16 %v3674
      %v4705 = vunpack.c.l.b16 %v3675
      %v4706 = vunpack.c.l.b16 %v3676
      %v4707 = vunpack.c.l.b16 %v3677
      %v4708 = vunpack.c.l.b16 %v3678
      %v4709 = vunpack.c.l.b16 %v3679
      %v4710 = vunpack.c.l.b16 %v3680
      %v4711 = vunpack.c.l.b16 %v3681
      %v4712 = vunpack.c.l.b16 %v3682
      %v4713 = vunpack.c.l.b16 %v3683
      %v4714 = vunpack.c.l.b16 %v3684
      %v4715 = vunpack.c.l.b16 %v3685
      %v4716 = vunpack.c.l.b16 %v3686
      %v4717 = vunpack.c.l.b16 %v3687
      %v4718 = vunpack.c.l.b16 %v3688
      %v4719 = vunpack.c.l.b16 %v3689
      %v4720 = vunpack.c.l.b16 %v3690
      %v4721 = vunpack.c.l.b16 %v3691
      %v4722 = vunpack.c.l.b16 %v3692
      %v4723 = vunpack.c.l.b16 %v3693
      %v4724 = vunpack.c.l.b16 %v3694
      %v4725 = vunpack.c.l.b16 %v3695
      %v4726 = vunpack.c.l.b16 %v3696
      %v4727 = vunpack.c.l.b16 %v3697
      %v4728 = vunpack.c.l.b16 %v3698
      %v4729 = vunpack.c.l.b16 %v3699
      %v4730 = vunpack.c.l.b16 %v3700
      %v4731 = vunpack.c.l.b16 %v3701
      %v4732 = vunpack.c.l.b16 %v3702
      %v4733 = vunpack.c.l.b16 %v3703
      %v4734 = vunpack.c.l.b16 %v3704
      %v4735 = vunpack.c.l.b16 %v3705
      %v4736 = vunpack.c.l.b16 %v3706
      %v4737 = vunpack.c.l.b16 %v3707
      %v4738 = vunpack.c.l.b16 %v3708
      %v4739 = vunpack.c.l.b16 %v3709
      %v4740 = vunpack.c.l.b16 %v3710
      %v4741 = vunpack.c.l.b16 %v3711
      %v4742 = vunpack.c.l.b16 %v3712
      %v4743 = vunpack.c.l.b16 %v3713
      %v4744 = vunpack.c.l.b16 %v3714
      %v4745 = vunpack.c.l.b16 %v3715
      %v4746 = vunpack.c.l.b16 %v3716
      %v4747 = vunpack.c.l.b16 %v3717
      %v4748 = vunpack.c.l.b16 %v3718
      %v4749 = vunpack.c.l.b16 %v3719
      %v4750 = vunpack.c.l.b16 %v3720
      %v4751 = vunpack.c.l.b16 %v3721
      %v4752 = vunpack.c.l.b16 %v3722
      %v4753 = vpack.c.b16 %v4610, %v4609
      %v4754 = vpack.c.b16 %v4612, %v4611
      %v4755 = vpack.c.b16 %v4614, %v4613
      %v4756 = vpack.c.b16 %v4616, %v4615
      %v4757 = vpack.c.b16 %v4618, %v4617
      %v4758 = vpack.c.b16 %v4620, %v4619
      %v4759 = vpack.c.b16 %v4622, %v4621
      %v4760 = vpack.c.b16 %v4624, %v4623
      %v4761 = vpack.c.b16 %v4626, %v4625
      %v4762 = vpack.c.b16 %v4628, %v4627
      %v4763 = vpack.c.b16 %v4630, %v4629
      %v4764 = vpack.c.b16 %v4632, %v4631
      %v4765 = vpack.c.b16 %v4634, %v4633
      %v4766 = vpack.c.b16 %v4636, %v4635
      %v4767 = vpack.c.b16 %v4638, %v4637
      %v4768 = vpack.c.b16 %v4640, %v4639
      %v4769 = vpack.c.b16 %v4642, %v4641
      %v4770 = vpack.c.b16 %v4644, %v4643
      %v4771 = vpack.c.b16 %v4646, %v4645
      %v4772 = vpack.c.b16 %v4648, %v4647
      %v4773 = vpack.c.b16 %v4650, %v4649
      %v4774 = vpack.c.b16 %v4652, %v4651
      %v4775 = vpack.c.b16 %v4654, %v4653
      %v4776 = vpack.c.b16 %v4656, %v4655
      %v4777 = vpack.c.b16 %v4658, %v4657
      %v4778 = vpack.c.b16 %v4660, %v4659
      %v4779 = vpack.c.b16 %v4662, %v4661
      %v4780 = vpack.c.b16 %v4664, %v4663
      %v4781 = vpack.c.b16 %v4666, %v4665
      %v4782 = vpack.c.b16 %v4668, %v4667
      %v4783 = vpack.c.b16 %v4670, %v4669
      %v4784 = vpack.c.b16 %v4672, %v4671
      %v4785 = vpack.c.b16 %v4674, %v4673
      %v4786 = vpack.c.b16 %v4676, %v4675
      %v4787 = vpack.c.b16 %v4678, %v4677
      %v4788 = vpack.c.b16 %v4680, %v4679
      %v4789 = vpack.c.b16 %v4682, %v4681
      %v4790 = vpack.c.b16 %v4684, %v4683
      %v4791 = vpack.c.b16 %v4686, %v4685
      %v4792 = vpack.c.b16 %v4688, %v4687
      %v4793 = vpack.c.b16 %v4690, %v4689
      %v4794 = vpack.c.b16 %v4692, %v4691
      %v4795 = vpack.c.b16 %v4694, %v4693
      %v4796 = vpack.c.b16 %v4696, %v4695
      %v4797 = vpack.c.b16 %v4698, %v4697
      %v4798 = vpack.c.b16 %v4700, %v4699
      %v4799 = vpack.c.b16 %v4702, %v4701
      %v4800 = vpack.c.b16 %v4704, %v4703
      %v4801 = vpack.c.b16 %v4706, %v4705
      %v4802 = vpack.c.b16 %v4708, %v4707
      %v4803 = vpack.c.b16 %v4710, %v4709
      %v4804 = vpack.c.b16 %v4712, %v4711
      %v4805 = vpack.c.b16 %v4714, %v4713
      %v4806 = vpack.c.b16 %v4716, %v4715
      %v4807 = vpack.c.b16 %v4718, %v4717
      %v4808 = vpack.c.b16 %v4720, %v4719
      %v4809 = vpack.c.b16 %v4722, %v4721
      %v4810 = vpack.c.b16 %v4724, %v4723
      %v4811 = vpack.c.b16 %v4726, %v4725
      %v4812 = vpack.c.b16 %v4728, %v4727
      %v4813 = vpack.c.b16 %v4730, %v4729
      %v4814 = vpack.c.b16 %v4732, %v4731
      %v4815 = vpack.c.b16 %v4734, %v4733
      %v4816 = vpack.c.b16 %v4736, %v4735
      %v4817 = vpack.c.b16 %v4738, %v4737
      %v4818 = vpack.c.b16 %v4740, %v4739
      %v4819 = vpack.c.b16 %v4742, %v4741
      %v4820 = vpack.c.b16 %v4744, %v4743
      %v4821 = vpack.c.b16 %v4746, %v4745
      %v4822 = vpack.c.b16 %v4748, %v4747
      %v4823 = vpack.c.b16 %v4750, %v4749
      %v4824 = vpack.c.b16 %v4752, %v4751
      %4897 = vmatprep.subr.bf16.mxu0 0
      %4898 = vmatpush1.bf16.msra.mxu0 %v4760
      %4899 = vmatprep.subr.bf16.mxu0 0
      %4900 = vmatpush1.bf16.msra.mxu0 %v4759
      %4901 = vmatprep.subr.bf16.mxu0 0
      %4902 = vmatpush1.bf16.msra.mxu0 %v4758
      %4903 = vmatprep.subr.bf16.mxu0 0
      %4904 = vmatpush1.bf16.msra.mxu0 %v4757
      %4905 = vmatprep.subr.bf16.mxu0 0
      %4906 = vmatpush1.bf16.msra.mxu0 %v4756
      %4907 = vmatprep.subr.bf16.mxu0 0
      %4908 = vmatpush1.bf16.msra.mxu0 %v4755
      %4909 = vmatprep.subr.bf16.mxu0 0
      %4910 = vmatpush1.bf16.msra.mxu0 %v4754
      %4911 = vmatprep.subr.bf16.mxu0 0
      %4912 = vmatpush1.bf16.msra.mxu0 %v4753
      %4913 = vmatprep.subr.bf16.mxu0 0
      %4914 = vmatpush2.bf16.msra.mxu0 %v4768
      %4915 = vmatprep.subr.bf16.mxu0 0
      %4916 = vmatpush2.bf16.msra.mxu0 %v4767
      %4917 = vmatprep.subr.bf16.mxu0 0
      %4918 = vmatpush2.bf16.msra.mxu0 %v4766
      %4919 = vmatprep.subr.bf16.mxu0 0
      %4920 = vmatpush2.bf16.msra.mxu0 %v4765
      %4921 = vmatprep.subr.bf16.mxu0 0
      %4922 = vmatpush2.bf16.msra.mxu0 %v4764
      %4923 = vmatprep.subr.bf16.mxu0 0
      %4924 = vmatpush2.bf16.msra.mxu0 %v4763
      %4925 = vmatprep.subr.bf16.mxu0 0
      %4926 = vmatpush2.bf16.msra.mxu0 %v4762
      %4927 = vmatprep.subr.bf16.mxu0 0
      %4928 = vmatpush2.bf16.msra.mxu0 %v4761
      %4929 = vmatprep.mubr.bf16.mxu0 %v4178
      %4930 = vmatmul.mubr.bf16.gmra.mxu0 %v4177
      %v4931 = vpop.f32.mrf.mxu0
      %v4932 = vadd.f32 %v3728, %v4931
      %v4933 = vpop.f32.mrf.mxu0
      %v4934 = vpop.f32.mrf.mxu0
      %v4935 = vadd.f32 %v3728, %v4934
      %v4936 = vpop.f32.mrf.mxu0
      %4937 = vmatprep.mubr.bf16.mxu0 %v4187
      %4938 = vmatmul.mubr.bf16.gmra.mxu0 %v4186
      %v4939 = vpop.f32.mrf.mxu0
      %v4940 = vadd.f32 %v3728, %v4939
      %v4941 = vpop.f32.mrf.mxu0
      %v4942 = vpop.f32.mrf.mxu0
      %v4943 = vadd.f32 %v3728, %v4942
      %v4944 = vpop.f32.mrf.mxu0
      %4945 = vmatprep.mubr.bf16.mxu0 %v4196
      %4946 = vmatmul.mubr.bf16.gmra.mxu0 %v4195
      %v4947 = vpop.f32.mrf.mxu0
      %v4948 = vadd.f32 %v3728, %v4947
      %v4949 = vpop.f32.mrf.mxu0
      %v4950 = vpop.f32.mrf.mxu0
      %v4951 = vadd.f32 %v3728, %v4950
      %v4952 = vpop.f32.mrf.mxu0
      %4953 = vmatprep.mubr.bf16.mxu0 %v4205
      %4954 = vmatmul.mubr.bf16.gmra.mxu0 %v4204
      %v4955 = vpop.f32.mrf.mxu0
      %v4956 = vadd.f32 %v3728, %v4955
      %v4957 = vpop.f32.mrf.mxu0
      %v4958 = vpop.f32.mrf.mxu0
      %v4959 = vadd.f32 %v3728, %v4958
      %v4960 = vpop.f32.mrf.mxu0
      %4961 = vmatprep.mubr.bf16.mxu0 %v4214
      %4962 = vmatmul.mubr.bf16.gmra.mxu0 %v4213
      %v4963 = vpop.f32.mrf.mxu0
      %v4964 = vadd.f32 %v3728, %v4963
      %v4965 = vpop.f32.mrf.mxu0
      %v4966 = vpop.f32.mrf.mxu0
      %v4967 = vadd.f32 %v3728, %v4966
      %v4968 = vpop.f32.mrf.mxu0
      %4969 = vmatprep.mubr.bf16.mxu0 %v4223
      %4970 = vmatmul.mubr.bf16.gmra.mxu0 %v4222
      %v4971 = vpop.f32.mrf.mxu0
      %v4972 = vadd.f32 %v3728, %v4971
      %v4973 = vpop.f32.mrf.mxu0
      %v4974 = vpop.f32.mrf.mxu0
      %v4975 = vadd.f32 %v3728, %v4974
      %v4976 = vpop.f32.mrf.mxu0
      %4977 = vmatprep.mubr.bf16.mxu0 %v4232
      %4978 = vmatmul.mubr.bf16.gmra.mxu0 %v4231
      %v4979 = vpop.f32.mrf.mxu0
      %v4980 = vadd.f32 %v3728, %v4979
      %v4981 = vpop.f32.mrf.mxu0
      %v4982 = vpop.f32.mrf.mxu0
      %v4983 = vadd.f32 %v3728, %v4982
      %v4984 = vpop.f32.mrf.mxu0
      %4985 = vmatprep.mubr.bf16.mxu0 %v4241
      %4986 = vmatmul.mubr.bf16.gmra.mxu0 %v4240
      %v4987 = vpop.f32.mrf.mxu0
      %v4988 = vadd.f32 %v3728, %v4987
      %v4989 = vpop.f32.mrf.mxu0
      %v4990 = vpop.f32.mrf.mxu0
      %v4991 = vadd.f32 %v3728, %v4990
      %v4992 = vpop.f32.mrf.mxu0
      %4993 = vmatprep.mubr.bf16.mxu0 %v4250
      %4994 = vmatmul.mubr.bf16.gmra.mxu0 %v4249
      %v4995 = vpop.f32.mrf.mxu0
      %v4996 = vadd.f32 %v3728, %v4995
      %v4997 = vpop.f32.mrf.mxu0
      %v4998 = vpop.f32.mrf.mxu0
      %v4999 = vadd.f32 %v3728, %v4998
      %v5000 = vpop.f32.mrf.mxu0
      %5001 = vmatprep.mubr.bf16.mxu0 %v4259
      %5002 = vmatmul.mubr.bf16.gmra.mxu0 %v4258
      %v5003 = vpop.f32.mrf.mxu0
      %v5004 = vadd.f32 %v3728, %v5003
      %v5005 = vpop.f32.mrf.mxu0
      %v5006 = vpop.f32.mrf.mxu0
      %v5007 = vadd.f32 %v3728, %v5006
      %v5008 = vpop.f32.mrf.mxu0
      %5009 = vmatprep.mubr.bf16.mxu0 %v4268
      %5010 = vmatmul.mubr.bf16.gmra.mxu0 %v4267
      %v5011 = vpop.f32.mrf.mxu0
      %v5012 = vadd.f32 %v3728, %v5011
      %v5013 = vpop.f32.mrf.mxu0
      %v5014 = vpop.f32.mrf.mxu0
      %v5015 = vadd.f32 %v3728, %v5014
      %v5016 = vpop.f32.mrf.mxu0
      %5017 = vmatprep.mubr.bf16.mxu0 %v4277
      %5018 = vmatmul.mubr.bf16.gmra.mxu0 %v4276
      %v5019 = vpop.f32.mrf.mxu0
      %v5020 = vadd.f32 %v3728, %v5019
      %v5021 = vpop.f32.mrf.mxu0
      %v5022 = vpop.f32.mrf.mxu0
      %v5023 = vadd.f32 %v3728, %v5022
      %v5024 = vpop.f32.mrf.mxu0
      %5025 = vmatprep.mubr.bf16.mxu0 %v4286
      %5026 = vmatmul.mubr.bf16.gmra.mxu0 %v4285
      %v5027 = vpop.f32.mrf.mxu0
      %v5028 = vadd.f32 %v3728, %v5027
      %v5029 = vpop.f32.mrf.mxu0
      %v5030 = vpop.f32.mrf.mxu0
      %v5031 = vadd.f32 %v3728, %v5030
      %v5032 = vpop.f32.mrf.mxu0
      %5033 = vmatprep.mubr.bf16.mxu0 %v4295
      %5034 = vmatmul.mubr.bf16.gmra.mxu0 %v4294
      %v5035 = vpop.f32.mrf.mxu0
      %v5036 = vadd.f32 %v3728, %v5035
      %v5037 = vpop.f32.mrf.mxu0
      %v5038 = vpop.f32.mrf.mxu0
      %v5039 = vadd.f32 %v3728, %v5038
      %v5040 = vpop.f32.mrf.mxu0
      %5041 = vmatprep.mubr.bf16.mxu0 %v4304
      %5042 = vmatmul.mubr.bf16.gmra.mxu0 %v4303
      %v5043 = vpop.f32.mrf.mxu0
      %v5044 = vadd.f32 %v3728, %v5043
      %v5045 = vpop.f32.mrf.mxu0
      %v5046 = vpop.f32.mrf.mxu0
      %v5047 = vadd.f32 %v3728, %v5046
      %v5048 = vpop.f32.mrf.mxu0
      %5049 = vmatprep.mubr.bf16.mxu0 %v4313
      %5050 = vmatmul.mubr.bf16.gmra.mxu0 %v4312
      %v5051 = vpop.f32.mrf.mxu0
      %v5052 = vadd.f32 %v3728, %v5051
      %v5053 = vpop.f32.mrf.mxu0
      %v5054 = vpop.f32.mrf.mxu0
      %v5055 = vadd.f32 %v3728, %v5054
      %v5056 = vpop.f32.mrf.mxu0
      %5057 = vdwg.mxu0
      %5058 = vmatprep.subr.bf16.mxu0 0
      %5059 = vmatpush1.bf16.msra.mxu0 %v4776
      %5060 = vmatprep.subr.bf16.mxu0 0
      %5061 = vmatpush1.bf16.msra.mxu0 %v4775
      %5062 = vmatprep.subr.bf16.mxu0 0
      %5063 = vmatpush1.bf16.msra.mxu0 %v4774
      %5064 = vmatprep.subr.bf16.mxu0 0
      %5065 = vmatpush1.bf16.msra.mxu0 %v4773
      %5066 = vmatprep.subr.bf16.mxu0 0
      %5067 = vmatpush1.bf16.msra.mxu0 %v4772
      %5068 = vmatprep.subr.bf16.mxu0 0
      %5069 = vmatpush1.bf16.msra.mxu0 %v4771
      %5070 = vmatprep.subr.bf16.mxu0 0
      %5071 = vmatpush1.bf16.msra.mxu0 %v4770
      %5072 = vmatprep.subr.bf16.mxu0 0
      %5073 = vmatpush1.bf16.msra.mxu0 %v4769
      %5074 = vmatprep.subr.bf16.mxu0 0
      %5075 = vmatpush2.bf16.msra.mxu0 %v4784
      %5076 = vmatprep.subr.bf16.mxu0 0
      %5077 = vmatpush2.bf16.msra.mxu0 %v4783
      %5078 = vmatprep.subr.bf16.mxu0 0
      %5079 = vmatpush2.bf16.msra.mxu0 %v4782
      %5080 = vmatprep.subr.bf16.mxu0 0
      %5081 = vmatpush2.bf16.msra.mxu0 %v4781
      %5082 = vmatprep.subr.bf16.mxu0 0
      %5083 = vmatpush2.bf16.msra.mxu0 %v4780
      %5084 = vmatprep.subr.bf16.mxu0 0
      %5085 = vmatpush2.bf16.msra.mxu0 %v4779
      %5086 = vmatprep.subr.bf16.mxu0 0
      %5087 = vmatpush2.bf16.msra.mxu0 %v4778
      %5088 = vmatprep.subr.bf16.mxu0 0
      %5089 = vmatpush2.bf16.msra.mxu0 %v4777
      %5090 = vmatprep.mubr.bf16.mxu0 %v4180
      %5091 = vmatmul.mubr.bf16.gmra.mxu0 %v4179
      %v5092 = vpop.f32.mrf.mxu0
      %v5093 = vadd.f32 %v4932, %v5092
      %v5094 = vpop.f32.mrf.mxu0
      %v5095 = vpop.f32.mrf.mxu0
      %v5096 = vadd.f32 %v4935, %v5095
      %v5097 = vpop.f32.mrf.mxu0
      %5098 = vmatprep.mubr.bf16.mxu0 %v4189
      %5099 = vmatmul.mubr.bf16.gmra.mxu0 %v4188
      %v5100 = vpop.f32.mrf.mxu0
      %v5101 = vadd.f32 %v4940, %v5100
      %v5102 = vpop.f32.mrf.mxu0
      %v5103 = vpop.f32.mrf.mxu0
      %v5104 = vadd.f32 %v4943, %v5103
      %v5105 = vpop.f32.mrf.mxu0
      %5106 = vmatprep.mubr.bf16.mxu0 %v4198
      %5107 = vmatmul.mubr.bf16.gmra.mxu0 %v4197
      %v5108 = vpop.f32.mrf.mxu0
      %v5109 = vadd.f32 %v4948, %v5108
      %v5110 = vpop.f32.mrf.mxu0
      %v5111 = vpop.f32.mrf.mxu0
      %v5112 = vadd.f32 %v4951, %v5111
      %v5113 = vpop.f32.mrf.mxu0
      %5114 = vmatprep.mubr.bf16.mxu0 %v4207
      %5115 = vmatmul.mubr.bf16.gmra.mxu0 %v4206
      %v5116 = vpop.f32.mrf.mxu0
      %v5117 = vadd.f32 %v4956, %v5116
      %v5118 = vpop.f32.mrf.mxu0
      %v5119 = vpop.f32.mrf.mxu0
      %v5120 = vadd.f32 %v4959, %v5119
      %v5121 = vpop.f32.mrf.mxu0
      %5122 = vmatprep.mubr.bf16.mxu0 %v4216
      %5123 = vmatmul.mubr.bf16.gmra.mxu0 %v4215
      %v5124 = vpop.f32.mrf.mxu0
      %v5125 = vadd.f32 %v4964, %v5124
      %v5126 = vpop.f32.mrf.mxu0
      %v5127 = vpop.f32.mrf.mxu0
      %v5128 = vadd.f32 %v4967, %v5127
      %v5129 = vpop.f32.mrf.mxu0
      %5130 = vmatprep.mubr.bf16.mxu0 %v4225
      %5131 = vmatmul.mubr.bf16.gmra.mxu0 %v4224
      %v5132 = vpop.f32.mrf.mxu0
      %v5133 = vadd.f32 %v4972, %v5132
      %v5134 = vpop.f32.mrf.mxu0
      %v5135 = vpop.f32.mrf.mxu0
      %v5136 = vadd.f32 %v4975, %v5135
      %v5137 = vpop.f32.mrf.mxu0
      %5138 = vmatprep.mubr.bf16.mxu0 %v4234
      %5139 = vmatmul.mubr.bf16.gmra.mxu0 %v4233
      %v5140 = vpop.f32.mrf.mxu0
      %v5141 = vadd.f32 %v4980, %v5140
      %v5142 = vpop.f32.mrf.mxu0
      %v5143 = vpop.f32.mrf.mxu0
      %v5144 = vadd.f32 %v4983, %v5143
      %v5145 = vpop.f32.mrf.mxu0
      %5146 = vmatprep.mubr.bf16.mxu0 %v4243
      %5147 = vmatmul.mubr.bf16.gmra.mxu0 %v4242
      %v5148 = vpop.f32.mrf.mxu0
      %v5149 = vadd.f32 %v4988, %v5148
      %v5150 = vpop.f32.mrf.mxu0
      %v5151 = vpop.f32.mrf.mxu0
      %v5152 = vadd.f32 %v4991, %v5151
      %v5153 = vpop.f32.mrf.mxu0
      %5154 = vmatprep.mubr.bf16.mxu0 %v4252
      %5155 = vmatmul.mubr.bf16.gmra.mxu0 %v4251
      %v5156 = vpop.f32.mrf.mxu0
      %v5157 = vadd.f32 %v4996, %v5156
      %v5158 = vpop.f32.mrf.mxu0
      %v5159 = vpop.f32.mrf.mxu0
      %v5160 = vadd.f32 %v4999, %v5159
      %v5161 = vpop.f32.mrf.mxu0
      %5162 = vmatprep.mubr.bf16.mxu0 %v4261
      %5163 = vmatmul.mubr.bf16.gmra.mxu0 %v4260
      %v5164 = vpop.f32.mrf.mxu0
      %v5165 = vadd.f32 %v5004, %v5164
      %v5166 = vpop.f32.mrf.mxu0
      %v5167 = vpop.f32.mrf.mxu0
      %v5168 = vadd.f32 %v5007, %v5167
      %v5169 = vpop.f32.mrf.mxu0
      %5170 = vmatprep.mubr.bf16.mxu0 %v4270
      %5171 = vmatmul.mubr.bf16.gmra.mxu0 %v4269
      %v5172 = vpop.f32.mrf.mxu0
      %v5173 = vadd.f32 %v5012, %v5172
      %v5174 = vpop.f32.mrf.mxu0
      %v5175 = vpop.f32.mrf.mxu0
      %v5176 = vadd.f32 %v5015, %v5175
      %v5177 = vpop.f32.mrf.mxu0
      %5178 = vmatprep.mubr.bf16.mxu0 %v4279
      %5179 = vmatmul.mubr.bf16.gmra.mxu0 %v4278
      %v5180 = vpop.f32.mrf.mxu0
      %v5181 = vadd.f32 %v5020, %v5180
      %v5182 = vpop.f32.mrf.mxu0
      %v5183 = vpop.f32.mrf.mxu0
      %v5184 = vadd.f32 %v5023, %v5183
      %v5185 = vpop.f32.mrf.mxu0
      %5186 = vmatprep.mubr.bf16.mxu0 %v4288
      %5187 = vmatmul.mubr.bf16.gmra.mxu0 %v4287
      %v5188 = vpop.f32.mrf.mxu0
      %v5189 = vadd.f32 %v5028, %v5188
      %v5190 = vpop.f32.mrf.mxu0
      %v5191 = vpop.f32.mrf.mxu0
      %v5192 = vadd.f32 %v5031, %v5191
      %v5193 = vpop.f32.mrf.mxu0
      %5194 = vmatprep.mubr.bf16.mxu0 %v4297
      %5195 = vmatmul.mubr.bf16.gmra.mxu0 %v4296
      %v5196 = vpop.f32.mrf.mxu0
      %v5197 = vadd.f32 %v5036, %v5196
      %v5198 = vpop.f32.mrf.mxu0
      %v5199 = vpop.f32.mrf.mxu0
      %v5200 = vadd.f32 %v5039, %v5199
      %v5201 = vpop.f32.mrf.mxu0
      %5202 = vmatprep.mubr.bf16.mxu0 %v4306
      %5203 = vmatmul.mubr.bf16.gmra.mxu0 %v4305
      %v5204 = vpop.f32.mrf.mxu0
      %v5205 = vadd.f32 %v5044, %v5204
      %v5206 = vpop.f32.mrf.mxu0
      %v5207 = vpop.f32.mrf.mxu0
      %v5208 = vadd.f32 %v5047, %v5207
      %v5209 = vpop.f32.mrf.mxu0
      %5210 = vmatprep.mubr.bf16.mxu0 %v4315
      %5211 = vmatmul.mubr.bf16.gmra.mxu0 %v4314
      %v5212 = vpop.f32.mrf.mxu0
      %v5213 = vadd.f32 %v5052, %v5212
      %v5214 = vpop.f32.mrf.mxu0
      %v5215 = vpop.f32.mrf.mxu0
      %v5216 = vadd.f32 %v5055, %v5215
      %v5217 = vpop.f32.mrf.mxu0
      %5218 = vdwg.mxu0
      %5219 = vmatprep.subr.bf16.mxu0 0
      %5220 = vmatpush1.bf16.msra.mxu0 %v4792
      %5221 = vmatprep.subr.bf16.mxu0 0
      %5222 = vmatpush1.bf16.msra.mxu0 %v4791
      %5223 = vmatprep.subr.bf16.mxu0 0
      %5224 = vmatpush1.bf16.msra.mxu0 %v4790
      %5225 = vmatprep.subr.bf16.mxu0 0
      %5226 = vmatpush1.bf16.msra.mxu0 %v4789
      %5227 = vmatprep.subr.bf16.mxu0 0
      %5228 = vmatpush1.bf16.msra.mxu0 %v4788
      %5229 = vmatprep.subr.bf16.mxu0 0
      %5230 = vmatpush1.bf16.msra.mxu0 %v4787
      %5231 = vmatprep.subr.bf16.mxu0 0
      %5232 = vmatpush1.bf16.msra.mxu0 %v4786
      %5233 = vmatprep.subr.bf16.mxu0 0
      %5234 = vmatpush1.bf16.msra.mxu0 %v4785
      %5235 = vmatprep.subr.bf16.mxu0 0
      %5236 = vmatpush2.bf16.msra.mxu0 %v4800
      %5237 = vmatprep.subr.bf16.mxu0 0
      %5238 = vmatpush2.bf16.msra.mxu0 %v4799
      %5239 = vmatprep.subr.bf16.mxu0 0
      %5240 = vmatpush2.bf16.msra.mxu0 %v4798
      %5241 = vmatprep.subr.bf16.mxu0 0
      %5242 = vmatpush2.bf16.msra.mxu0 %v4797
      %5243 = vmatprep.subr.bf16.mxu0 0
      %5244 = vmatpush2.bf16.msra.mxu0 %v4796
      %5245 = vmatprep.subr.bf16.mxu0 0
      %5246 = vmatpush2.bf16.msra.mxu0 %v4795
      %5247 = vmatprep.subr.bf16.mxu0 0
      %5248 = vmatpush2.bf16.msra.mxu0 %v4794
      %5249 = vmatprep.subr.bf16.mxu0 0
      %5250 = vmatpush2.bf16.msra.mxu0 %v4793
      %5251 = vmatprep.mubr.bf16.mxu0 %v4182
      %5252 = vmatmul.mubr.bf16.gmra.mxu0 %v4181
      %v5253 = vpop.f32.mrf.mxu0
      %v5254 = vadd.f32 %v5093, %v5253
      %v5255 = vpop.f32.mrf.mxu0
      %v5256 = vpop.f32.mrf.mxu0
      %v5257 = vadd.f32 %v5096, %v5256
      %v5258 = vpop.f32.mrf.mxu0
      %5259 = vmatprep.mubr.bf16.mxu0 %v4191
      %5260 = vmatmul.mubr.bf16.gmra.mxu0 %v4190
      %v5261 = vpop.f32.mrf.mxu0
      %v5262 = vadd.f32 %v5101, %v5261
      %v5263 = vpop.f32.mrf.mxu0
      %v5264 = vpop.f32.mrf.mxu0
      %v5265 = vadd.f32 %v5104, %v5264
      %v5266 = vpop.f32.mrf.mxu0
      %5267 = vmatprep.mubr.bf16.mxu0 %v4200
      %5268 = vmatmul.mubr.bf16.gmra.mxu0 %v4199
      %v5269 = vpop.f32.mrf.mxu0
      %v5270 = vadd.f32 %v5109, %v5269
      %v5271 = vpop.f32.mrf.mxu0
      %v5272 = vpop.f32.mrf.mxu0
      %v5273 = vadd.f32 %v5112, %v5272
      %v5274 = vpop.f32.mrf.mxu0
      %5275 = vmatprep.mubr.bf16.mxu0 %v4209
      %5276 = vmatmul.mubr.bf16.gmra.mxu0 %v4208
      %v5277 = vpop.f32.mrf.mxu0
      %v5278 = vadd.f32 %v5117, %v5277
      %v5279 = vpop.f32.mrf.mxu0
      %v5280 = vpop.f32.mrf.mxu0
      %v5281 = vadd.f32 %v5120, %v5280
      %v5282 = vpop.f32.mrf.mxu0
      %5283 = vmatprep.mubr.bf16.mxu0 %v4218
      %5284 = vmatmul.mubr.bf16.gmra.mxu0 %v4217
      %v5285 = vpop.f32.mrf.mxu0
      %v5286 = vadd.f32 %v5125, %v5285
      %v5287 = vpop.f32.mrf.mxu0
      %v5288 = vpop.f32.mrf.mxu0
      %v5289 = vadd.f32 %v5128, %v5288
      %v5290 = vpop.f32.mrf.mxu0
      %5291 = vmatprep.mubr.bf16.mxu0 %v4227
      %5292 = vmatmul.mubr.bf16.gmra.mxu0 %v4226
      %v5293 = vpop.f32.mrf.mxu0
      %v5294 = vadd.f32 %v5133, %v5293
      %v5295 = vpop.f32.mrf.mxu0
      %v5296 = vpop.f32.mrf.mxu0
      %v5297 = vadd.f32 %v5136, %v5296
      %v5298 = vpop.f32.mrf.mxu0
      %5299 = vmatprep.mubr.bf16.mxu0 %v4236
      %5300 = vmatmul.mubr.bf16.gmra.mxu0 %v4235
      %v5301 = vpop.f32.mrf.mxu0
      %v5302 = vadd.f32 %v5141, %v5301
      %v5303 = vpop.f32.mrf.mxu0
      %v5304 = vpop.f32.mrf.mxu0
      %v5305 = vadd.f32 %v5144, %v5304
      %v5306 = vpop.f32.mrf.mxu0
      %5307 = vmatprep.mubr.bf16.mxu0 %v4245
      %5308 = vmatmul.mubr.bf16.gmra.mxu0 %v4244
      %v5309 = vpop.f32.mrf.mxu0
      %v5310 = vadd.f32 %v5149, %v5309
      %v5311 = vpop.f32.mrf.mxu0
      %v5312 = vpop.f32.mrf.mxu0
      %v5313 = vadd.f32 %v5152, %v5312
      %v5314 = vpop.f32.mrf.mxu0
      %5315 = vmatprep.mubr.bf16.mxu0 %v4254
      %5316 = vmatmul.mubr.bf16.gmra.mxu0 %v4253
      %v5317 = vpop.f32.mrf.mxu0
      %v5318 = vadd.f32 %v5157, %v5317
      %v5319 = vpop.f32.mrf.mxu0
      %v5320 = vpop.f32.mrf.mxu0
      %v5321 = vadd.f32 %v5160, %v5320
      %v5322 = vpop.f32.mrf.mxu0
      %5323 = vmatprep.mubr.bf16.mxu0 %v4263
      %5324 = vmatmul.mubr.bf16.gmra.mxu0 %v4262
      %v5325 = vpop.f32.mrf.mxu0
      %v5326 = vadd.f32 %v5165, %v5325
      %v5327 = vpop.f32.mrf.mxu0
      %v5328 = vpop.f32.mrf.mxu0
      %v5329 = vadd.f32 %v5168, %v5328
      %v5330 = vpop.f32.mrf.mxu0
      %5331 = vmatprep.mubr.bf16.mxu0 %v4272
      %5332 = vmatmul.mubr.bf16.gmra.mxu0 %v4271
      %v5333 = vpop.f32.mrf.mxu0
      %v5334 = vadd.f32 %v5173, %v5333
      %v5335 = vpop.f32.mrf.mxu0
      %v5336 = vpop.f32.mrf.mxu0
      %v5337 = vadd.f32 %v5176, %v5336
      %v5338 = vpop.f32.mrf.mxu0
      %5339 = vmatprep.mubr.bf16.mxu0 %v4281
      %5340 = vmatmul.mubr.bf16.gmra.mxu0 %v4280
      %v5341 = vpop.f32.mrf.mxu0
      %v5342 = vadd.f32 %v5181, %v5341
      %v5343 = vpop.f32.mrf.mxu0
      %v5344 = vpop.f32.mrf.mxu0
      %v5345 = vadd.f32 %v5184, %v5344
      %v5346 = vpop.f32.mrf.mxu0
      %5347 = vmatprep.mubr.bf16.mxu0 %v4290
      %5348 = vmatmul.mubr.bf16.gmra.mxu0 %v4289
      %v5349 = vpop.f32.mrf.mxu0
      %v5350 = vadd.f32 %v5189, %v5349
      %v5351 = vpop.f32.mrf.mxu0
      %v5352 = vpop.f32.mrf.mxu0
      %v5353 = vadd.f32 %v5192, %v5352
      %v5354 = vpop.f32.mrf.mxu0
      %5355 = vmatprep.mubr.bf16.mxu0 %v4299
      %5356 = vmatmul.mubr.bf16.gmra.mxu0 %v4298
      %v5357 = vpop.f32.mrf.mxu0
      %v5358 = vadd.f32 %v5197, %v5357
      %v5359 = vpop.f32.mrf.mxu0
      %v5360 = vpop.f32.mrf.mxu0
      %v5361 = vadd.f32 %v5200, %v5360
      %v5362 = vpop.f32.mrf.mxu0
      %5363 = vmatprep.mubr.bf16.mxu0 %v4308
      %5364 = vmatmul.mubr.bf16.gmra.mxu0 %v4307
      %v5365 = vpop.f32.mrf.mxu0
      %v5366 = vadd.f32 %v5205, %v5365
      %v5367 = vpop.f32.mrf.mxu0
      %v5368 = vpop.f32.mrf.mxu0
      %v5369 = vadd.f32 %v5208, %v5368
      %v5370 = vpop.f32.mrf.mxu0
      %5371 = vmatprep.mubr.bf16.mxu0 %v4317
      %5372 = vmatmul.mubr.bf16.gmra.mxu0 %v4316
      %v5373 = vpop.f32.mrf.mxu0
      %v5374 = vadd.f32 %v5213, %v5373
      %v5375 = vpop.f32.mrf.mxu0
      %v5376 = vpop.f32.mrf.mxu0
      %v5377 = vadd.f32 %v5216, %v5376
      %v5378 = vpop.f32.mrf.mxu0
      %5379 = vdwg.mxu0
      %5380 = vmatprep.subr.bf16.mxu0 0
      %5381 = vmatpush1.bf16.msra.mxu0 %v4808
      %5382 = vmatprep.subr.bf16.mxu0 0
      %5383 = vmatpush1.bf16.msra.mxu0 %v4807
      %5384 = vmatprep.subr.bf16.mxu0 0
      %5385 = vmatpush1.bf16.msra.mxu0 %v4806
      %5386 = vmatprep.subr.bf16.mxu0 0
      %5387 = vmatpush1.bf16.msra.mxu0 %v4805
      %5388 = vmatprep.subr.bf16.mxu0 0
      %5389 = vmatpush1.bf16.msra.mxu0 %v4804
      %5390 = vmatprep.subr.bf16.mxu0 0
      %5391 = vmatpush1.bf16.msra.mxu0 %v4803
      %5392 = vmatprep.subr.bf16.mxu0 0
      %5393 = vmatpush1.bf16.msra.mxu0 %v4802
      %5394 = vmatprep.subr.bf16.mxu0 0
      %5395 = vmatpush1.bf16.msra.mxu0 %v4801
      %5396 = vmatprep.subr.bf16.mxu0 0
      %5397 = vmatpush2.bf16.msra.mxu0 %v4816
      %5398 = vmatprep.subr.bf16.mxu0 0
      %5399 = vmatpush2.bf16.msra.mxu0 %v4815
      %5400 = vmatprep.subr.bf16.mxu0 0
      %5401 = vmatpush2.bf16.msra.mxu0 %v4814
      %5402 = vmatprep.subr.bf16.mxu0 0
      %5403 = vmatpush2.bf16.msra.mxu0 %v4813
      %5404 = vmatprep.subr.bf16.mxu0 0
      %5405 = vmatpush2.bf16.msra.mxu0 %v4812
      %5406 = vmatprep.subr.bf16.mxu0 0
      %5407 = vmatpush2.bf16.msra.mxu0 %v4811
      %5408 = vmatprep.subr.bf16.mxu0 0
      %5409 = vmatpush2.bf16.msra.mxu0 %v4810
      %5410 = vmatprep.subr.bf16.mxu0 0
      %5411 = vmatpush2.bf16.msra.mxu0 %v4809
      %5412 = vmatprep.mubr.bf16.mxu0 %v4184
      %5413 = vmatmul.mubr.bf16.gmra.mxu0 %v4183
      %v5414 = vpop.f32.mrf.mxu0
      %v5415 = vadd.f32 %v5254, %v5414
      %v5416 = vpop.f32.mrf.mxu0
      %v5417 = vpop.f32.mrf.mxu0
      %v5418 = vadd.f32 %v5257, %v5417
      %v5419 = vpop.f32.mrf.mxu0
      %5420 = vmatprep.mubr.bf16.mxu0 %v4193
      %5421 = vmatmul.mubr.bf16.gmra.mxu0 %v4192
      %v5422 = vpop.f32.mrf.mxu0
      %v5423 = vadd.f32 %v5262, %v5422
      %v5424 = vpop.f32.mrf.mxu0
      %v5425 = vpop.f32.mrf.mxu0
      %v5426 = vadd.f32 %v5265, %v5425
      %v5427 = vpop.f32.mrf.mxu0
      %5428 = vmatprep.mubr.bf16.mxu0 %v4202
      %5429 = vmatmul.mubr.bf16.gmra.mxu0 %v4201
      %v5430 = vpop.f32.mrf.mxu0
      %v5431 = vadd.f32 %v5270, %v5430
      %v5432 = vpop.f32.mrf.mxu0
      %v5433 = vpop.f32.mrf.mxu0
      %v5434 = vadd.f32 %v5273, %v5433
      %v5435 = vpop.f32.mrf.mxu0
      %5436 = vmatprep.mubr.bf16.mxu0 %v4211
      %5437 = vmatmul.mubr.bf16.gmra.mxu0 %v4210
      %v5438 = vpop.f32.mrf.mxu0
      %v5439 = vadd.f32 %v5278, %v5438
      %v5440 = vpop.f32.mrf.mxu0
      %v5441 = vpop.f32.mrf.mxu0
      %v5442 = vadd.f32 %v5281, %v5441
      %v5443 = vpop.f32.mrf.mxu0
      %5444 = vmatprep.mubr.bf16.mxu0 %v4220
      %5445 = vmatmul.mubr.bf16.gmra.mxu0 %v4219
      %v5446 = vpop.f32.mrf.mxu0
      %v5447 = vadd.f32 %v5286, %v5446
      %v5448 = vpop.f32.mrf.mxu0
      %v5449 = vpop.f32.mrf.mxu0
      %v5450 = vadd.f32 %v5289, %v5449
      %v5451 = vpop.f32.mrf.mxu0
      %5452 = vmatprep.mubr.bf16.mxu0 %v4229
      %5453 = vmatmul.mubr.bf16.gmra.mxu0 %v4228
      %v5454 = vpop.f32.mrf.mxu0
      %v5455 = vadd.f32 %v5294, %v5454
      %v5456 = vpop.f32.mrf.mxu0
      %v5457 = vpop.f32.mrf.mxu0
      %v5458 = vadd.f32 %v5297, %v5457
      %v5459 = vpop.f32.mrf.mxu0
      %5460 = vmatprep.mubr.bf16.mxu0 %v4238
      %5461 = vmatmul.mubr.bf16.gmra.mxu0 %v4237
      %v5462 = vpop.f32.mrf.mxu0
      %v5463 = vadd.f32 %v5302, %v5462
      %v5464 = vpop.f32.mrf.mxu0
      %v5465 = vpop.f32.mrf.mxu0
      %v5466 = vadd.f32 %v5305, %v5465
      %v5467 = vpop.f32.mrf.mxu0
      %5468 = vmatprep.mubr.bf16.mxu0 %v4247
      %5469 = vmatmul.mubr.bf16.gmra.mxu0 %v4246
      %v5470 = vpop.f32.mrf.mxu0
      %v5471 = vadd.f32 %v5310, %v5470
      %v5472 = vpop.f32.mrf.mxu0
      %v5473 = vpop.f32.mrf.mxu0
      %v5474 = vadd.f32 %v5313, %v5473
      %v5475 = vpop.f32.mrf.mxu0
      %5476 = vmatprep.mubr.bf16.mxu0 %v4256
      %5477 = vmatmul.mubr.bf16.gmra.mxu0 %v4255
      %v5478 = vpop.f32.mrf.mxu0
      %v5479 = vadd.f32 %v5318, %v5478
      %v5480 = vpop.f32.mrf.mxu0
      %v5481 = vpop.f32.mrf.mxu0
      %v5482 = vadd.f32 %v5321, %v5481
      %v5483 = vpop.f32.mrf.mxu0
      %5484 = vmatprep.mubr.bf16.mxu0 %v4265
      %5485 = vmatmul.mubr.bf16.gmra.mxu0 %v4264
      %v5486 = vpop.f32.mrf.mxu0
      %v5487 = vadd.f32 %v5326, %v5486
      %v5488 = vpop.f32.mrf.mxu0
      %v5489 = vpop.f32.mrf.mxu0
      %v5490 = vadd.f32 %v5329, %v5489
      %v5491 = vpop.f32.mrf.mxu0
      %5492 = vmatprep.mubr.bf16.mxu0 %v4274
      %5493 = vmatmul.mubr.bf16.gmra.mxu0 %v4273
      %v5494 = vpop.f32.mrf.mxu0
      %v5495 = vadd.f32 %v5334, %v5494
      %v5496 = vpop.f32.mrf.mxu0
      %v5497 = vpop.f32.mrf.mxu0
      %v5498 = vadd.f32 %v5337, %v5497
      %v5499 = vpop.f32.mrf.mxu0
      %5500 = vmatprep.mubr.bf16.mxu0 %v4283
      %5501 = vmatmul.mubr.bf16.gmra.mxu0 %v4282
      %v5502 = vpop.f32.mrf.mxu0
      %v5503 = vadd.f32 %v5342, %v5502
      %v5504 = vpop.f32.mrf.mxu0
      %v5505 = vpop.f32.mrf.mxu0
      %v5506 = vadd.f32 %v5345, %v5505
      %v5507 = vpop.f32.mrf.mxu0
      %5508 = vmatprep.mubr.bf16.mxu0 %v4292
      %5509 = vmatmul.mubr.bf16.gmra.mxu0 %v4291
      %v5510 = vpop.f32.mrf.mxu0
      %v5511 = vadd.f32 %v5350, %v5510
      %v5512 = vpop.f32.mrf.mxu0
      %v5513 = vpop.f32.mrf.mxu0
      %v5514 = vadd.f32 %v5353, %v5513
      %v5515 = vpop.f32.mrf.mxu0
      %5516 = vmatprep.mubr.bf16.mxu0 %v4301
      %5517 = vmatmul.mubr.bf16.gmra.mxu0 %v4300
      %v5518 = vpop.f32.mrf.mxu0
      %v5519 = vadd.f32 %v5358, %v5518
      %v5520 = vpop.f32.mrf.mxu0
      %v5521 = vpop.f32.mrf.mxu0
      %v5522 = vadd.f32 %v5361, %v5521
      %v5523 = vpop.f32.mrf.mxu0
      %5524 = vmatprep.mubr.bf16.mxu0 %v4310
      %5525 = vmatmul.mubr.bf16.gmra.mxu0 %v4309
      %v5526 = vpop.f32.mrf.mxu0
      %v5527 = vadd.f32 %v5366, %v5526
      %v5528 = vpop.f32.mrf.mxu0
      %v5529 = vpop.f32.mrf.mxu0
      %v5530 = vadd.f32 %v5369, %v5529
      %v5531 = vpop.f32.mrf.mxu0
      %5532 = vmatprep.mubr.bf16.mxu0 %v4319
      %5533 = vmatmul.mubr.bf16.gmra.mxu0 %v4318
      %v5534 = vpop.f32.mrf.mxu0
      %v5535 = vadd.f32 %v5374, %v5534
      %v5536 = vpop.f32.mrf.mxu0
      %v5537 = vpop.f32.mrf.mxu0
      %v5538 = vadd.f32 %v5377, %v5537
      %v5539 = vpop.f32.mrf.mxu0
      %5540 = vdwg.mxu0
      %5541 = vmatprep.subr.bf16.mxu0 0
      %5542 = vmatpush1.bf16.msra.mxu0 %v4824
      %5543 = vmatprep.subr.bf16.mxu0 0
      %5544 = vmatpush1.bf16.msra.mxu0 %v4823
      %5545 = vmatprep.subr.bf16.mxu0 0
      %5546 = vmatpush1.bf16.msra.mxu0 %v4822
      %5547 = vmatprep.subr.bf16.mxu0 0
      %5548 = vmatpush1.bf16.msra.mxu0 %v4821
      %5549 = vmatprep.subr.bf16.mxu0 0
      %5550 = vmatpush1.bf16.msra.mxu0 %v4820
      %5551 = vmatprep.subr.bf16.mxu0 0
      %5552 = vmatpush1.bf16.msra.mxu0 %v4819
      %5553 = vmatprep.subr.bf16.mxu0 0
      %5554 = vmatpush1.bf16.msra.mxu0 %v4818
      %5555 = vmatprep.subr.bf16.mxu0 0
      %5556 = vmatpush1.bf16.msra.mxu0 %v4817
      %5557 = vmatprep.subr.bf16.mxu0 0
      %5558 = vmatpush2.bf16.msra.mxu0 0
      %5559 = vmatprep.subr.bf16.mxu0 0
      %5560 = vmatpush2.bf16.msra.mxu0 0
      %5561 = vmatprep.subr.bf16.mxu0 0
      %5562 = vmatpush2.bf16.msra.mxu0 0
      %5563 = vmatprep.subr.bf16.mxu0 0
      %5564 = vmatpush2.bf16.msra.mxu0 0
      %5565 = vmatprep.subr.bf16.mxu0 0
      %5566 = vmatpush2.bf16.msra.mxu0 0
      %5567 = vmatprep.subr.bf16.mxu0 0
      %5568 = vmatpush2.bf16.msra.mxu0 0
      %5569 = vmatprep.subr.bf16.mxu0 0
      %5570 = vmatpush2.bf16.msra.mxu0 0
      %5571 = vmatprep.subr.bf16.mxu0 0
      %5572 = vmatpush2.bf16.msra.mxu0 0
      %5573 = vmatprep.mubr.bf16.mxu0 0
      %5574 = vmatmul.mubr.bf16.gmra.mxu0 %v4185
      %v5575 = vpop.f32.mrf.mxu0
      %v5576 = vadd.f32 %v5415, %v5575
      %v5577 = vpop.f32.mrf.mxu0
      %v5578 = vpop.f32.mrf.mxu0
      %v5579 = vadd.f32 %v5418, %v5578
      %v5580 = vpop.f32.mrf.mxu0
      %5581 = vmatprep.mubr.bf16.mxu0 0
      %5582 = vmatmul.mubr.bf16.gmra.mxu0 %v4194
      %v5583 = vpop.f32.mrf.mxu0
      %v5584 = vadd.f32 %v5423, %v5583
      %v5585 = vpop.f32.mrf.mxu0
      %v5586 = vpop.f32.mrf.mxu0
      %v5587 = vadd.f32 %v5426, %v5586
      %v5588 = vpop.f32.mrf.mxu0
      %5589 = vmatprep.mubr.bf16.mxu0 0
      %5590 = vmatmul.mubr.bf16.gmra.mxu0 %v4203
      %v5591 = vpop.f32.mrf.mxu0
      %v5592 = vadd.f32 %v5431, %v5591
      %v5593 = vpop.f32.mrf.mxu0
      %v5594 = vpop.f32.mrf.mxu0
      %v5595 = vadd.f32 %v5434, %v5594
      %v5596 = vpop.f32.mrf.mxu0
      %5597 = vmatprep.mubr.bf16.mxu0 0
      %5598 = vmatmul.mubr.bf16.gmra.mxu0 %v4212
      %v5599 = vpop.f32.mrf.mxu0
      %v5600 = vadd.f32 %v5439, %v5599
      %v5601 = vpop.f32.mrf.mxu0
      %v5602 = vpop.f32.mrf.mxu0
      %v5603 = vadd.f32 %v5442, %v5602
      %v5604 = vpop.f32.mrf.mxu0
      %5605 = vmatprep.mubr.bf16.mxu0 0
      %5606 = vmatmul.mubr.bf16.gmra.mxu0 %v4221
      %v5607 = vpop.f32.mrf.mxu0
      %v5608 = vadd.f32 %v5447, %v5607
      %v5609 = vpop.f32.mrf.mxu0
      %v5610 = vpop.f32.mrf.mxu0
      %v5611 = vadd.f32 %v5450, %v5610
      %v5612 = vpop.f32.mrf.mxu0
      %5613 = vmatprep.mubr.bf16.mxu0 0
      %5614 = vmatmul.mubr.bf16.gmra.mxu0 %v4230
      %v5615 = vpop.f32.mrf.mxu0
      %v5616 = vadd.f32 %v5455, %v5615
      %v5617 = vpop.f32.mrf.mxu0
      %v5618 = vpop.f32.mrf.mxu0
      %v5619 = vadd.f32 %v5458, %v5618
      %v5620 = vpop.f32.mrf.mxu0
      %5621 = vmatprep.mubr.bf16.mxu0 0
      %5622 = vmatmul.mubr.bf16.gmra.mxu0 %v4239
      %v5623 = vpop.f32.mrf.mxu0
      %v5624 = vadd.f32 %v5463, %v5623
      %v5625 = vpop.f32.mrf.mxu0
      %v5626 = vpop.f32.mrf.mxu0
      %v5627 = vadd.f32 %v5466, %v5626
      %v5628 = vpop.f32.mrf.mxu0
      %5629 = vmatprep.mubr.bf16.mxu0 0
      %5630 = vmatmul.mubr.bf16.gmra.mxu0 %v4248
      %v5631 = vpop.f32.mrf.mxu0
      %v5632 = vadd.f32 %v5471, %v5631
      %v5633 = vpop.f32.mrf.mxu0
      %v5634 = vpop.f32.mrf.mxu0
      %v5635 = vadd.f32 %v5474, %v5634
      %v5636 = vpop.f32.mrf.mxu0
      %5637 = vmatprep.mubr.bf16.mxu0 0
      %5638 = vmatmul.mubr.bf16.gmra.mxu0 %v4257
      %v5639 = vpop.f32.mrf.mxu0
      %v5640 = vadd.f32 %v5479, %v5639
      %v5641 = vpop.f32.mrf.mxu0
      %v5642 = vpop.f32.mrf.mxu0
      %v5643 = vadd.f32 %v5482, %v5642
      %v5644 = vpop.f32.mrf.mxu0
      %5645 = vmatprep.mubr.bf16.mxu0 0
      %5646 = vmatmul.mubr.bf16.gmra.mxu0 %v4266
      %v5647 = vpop.f32.mrf.mxu0
      %v5648 = vadd.f32 %v5487, %v5647
      %v5649 = vpop.f32.mrf.mxu0
      %v5650 = vpop.f32.mrf.mxu0
      %v5651 = vadd.f32 %v5490, %v5650
      %v5652 = vpop.f32.mrf.mxu0
      %5653 = vmatprep.mubr.bf16.mxu0 0
      %5654 = vmatmul.mubr.bf16.gmra.mxu0 %v4275
      %v5655 = vpop.f32.mrf.mxu0
      %v5656 = vadd.f32 %v5495, %v5655
      %v5657 = vpop.f32.mrf.mxu0
      %v5658 = vpop.f32.mrf.mxu0
      %v5659 = vadd.f32 %v5498, %v5658
      %v5660 = vpop.f32.mrf.mxu0
      %5661 = vmatprep.mubr.bf16.mxu0 0
      %5662 = vmatmul.mubr.bf16.gmra.mxu0 %v4284
      %v5663 = vpop.f32.mrf.mxu0
      %v5664 = vadd.f32 %v5503, %v5663
      %v5665 = vpop.f32.mrf.mxu0
      %v5666 = vpop.f32.mrf.mxu0
      %v5667 = vadd.f32 %v5506, %v5666
      %v5668 = vpop.f32.mrf.mxu0
      %5669 = vmatprep.mubr.bf16.mxu0 0
      %5670 = vmatmul.mubr.bf16.gmra.mxu0 %v4293
      %v5671 = vpop.f32.mrf.mxu0
      %v5672 = vadd.f32 %v5511, %v5671
      %v5673 = vpop.f32.mrf.mxu0
      %v5674 = vpop.f32.mrf.mxu0
      %v5675 = vadd.f32 %v5514, %v5674
      %v5676 = vpop.f32.mrf.mxu0
      %5677 = vmatprep.mubr.bf16.mxu0 0
      %5678 = vmatmul.mubr.bf16.gmra.mxu0 %v4302
      %v5679 = vpop.f32.mrf.mxu0
      %v5680 = vadd.f32 %v5519, %v5679
      %v5681 = vpop.f32.mrf.mxu0
      %v5682 = vpop.f32.mrf.mxu0
      %v5683 = vadd.f32 %v5522, %v5682
      %v5684 = vpop.f32.mrf.mxu0
      %5685 = vmatprep.mubr.bf16.mxu0 0
      %5686 = vmatmul.mubr.bf16.gmra.mxu0 %v4311
      %v5687 = vpop.f32.mrf.mxu0
      %v5688 = vadd.f32 %v5527, %v5687
      %v5689 = vpop.f32.mrf.mxu0
      %v5690 = vpop.f32.mrf.mxu0
      %v5691 = vadd.f32 %v5530, %v5690
      %v5692 = vpop.f32.mrf.mxu0
      %5693 = vmatprep.mubr.bf16.mxu0 0
      %5694 = vmatmul.mubr.bf16.gmra.mxu0 %v4320
      %v5695 = vpop.f32.mrf.mxu0
      %v5696 = vadd.f32 %v5535, %v5695
      %v5697 = vpop.f32.mrf.mxu0
      %v5698 = vpop.f32.mrf.mxu0
      %v5699 = vadd.f32 %v5538, %v5698
      %v5700 = vpop.f32.mrf.mxu0
      %5701 = vdwg.mxu0
      %v5702 = vmax.f32 %v5576, 0.0
      %v5703 = vmax.f32 %v5579, 0.0
      %v5704 = vmax.f32 %v5584, 0.0
      %v5705 = vmax.f32 %v5587, 0.0
      %v5706 = vmax.f32 %v5592, 0.0
      %v5707 = vmax.f32 %v5595, 0.0
      %v5708 = vmax.f32 %v5600, 0.0
      %v5709 = vmax.f32 %v5603, 0.0
      %v5710 = vmax.f32 %v5608, 0.0
      %v5711 = vmax.f32 %v5611, 0.0
      %v5712 = vmax.f32 %v5616, 0.0
      %v5713 = vmax.f32 %v5619, 0.0
      %v5714 = vmax.f32 %v5624, 0.0
      %v5715 = vmax.f32 %v5627, 0.0
      %v5716 = vmax.f32 %v5632, 0.0
      %v5717 = vmax.f32 %v5635, 0.0
      %v5718 = vmax.f32 %v5640, 0.0
      %v5719 = vmax.f32 %v5643, 0.0
      %v5720 = vmax.f32 %v5648, 0.0
      %v5721 = vmax.f32 %v5651, 0.0
      %v5722 = vmax.f32 %v5656, 0.0
      %v5723 = vmax.f32 %v5659, 0.0
      %v5724 = vmax.f32 %v5664, 0.0
      %v5725 = vmax.f32 %v5667, 0.0
      %v5726 = vmax.f32 %v5672, 0.0
      %v5727 = vmax.f32 %v5675, 0.0
      %v5728 = vmax.f32 %v5680, 0.0
      %v5729 = vmax.f32 %v5683, 0.0
      %v5730 = vmax.f32 %v5688, 0.0
      %v5731 = vmax.f32 %v5691, 0.0
      %v5732 = vmax.f32 %v5696, 0.0
      %v5733 = vmax.f32 %v5699, 0.0
      %v5734 = vpack.c.bf16 %v5703, %v5702
      %v5735 = vpack.c.bf16 %v5705, %v5704
      %v5736 = vpack.c.bf16 %v5707, %v5706
      %v5737 = vpack.c.bf16 %v5709, %v5708
      %v5738 = vpack.c.bf16 %v5711, %v5710
      %v5739 = vpack.c.bf16 %v5713, %v5712
      %v5740 = vpack.c.bf16 %v5715, %v5714
      %v5741 = vpack.c.bf16 %v5717, %v5716
      %v5742 = vpack.c.bf16 %v5719, %v5718
      %v5743 = vpack.c.bf16 %v5721, %v5720
      %v5744 = vpack.c.bf16 %v5723, %v5722
      %v5745 = vpack.c.bf16 %v5725, %v5724
      %v5746 = vpack.c.bf16 %v5727, %v5726
      %v5747 = vpack.c.bf16 %v5729, %v5728
      %v5748 = vpack.c.bf16 %v5731, %v5730
      %v5749 = vpack.c.bf16 %v5733, %v5732
      %v5750 = vld [vmem:[%s2] sm:$0xf]
      %v5751 = vld [vmem:[%s2 + $0x4] sm:$0xf]
      %v5752 = vld [vmem:[%s2 + $0x8] sm:$0xf]
      %v5753 = vld [vmem:[%s2 + $0xc] sm:$0xf]
      %v5754 = vld [vmem:[%s2 + $0x10] sm:$0xf]
      %v5755 = vld [vmem:[%s2 + $0x14] sm:$0xf]
      %v5756 = vld [vmem:[%s2 + $0x18] sm:$0xf]
      %v5757 = vld [vmem:[%s2 + $0x1c] sm:$0xf]
      %v5758 = vld [vmem:[%s2 + $0x20] sm:$0xf]
      %v5759 = vld [vmem:[%s2 + $0x24] sm:$0xf]
      %v5760 = vld [vmem:[%s2 + $0x28] sm:$0xf]
      %v5761 = vld [vmem:[%s2 + $0x2c] sm:$0xf]
      %v5762 = vld [vmem:[%s2 + $0x30] sm:$0xf]
      %v5763 = vld [vmem:[%s2 + $0x34] sm:$0xf]
      %v5764 = vld [vmem:[%s2 + $0x38] sm:$0xf]
      %v5765 = vld [vmem:[%s2 + $0x3c] sm:$0xf]
      %v5766 = vlaneseq
      %v5767 = vshrl.u32 %v5766, 7
      %v5768 = vsub.s32 0, %v5767
      %v5769 = vrot.slane %v3724, %v5768
      %v5786 = vunpack.c.l.b16 %v5750
      %v5787 = vunpack.c.l.b16 %v5751
      %v5788 = vunpack.c.l.b16 %v5752
      %v5789 = vunpack.c.l.b16 %v5753
      %v5790 = vunpack.c.l.b16 %v5754
      %v5791 = vunpack.c.l.b16 %v5755
      %v5792 = vunpack.c.l.b16 %v5756
      %v5793 = vunpack.c.l.b16 %v5757
      %v5794 = vunpack.c.l.b16 %v5758
      %v5795 = vunpack.c.l.b16 %v5759
      %v5796 = vunpack.c.l.b16 %v5760
      %v5797 = vunpack.c.l.b16 %v5761
      %v5798 = vunpack.c.l.b16 %v5762
      %v5799 = vunpack.c.l.b16 %v5763
      %v5800 = vunpack.c.l.b16 %v5764
      %v5801 = vunpack.c.l.b16 %v5765
      %v5802 = vpack.c.b16 %v5787, %v5786
      %v5803 = vpack.c.b16 %v5789, %v5788
      %v5804 = vpack.c.b16 %v5791, %v5790
      %v5805 = vpack.c.b16 %v5793, %v5792
      %v5806 = vpack.c.b16 %v5795, %v5794
      %v5807 = vpack.c.b16 %v5797, %v5796
      %v5808 = vpack.c.b16 %v5799, %v5798
      %v5809 = vpack.c.b16 %v5801, %v5800
      %5818 = vmatprep.subr.bf16.mxu0 0
      %5819 = vmatpush1.bf16.msra.mxu0 %v5809
      %5820 = vmatprep.subr.bf16.mxu0 0
      %5821 = vmatpush1.bf16.msra.mxu0 %v5808
      %5822 = vmatprep.subr.bf16.mxu0 0
      %5823 = vmatpush1.bf16.msra.mxu0 %v5807
      %5824 = vmatprep.subr.bf16.mxu0 0
      %5825 = vmatpush1.bf16.msra.mxu0 %v5806
      %5826 = vmatprep.subr.bf16.mxu0 0
      %5827 = vmatpush1.bf16.msra.mxu0 %v5805
      %5828 = vmatprep.subr.bf16.mxu0 0
      %5829 = vmatpush1.bf16.msra.mxu0 %v5804
      %5830 = vmatprep.subr.bf16.mxu0 0
      %5831 = vmatpush1.bf16.msra.mxu0 %v5803
      %5832 = vmatprep.subr.bf16.mxu0 0
      %5833 = vmatpush1.bf16.msra.mxu0 %v5802
      %5834 = vmatprep.subr.bf16.mxu0 0
      %5835 = vmatpush2.bf16.msra.mxu0 0
      %5836 = vmatprep.subr.bf16.mxu0 0
      %5837 = vmatpush2.bf16.msra.mxu0 0
      %5838 = vmatprep.subr.bf16.mxu0 0
      %5839 = vmatpush2.bf16.msra.mxu0 0
      %5840 = vmatprep.subr.bf16.mxu0 0
      %5841 = vmatpush2.bf16.msra.mxu0 0
      %5842 = vmatprep.subr.bf16.mxu0 0
      %5843 = vmatpush2.bf16.msra.mxu0 0
      %5844 = vmatprep.subr.bf16.mxu0 0
      %5845 = vmatpush2.bf16.msra.mxu0 0
      %5846 = vmatprep.subr.bf16.mxu0 0
      %5847 = vmatpush2.bf16.msra.mxu0 0
      %5848 = vmatprep.subr.bf16.mxu0 0
      %5849 = vmatpush2.bf16.msra.mxu0 0
      %5850 = vmatprep.mubr.bf16.mxu0 0
      %5851 = vmatmul.mubr.bf16.gmra.mxu0 %v5734
      %v5852 = vpop.f32.mrf.mxu0
      %v5853 = vadd.f32 %v5769, %v5852
      %v5854 = vpop.f32.mrf.mxu0
      %v5855 = vpop.f32.mrf.mxu0
      %v5856 = vadd.f32 %v5769, %v5855
      %v5857 = vpop.f32.mrf.mxu0
      %5858 = vmatprep.mubr.bf16.mxu0 0
      %5859 = vmatmul.mubr.bf16.gmra.mxu0 %v5735
      %v5860 = vpop.f32.mrf.mxu0
      %v5861 = vadd.f32 %v5769, %v5860
      %v5862 = vpop.f32.mrf.mxu0
      %v5863 = vpop.f32.mrf.mxu0
      %v5864 = vadd.f32 %v5769, %v5863
      %v5865 = vpop.f32.mrf.mxu0
      %5866 = vmatprep.mubr.bf16.mxu0 0
      %5867 = vmatmul.mubr.bf16.gmra.mxu0 %v5736
      %v5868 = vpop.f32.mrf.mxu0
      %v5869 = vadd.f32 %v5769, %v5868
      %v5870 = vpop.f32.mrf.mxu0
      %v5871 = vpop.f32.mrf.mxu0
      %v5872 = vadd.f32 %v5769, %v5871
      %v5873 = vpop.f32.mrf.mxu0
      %5874 = vmatprep.mubr.bf16.mxu0 0
      %5875 = vmatmul.mubr.bf16.gmra.mxu0 %v5737
      %v5876 = vpop.f32.mrf.mxu0
      %v5877 = vadd.f32 %v5769, %v5876
      %v5878 = vpop.f32.mrf.mxu0
      %v5879 = vpop.f32.mrf.mxu0
      %v5880 = vadd.f32 %v5769, %v5879
      %v5881 = vpop.f32.mrf.mxu0
      %5882 = vmatprep.mubr.bf16.mxu0 0
      %5883 = vmatmul.mubr.bf16.gmra.mxu0 %v5738
      %v5884 = vpop.f32.mrf.mxu0
      %v5885 = vadd.f32 %v5769, %v5884
      %v5886 = vpop.f32.mrf.mxu0
      %v5887 = vpop.f32.mrf.mxu0
      %v5888 = vadd.f32 %v5769, %v5887
      %v5889 = vpop.f32.mrf.mxu0
      %5890 = vmatprep.mubr.bf16.mxu0 0
      %5891 = vmatmul.mubr.bf16.gmra.mxu0 %v5739
      %v5892 = vpop.f32.mrf.mxu0
      %v5893 = vadd.f32 %v5769, %v5892
      %v5894 = vpop.f32.mrf.mxu0
      %v5895 = vpop.f32.mrf.mxu0
      %v5896 = vadd.f32 %v5769, %v5895
      %v5897 = vpop.f32.mrf.mxu0
      %5898 = vmatprep.mubr.bf16.mxu0 0
      %5899 = vmatmul.mubr.bf16.gmra.mxu0 %v5740
      %v5900 = vpop.f32.mrf.mxu0
      %v5901 = vadd.f32 %v5769, %v5900
      %v5902 = vpop.f32.mrf.mxu0
      %v5903 = vpop.f32.mrf.mxu0
      %v5904 = vadd.f32 %v5769, %v5903
      %v5905 = vpop.f32.mrf.mxu0
      %5906 = vmatprep.mubr.bf16.mxu0 0
      %5907 = vmatmul.mubr.bf16.gmra.mxu0 %v5741
      %v5908 = vpop.f32.mrf.mxu0
      %v5909 = vadd.f32 %v5769, %v5908
      %v5910 = vpop.f32.mrf.mxu0
      %v5911 = vpop.f32.mrf.mxu0
      %v5912 = vadd.f32 %v5769, %v5911
      %v5913 = vpop.f32.mrf.mxu0
      %5914 = vmatprep.mubr.bf16.mxu0 0
      %5915 = vmatmul.mubr.bf16.gmra.mxu0 %v5742
      %v5916 = vpop.f32.mrf.mxu0
      %v5917 = vadd.f32 %v5769, %v5916
      %v5918 = vpop.f32.mrf.mxu0
      %v5919 = vpop.f32.mrf.mxu0
      %v5920 = vadd.f32 %v5769, %v5919
      %v5921 = vpop.f32.mrf.mxu0
      %5922 = vmatprep.mubr.bf16.mxu0 0
      %5923 = vmatmul.mubr.bf16.gmra.mxu0 %v5743
      %v5924 = vpop.f32.mrf.mxu0
      %v5925 = vadd.f32 %v5769, %v5924
      %v5926 = vpop.f32.mrf.mxu0
      %v5927 = vpop.f32.mrf.mxu0
      %v5928 = vadd.f32 %v5769, %v5927
      %v5929 = vpop.f32.mrf.mxu0
      %5930 = vmatprep.mubr.bf16.mxu0 0
      %5931 = vmatmul.mubr.bf16.gmra.mxu0 %v5744
      %v5932 = vpop.f32.mrf.mxu0
      %v5933 = vadd.f32 %v5769, %v5932
      %v5934 = vpop.f32.mrf.mxu0
      %v5935 = vpop.f32.mrf.mxu0
      %v5936 = vadd.f32 %v5769, %v5935
      %v5937 = vpop.f32.mrf.mxu0
      %5938 = vmatprep.mubr.bf16.mxu0 0
      %5939 = vmatmul.mubr.bf16.gmra.mxu0 %v5745
      %v5940 = vpop.f32.mrf.mxu0
      %v5941 = vadd.f32 %v5769, %v5940
      %v5942 = vpop.f32.mrf.mxu0
      %v5943 = vpop.f32.mrf.mxu0
      %v5944 = vadd.f32 %v5769, %v5943
      %v5945 = vpop.f32.mrf.mxu0
      %5946 = vmatprep.mubr.bf16.mxu0 0
      %5947 = vmatmul.mubr.bf16.gmra.mxu0 %v5746
      %v5948 = vpop.f32.mrf.mxu0
      %v5949 = vadd.f32 %v5769, %v5948
      %v5950 = vpop.f32.mrf.mxu0
      %v5951 = vpop.f32.mrf.mxu0
      %v5952 = vadd.f32 %v5769, %v5951
      %v5953 = vpop.f32.mrf.mxu0
      %5954 = vmatprep.mubr.bf16.mxu0 0
      %5955 = vmatmul.mubr.bf16.gmra.mxu0 %v5747
      %v5956 = vpop.f32.mrf.mxu0
      %v5957 = vadd.f32 %v5769, %v5956
      %v5958 = vpop.f32.mrf.mxu0
      %v5959 = vpop.f32.mrf.mxu0
      %v5960 = vadd.f32 %v5769, %v5959
      %v5961 = vpop.f32.mrf.mxu0
      %5962 = vmatprep.mubr.bf16.mxu0 0
      %5963 = vmatmul.mubr.bf16.gmra.mxu0 %v5748
      %v5964 = vpop.f32.mrf.mxu0
      %v5965 = vadd.f32 %v5769, %v5964
      %v5966 = vpop.f32.mrf.mxu0
      %v5967 = vpop.f32.mrf.mxu0
      %v5968 = vadd.f32 %v5769, %v5967
      %v5969 = vpop.f32.mrf.mxu0
      %5970 = vmatprep.mubr.bf16.mxu0 0
      %5971 = vmatmul.mubr.bf16.gmra.mxu0 %v5749
      %v5972 = vpop.f32.mrf.mxu0
      %v5973 = vadd.f32 %v5769, %v5972
      %v5974 = vpop.f32.mrf.mxu0
      %v5975 = vpop.f32.mrf.mxu0
      %v5976 = vadd.f32 %v5769, %v5975
      %v5977 = vpop.f32.mrf.mxu0
      %5978 = vdwg.mxu0
      %v5979 = vadd.f32 %v319, %v5853
      %v5980 = vadd.f32 %v320, %v5856
      %v5981 = vadd.f32 %v321, %v5861
      %v5982 = vadd.f32 %v322, %v5864
      %v5983 = vadd.f32 %v323, %v5869
      %v5984 = vadd.f32 %v324, %v5872
      %v5985 = vadd.f32 %v325, %v5877
      %v5986 = vadd.f32 %v326, %v5880
      %v5987 = vadd.f32 %v327, %v5885
      %v5988 = vadd.f32 %v328, %v5888
      %v5989 = vadd.f32 %v329, %v5893
      %v5990 = vadd.f32 %v330, %v5896
      %v5991 = vadd.f32 %v331, %v5901
      %v5992 = vadd.f32 %v332, %v5904
      %v5993 = vadd.f32 %v333, %v5909
      %v5994 = vadd.f32 %v334, %v5912
      %v5995 = vadd.f32 %v335, %v5917
      %v5996 = vadd.f32 %v336, %v5920
      %v5997 = vadd.f32 %v337, %v5925
      %v5998 = vadd.f32 %v338, %v5928
      %v5999 = vadd.f32 %v339, %v5933
      %v6000 = vadd.f32 %v340, %v5936
      %v6001 = vadd.f32 %v341, %v5941
      %v6002 = vadd.f32 %v342, %v5944
      %v6003 = vadd.f32 %v343, %v5949
      %v6004 = vadd.f32 %v344, %v5952
      %v6005 = vadd.f32 %v345, %v5957
      %v6006 = vadd.f32 %v346, %v5960
      %v6007 = vadd.f32 %v347, %v5965
      %v6008 = vadd.f32 %v348, %v5968
      %v6009 = vadd.f32 %v349, %v5973
      %v6010 = vadd.f32 %v350, %v5976
      %6011 = vst [vmem:[%s197] sm:$0xff] %v5979
      %6012 = vst [vmem:[%s197 + $0x8] sm:$0xff] %v5980
      %6013 = vst [vmem:[%s197 + $0x10] sm:$0xff] %v5981
      %6014 = vst [vmem:[%s197 + $0x18] sm:$0xff] %v5982
      %6015 = vst [vmem:[%s197 + $0x20] sm:$0xff] %v5983
      %6016 = vst [vmem:[%s197 + $0x28] sm:$0xff] %v5984
      %6017 = vst [vmem:[%s197 + $0x30] sm:$0xff] %v5985
      %6018 = vst [vmem:[%s197 + $0x38] sm:$0xff] %v5986
      %6019 = vst [vmem:[%s197 + $0x40] sm:$0xff] %v5987
      %6020 = vst [vmem:[%s197 + $0x48] sm:$0xff] %v5988
      %6021 = vst [vmem:[%s197 + $0x50] sm:$0xff] %v5989
      %6022 = vst [vmem:[%s197 + $0x58] sm:$0xff] %v5990
      %6023 = vst [vmem:[%s197 + $0x60] sm:$0xff] %v5991
      %6024 = vst [vmem:[%s197 + $0x68] sm:$0xff] %v5992
      %6025 = vst [vmem:[%s197 + $0x70] sm:$0xff] %v5993
      %6026 = vst [vmem:[%s197 + $0x78] sm:$0xff] %v5994
      %6027 = vst [vmem:[%s197 + $0x80] sm:$0xff] %v5995
      %6028 = vst [vmem:[%s197 + $0x88] sm:$0xff] %v5996
      %6029 = vst [vmem:[%s197 + $0x90] sm:$0xff] %v5997
      %6030 = vst [vmem:[%s197 + $0x98] sm:$0xff] %v5998
      %6031 = vst [vmem:[%s197 + $0xa0] sm:$0xff] %v5999
      %6032 = vst [vmem:[%s197 + $0xa8] sm:$0xff] %v6000
      %6033 = vst [vmem:[%s197 + $0xb0] sm:$0xff] %v6001
      %6034 = vst [vmem:[%s197 + $0xb8] sm:$0xff] %v6002
      %6035 = vst [vmem:[%s197 + $0xc0] sm:$0xff] %v6003
      %6036 = vst [vmem:[%s197 + $0xc8] sm:$0xff] %v6004
      %6037 = vst [vmem:[%s197 + $0xd0] sm:$0xff] %v6005
      %6038 = vst [vmem:[%s197 + $0xd8] sm:$0xff] %v6006
      %6039 = vst [vmem:[%s197 + $0xe0] sm:$0xff] %v6007
      %6040 = vst [vmem:[%s197 + $0xe8] sm:$0xff] %v6008
      %6041 = vst [vmem:[%s197 + $0xf0] sm:$0xff] %v6009
      %6042 = vst [vmem:[%s197 + $0xf8] sm:$0xff] %v6010
      %p6043 = scmp.lt.s32.totalorder %s15, 1
      %s6044 = scalar_select %p6043, %s15, 1
      %s6045 = smul.addr %s6044, 32
      %s6046 = smul.addr %s6045, 8
      %s6047 = scalar_lea.vmem %s4, %s6046
      // Predicated region
      $region37: #{resblock_forward.1} parent=35 // pred_check
        %p6048 = pneg %p122
      $region38: #{resblock_forward.1} parent=35 // pred_check_branch
        %6050 = sbr.rel (%p6048) target = $region40
      $region39: #{resblock_forward.1} parent=35 // pred_region
        _
      $region40: #{resblock_forward.1} parent=35 // pred_fallthru
        _
    $region36: #{resblock_forward.1} parent=5 // pred_fallthru
      _
    %p6051 = scmp.le.s32.totalorder 2, %s10
    // Predicated region
    $region41: #{resblock_forward.1} parent=5 // pred_check
      %p6052 = pneg %p6051
    $region42: #{resblock_forward.1} parent=5 // pred_check_branch
      %6054 = sbr.rel (%p6052) target = $region44
    $region43: #{resblock_forward.1} parent=5 // pred_region
      %s6055 = ssub.s32 %s10, 2
      // Predicated region
      $region45: #{resblock_forward.1} parent=43 // pred_check
        %p6056 = pneg %p128
      $region46: #{resblock_forward.1} parent=43 // pred_check_branch
        %6058 = sbr.rel (%p6056) target = $region48
      $region47: #{resblock_forward.1} parent=43 // pred_region
        %p6059 = scmp.lt.s32.totalorder %s16, 1
        %s6060 = scalar_select %p6059, %s16, 1
        %s6061 = smul.addr %s6060, 32
        %s6062 = smul.addr %s6061, 8
        %s6063 = scalar_lea.vmem %s4, %s6062
      $region48: #{resblock_forward.1} parent=43 // pred_fallthru
        _
    $region44: #{resblock_forward.1} parent=5 // pred_fallthru
      _
  $region6: #{resblock_forward.1} parent=0 // loop_footer
    %s14 = sadd.s32 1, %s10
  $region7: #{resblock_forward.1} parent=0 // loop_footer_branch
    %9 = sbr.rel target = $region3
  $region8: #{resblock_forward.1} parent=0 // loop_exit
    _

</llo_original>
